<compile_context>
chip_gen: v7x
topology: tpu7x:2x2x1
jax: 0.10.0
libtpu: 0.0.40
codegen_flags: <defaults>
</compile_context>

<pallas_src>
import jax
import jax.numpy as jnp
from jax import lax
from jax.experimental import pallas as pl
from jax.experimental.pallas import tpu as pltpu

# ---------------- config (small, consistent with the module) ----------------
BS = 2                      # batch
NUM_TASKS = 4
NTASKS = NUM_TASKS + 1      # task_specs.num_tasks + 1
NQUBITS = 8
BOARD_SIZE = 4
V_HSIZE = 32                # cfg.v_hsize
MLP_DEPTH = 2               # cfg.mlp_depth
NUM_BINS = 8                # cfg.num_bins
LN_EPS = 1e-5               # torch.nn.LayerNorm default eps

assert V_HSIZE & (V_HSIZE - 1) == 0 and NQUBITS & (NQUBITS - 1) == 0
assert 2 * NUM_BINS + 1 <= V_HSIZE
assert BS == 2  # the in-kernel iota selectors use a ">= NTASKS" trick that assumes BS == 2
_LOG_D = V_HSIZE.bit_length() - 1     # 5
_LOG_N1 = NQUBITS.bit_length() - 1    # 3

# folded sizes
B1 = BS * NTASKS            # 10  samples seen by mixer1
L1 = B1 * NQUBITS           # 80  mixer1 lane extent  (sample, token)
T1 = B1 * NQUBITS * 4       # 320 mixer1 token-mix inner lanes
L2 = BS * NTASKS            # 10  mixer2 lane extent  (batch, task)
T2 = BS * NTASKS * 4        # 40  mixer2 token-mix inner lanes
D_INNER = V_HSIZE // 2      # 16  channel-mix inner dim
HEAD_W = 2 * NUM_BINS + 1   # 17  packed head width (corr | lat | gate)

# ---------------- packed f32 parameter slab: static layout ----------------
SLAB_W = 40


def _build_slab_layout():
    layout, r = {}, 0
    entries = [
        ("emb1_wT", 32, 8),    # mixer1 patch-embedding weight^T (in-channels zero-padded 4->8)
        ("vec1", 32, 16),      # mixer1 per-channel columns (bias, LN gamma/beta, channel-mix biases)
        ("vec2", 32, 16),      # mixer2 per-channel columns (+ packed head bias in col 15)
        ("m1_wc1", 32, 32),    # mixer1 channel-mix W1^T, depth-stacked (16 rows per depth)
        ("m1_wc2", 64, 16),    # mixer1 channel-mix W2^T, depth-stacked (32 rows per depth)
        ("m2_wc1", 32, 32),
        ("m2_wc2", 64, 16),
        ("bound_w", 256, 32),  # mixer2 embedding with reshape/permute folded: rows = (token n, ch2)
        ("head_w", 160, 32),   # packed 3 heads: rows = (task t, head col j) padded 17->32
        ("m2_t1", 32, 40),     # mixer2 token-mix 1: per depth 10 weight rows + 1 tiled-bias row
        ("m2_t2", 96, 10),     # mixer2 token-mix 2: per depth 40 weight rows + 1 tiled-bias row
    ]
    for name, nrows, ncols in entries:
        layout[name] = (r, nrows, ncols)
        r += ((nrows + 7) // 8) * 8
    return layout, r


SLAB_LAYOUT, SLAB_ROWS = _build_slab_layout()

# ---------------- in-kernel math helpers (trace into the kernel) ----------------
_GELU_C = 0.7978845608028654  # sqrt(2/pi)


def _ln_cols(x, g, b):
    """LayerNorm over the channel (sublane) axis 0; g, b are (D, 1) columns."""
    mu = jnp.mean(x, axis=0, keepdims=True)
    c = x - mu
    var = jnp.mean(c * c, axis=0, keepdims=True)
    return c * lax.rsqrt(var + LN_EPS) * g + b


def _gelu(x):
    # tanh-approximate GELU (EUP path).
    # TODO(synk): torch.nn.GELU() default is exact erf-GELU; the tanh form differs by <~1e-3.
    return 0.5 * x * (1.0 + jnp.tanh(_GELU_C * (x + 0.044715 * x * x * x)))


def _softplus(x):
    # stable softplus = max(x,0) + log(1 + exp(-|x|)); matches torch.nn.Softplus within <=exp(-20).
    t = jnp.exp(-jnp.abs(x))
    return jnp.maximum(x, 0.0) + jnp.where(t < 1e-4, t, jnp.log(1.0 + t))


# ---------------- the fused kernel ----------------
def value_net_kernel(x_ref, slab_ref, tok1_ref, tok2_ref, out_ref):
    f32, bf16 = jnp.float32, jnp.bfloat16

    def dot(a, b):
        return jnp.dot(a, b, preferred_element_type=f32)

    def blk(name):
        r0, nr, nc = SLAB_LAYOUT[name]
        return slab_ref[r0:r0 + nr, 0:nc]

    def iota(shape, axis):
        return lax.broadcasted_iota(jnp.int32, shape, axis)

    # ---- mixer1 patch embedding (channels on sublanes, (sample, token) on lanes) ----
    x = x_ref[...]                                        # (8, 80)  rows 4..7 zero-padded
    vec1 = blk("vec1")                                    # (32, 16)
    h = dot(blk("emb1_wT"), x) + vec1[:, 0:1]             # (32, 80)

    # ---- mixer1 trunk: token mixing via block-diag bf16 weights, channel mixing in f32 ----
    m1_wc1 = blk("m1_wc1")
    m1_wc2 = blk("m1_wc2")
    for d in range(MLP_DEPTH):
        y = _ln_cols(h, vec1[:, 1 + 4 * d:2 + 4 * d], vec1[:, 2 + 4 * d:3 + 4 * d])
        w1 = tok1_ref[d]                                  # (88, 320) bf16: rows 0:80 weight, row 80 bias
        t = _gelu(dot(y.astype(bf16), w1[0:L1, :]) + w1[L1:L1 + 1, :].astype(f32))   # (32, 320)
        w2 = tok2_ref[d]                                  # (328, 80) bf16: rows 0:320 weight, row 320 bias
        h = h + dot(t.astype(bf16), w2[0:T1, :]) + w2[T1:T1 + 1, :].astype(f32)      # (32, 80)

        y = _ln_cols(h, vec1[:, 3 + 4 * d:4 + 4 * d], vec1[:, 4 + 4 * d:5 + 4 * d])
        c = _gelu(dot(m1_wc1[16 * d:16 * (d + 1), :], y) + vec1[0:D_INNER, 13 + d:14 + d])   # (16, 80)
        h = h + dot(m1_wc2[32 * d:32 * (d + 1), :], c) + vec1[:, 11 + d:12 + d]              # (32, 80)
    h1 = _ln_cols(h, vec1[:, 9:10], vec1[:, 10:11])       # (32, 80)

    # ---- mixer1 -> mixer2 boundary (reshape(bs,ntasks,-1).permute folded into masks) ----
    vec2 = blk("vec2")
    P = dot(blk("bound_w"), h1)                           # (256, 80) rows = (token n, ch2)
    keep = (iota(P.shape, 0) >> _LOG_D) == (iota(P.shape, 1) & (NQUBITS - 1))   # n == m
    P = jnp.where(keep, P, 0.0)
    R = P[0:V_HSIZE, :]
    for n in range(1, NQUBITS):                           # fold the 8 token row-blocks
        R = R + P[V_HSIZE * n:V_HSIZE * (n + 1), :]       # (32, 80)
    scol = ((iota((L1, L2), 0) >> _LOG_N1) == iota((L1, L2), 1)).astype(f32)     # (80, 10)
    h = dot(R, scol) + vec2[:, 0:1]                       # (32, 10)

    # ---- mixer2 trunk (batch folded onto lanes, all weights from the f32 slab) ----
    m2_wc1 = blk("m2_wc1")
    m2_wc2 = blk("m2_wc2")
    m2_t1 = blk("m2_t1")                                  # (32, 40)
    m2_t2 = blk("m2_t2")                                  # (96, 10)
    for d in range(MLP_DEPTH):
        y = _ln_cols(h, vec2[:, 1 + 4 * d:2 + 4 * d], vec2[:, 2 + 4 * d:3 + 4 * d])
        t = _gelu(dot(y, m2_t1[16 * d:16 * d + L2, :]) + m2_t1[16 * d + L2:16 * d + L2 + 1, :])    # (32, 40)
        h = h + dot(t, m2_t2[48 * d:48 * d + T2, :]) + m2_t2[48 * d + T2:48 * d + T2 + 1, :]       # (32, 10)

        y = _ln_cols(h, vec2[:, 3 + 4 * d:4 + 4 * d], vec2[:, 4 + 4 * d:5 + 4 * d])
        c = _gelu(dot(m2_wc1[16 * d:16 * (d + 1), :], y) + vec2[0:D_INNER, 13 + d:14 + d])         # (16, 10)
        h = h + dot(m2_wc2[32 * d:32 * (d + 1), :], c) + vec2[:, 11 + d:12 + d]                    # (32, 10)
    h2 = _ln_cols(h, vec2[:, 9:10], vec2[:, 10:11])       # (32, 10)

    # ---- fused value heads: flatten(1) + 3 linear heads -> one (32, BS) output ----
    PH = dot(blk("head_w"), h2)                           # (160, 10) rows = (task t, head col j<32)
    r_i, c_i = iota(PH.shape, 0), iota(PH.shape, 1)
    t_of_c = jnp.where(c_i >= NTASKS, c_i - NTASKS, c_i)  # task index of the lane (valid for BS==2)
    PH = jnp.where((r_i >> _LOG_D) == t_of_c, PH, 0.0)
    Q = PH[0:V_HSIZE, :]
    for t_i in range(1, NTASKS):                          # fold the 5 task row-blocks
        Q = Q + PH[V_HSIZE * t_i:V_HSIZE * (t_i + 1), :]  # (32, 10)
    rb, cb = iota((L2, BS), 0), iota((L2, BS), 1)
    scol_b = ((rb >= NTASKS).astype(jnp.int32) == cb).astype(f32)                 # (10, 2)
    out = dot(Q, scol_b) + vec2[:, 15:16]                 # (32, 2): rows 0..7 corr, 8..15 lat, 16 gate
    rj = iota((V_HSIZE, BS), 0)
    out_ref[...] = jnp.where(rj == 2 * NUM_BINS, _softplus(out), out)


# ---------------- cost estimate (static) ----------------
_FLOPS = 2 * (
    V_HSIZE * 8 * L1
    + MLP_DEPTH * (2 * V_HSIZE * L1 * T1 + 2 * D_INNER * V_HSIZE * L1)
    + NQUBITS * V_HSIZE * V_HSIZE * L1 + V_HSIZE * L1 * L2
    + MLP_DEPTH * (2 * V_HSIZE * L2 * T2 + 2 * D_INNER * V_HSIZE * L2)
    + NTASKS * V_HSIZE * V_HSIZE * L2 + V_HSIZE * L2 * BS)
_TRANSCENDENTALS = (MLP_DEPTH * (V_HSIZE * T1 + D_INNER * L1)
                    + MLP_DEPTH * (V_HSIZE * T2 + D_INNER * L2) + V_HSIZE * BS)


# ---------------- wrapper: ONE grid-less pallas_call, 4 VMEM-resident inputs ----------
@jax.jit
def value_network_forward(grids, slab, tok1, tok2):
    bs, ntasks, board, nq = grids.shape
    # Layout plumbing only: channels -> sublanes, (sample, token) -> lanes, pad channels 4->8.
    x = grids.reshape(bs * ntasks, board, nq).transpose(1, 0, 2).reshape(board, bs * ntasks * nq)
    x = jnp.pad(x, ((0, 8 - board), (0, 0)))
    args = (x, slab, tok1, tok2)
    bytes_accessed = sum(a.size * a.dtype.itemsize for a in args) + V_HSIZE * bs * 4

    out = pl.pallas_call(
        value_net_kernel,
        out_shape=jax.ShapeDtypeStruct((V_HSIZE, bs), jnp.float32),
        in_specs=[pl.BlockSpec(memory_space=pltpu.MemorySpace.VMEM)] * len(args),
        out_specs=pl.BlockSpec(memory_space=pltpu.MemorySpace.VMEM),
        cost_estimate=pl.CostEstimate(flops=_FLOPS, transcendentals=_TRANSCENDENTALS,
                                      bytes_accessed=int(bytes_accessed)),
    )(*args)

    res = out.T                                            # (bs, 32)
    corr = res[:, :NUM_BINS]
    lat = res[:, NUM_BINS:2 * NUM_BINS]
    gate = res[:, 2 * NUM_BINS:2 * NUM_BINS + 1]
    return corr, lat, gate


# ---------------- one-time weight re-layout into the packed slabs ----------------
def prepare_kernel_params(nat):
    """Re-layout natural (PyTorch-shaped) weights into 3 packed slabs:
       slab  (SLAB_ROWS, 40) f32 : everything small (embeddings, LN, channel-mix, boundary,
                                   heads, mixer2 token-mix) as static row/col blocks.
       tok1  (depth, 88, 320) bf16: mixer1 token-mix W1 block-diag + tiled bias row.
       tok2  (depth, 328, 80) bf16: mixer1 token-mix W2 block-diag + tiled bias row."""
    m1, m2, hd = nat["mixer1"], nat["mixer2"], nat["heads"]
    f32, bf16 = jnp.float32, jnp.bfloat16
    eye = lambda n: jnp.eye(n, dtype=f32)
    D, depth = V_HSIZE, MLP_DEPTH

    # ---- bf16 block-diagonal token-mixing slabs for mixer1 ----
    tok1 = jnp.zeros((depth, 88, T1), f32)
    tok2 = jnp.zeros((depth, 328, L1), f32)
    for d in range(depth):
        tok1 = tok1.at[d, 0:L1, :].set(jnp.kron(eye(B1), m1["w1t"][d].T))       # (80, 320)
        tok1 = tok1.at[d, L1, :].set(jnp.tile(m1["b1t"][d], B1))                # (320,)
        tok2 = tok2.at[d, 0:T1, :].set(jnp.kron(eye(B1), m1["w2t"][d].T))       # (320, 80)
        tok2 = tok2.at[d, T1, :].set(jnp.tile(m1["b2t"][d], B1))                # (80,)
    tok1, tok2 = tok1.astype(bf16), tok2.astype(bf16)

    # ---- f32 slab ----
    slab = jnp.zeros((SLAB_ROWS, SLAB_W), f32)
    r0 = lambda name: SLAB_LAYOUT[name][0]

    def vec_block(p, head_bias=None):
        v = jnp.zeros((32, 16), f32)
        v = v.at[:, 0].set(p["be"])
        for d in range(depth):
            v = v.at[:, 1 + 4 * d].set(p["ln1g"][d])
            v = v.at[:, 2 + 4 * d].set(p["ln1b"][d])
            v = v.at[:, 3 + 4 * d].set(p["ln2g"][d])
            v = v.at[:, 4 + 4 * d].set(p["ln2b"][d])
            v = v.at[:, 11 + d].set(p["b2c"][d])
            v = v.at[0:D_INNER, 13 + d].set(p["b1c"][d])
        v = v.at[:, 9].set(p["lnfg"])
        v = v.at[:, 10].set(p["lnfb"])
        if head_bias is not None:
            v = v.at[0:head_bias.shape[0], 15].set(head_bias)
        return v

    slab = slab.at[r0("emb1_wT"):r0("emb1_wT") + 32, 0:BOARD_SIZE].set(m1["we"].T)
    slab = slab.at[r0("vec1"):r0("vec1") + 32, 0:16].set(vec_block(m1))
    head_b = jnp.concatenate([hd["bc"], hd["bl"], hd["bg"]])
    slab = slab.at[r0("vec2"):r0("vec2") + 32, 0:16].set(vec_block(m2, head_b))

    for d in range(depth):
        slab = slab.at[r0("m1_wc1") + 16 * d:r0("m1_wc1") + 16 * (d + 1), 0:32].set(m1["w1c"][d].T)
        slab = slab.at[r0("m1_wc2") + 32 * d:r0("m1_wc2") + 32 * (d + 1), 0:16].set(m1["w2c"][d].T)
        slab = slab.at[r0("m2_wc1") + 16 * d:r0("m2_wc1") + 16 * (d + 1), 0:32].set(m2["w1c"][d].T)
        slab = slab.at[r0("m2_wc2") + 32 * d:r0("m2_wc2") + 32 * (d + 1), 0:16].set(m2["w2c"][d].T)

    # mixer2 embedding with the reshape(bs,ntasks,nq*D) flatten folded in (n-major, ch1-minor,
    # exactly the torch x.reshape(bs,ntasks,-1) convention; the permute + Rearrange cancel).
    bw = m2["we"].reshape(NQUBITS, D, D).transpose(0, 2, 1).reshape(NQUBITS * D, D)
    slab = slab.at[r0("bound_w"):r0("bound_w") + NQUBITS * D, 0:D].set(bw)

    # packed heads (torch nn.Linear weights would be transposed to (in, out) first)
    whcat = jnp.concatenate([hd["wc"], hd["wl"], hd["wg"]], axis=1)              # (160, 17)
    wst = whcat.reshape(NTASKS, D, HEAD_W).transpose(0, 2, 1)                    # (5, 17, 32)
    wst = jnp.pad(wst, ((0, 0), (0, D - HEAD_W), (0, 0))).reshape(NTASKS * D, D)
    slab = slab.at[r0("head_w"):r0("head_w") + NTASKS * D, 0:D].set(wst)

    # mixer2 token-mixing (block-diag over the batch) + tiled bias rows
    for d in range(depth):
        slab = slab.at[r0("m2_t1") + 16 * d:r0("m2_t1") + 16 * d + L2, 0:T2].set(
            jnp.kron(eye(BS), m2["w1t"][d].T))
        slab = slab.at[r0("m2_t1") + 16 * d + L2, 0:T2].set(jnp.tile(m2["b1t"][d], BS))
        slab = slab.at[r0("m2_t2") + 48 * d:r0("m2_t2") + 48 * d + T2, 0:L2].set(
            jnp.kron(eye(BS), m2["w2t"][d].T))
        slab = slab.at[r0("m2_t2") + 48 * d + T2, 0:L2].set(jnp.tile(m2["b2t"][d], BS))
    return slab, tok1, tok2


# ---------------- deterministic "natural" parameter init (torch-like shapes) -----------
def init_mixer_params(key, channels, num_patches, dim, depth,
                      expansion_factor=4, expansion_factor_token=0.5):
    n_inner = int(num_patches * expansion_factor)
    d_inner = int(dim * expansion_factor_token)
    ks = jax.random.split(key, 10)
    w = lambda k, s, sc=0.05: (sc * jax.random.normal(k, s)).astype(jnp.float32)
    return {
        "we": w(ks[0], (channels, dim)),                 # Linear weight (transposed)
        "be": w(ks[1], (dim,)),
        "ln1g": jnp.ones((depth, dim), jnp.float32),
        "ln1b": jnp.zeros((depth, dim), jnp.float32),
        "w1t": w(ks[2], (depth, n_inner, num_patches)),  # Conv1d(k=1) weight
        "b1t": w(ks[3], (depth, n_inner)),
        "w2t": w(ks[4], (depth, num_patches, n_inner)),
        "b2t": w(ks[5], (depth, num_patches)),
        "ln2g": jnp.ones((depth, dim), jnp.float32),
        "ln2b": jnp.zeros((depth, dim), jnp.float32),
        "w1c": w(ks[6], (depth, dim, d_inner)),          # Linear weight (transposed)
        "b1c": w(ks[7], (depth, d_inner)),
        "w2c": w(ks[8], (depth, d_inner, dim)),
        "b2c": w(ks[9], (depth, dim)),
        "lnfg": jnp.ones((dim,), jnp.float32),
        "lnfb": jnp.zeros((dim,), jnp.float32),
    }


def init_head_params(key, feat, num_bins):
    ks = jax.random.split(key, 6)
    sc = 0.01  # mimics the `/100` scaling in __init__
    w = lambda k, s: (sc * jax.random.normal(k, s)).astype(jnp.float32)
    return {"wc": w(ks[0], (feat, num_bins)), "bc": w(ks[1], (num_bins,)),
            "wl": w(ks[2], (feat, num_bins)), "bl": w(ks[3], (num_bins,)),
            "wg": w(ks[4], (feat, 1)),        "bg": w(ks[5], (1,))}


# ---------------- pure-JAX reference (exact-erf GELU, f32, natural weights) ----------------
def _layernorm_rows(x, g, b):
    mu = jnp.mean(x, axis=-1, keepdims=True)
    c = x - mu
    var = jnp.mean(c * c, axis=-1, keepdims=True)
    return c * lax.rsqrt(var + LN_EPS) * g + b


def _gelu_exact(x):
    return 0.5 * x * (1.0 + lax.erf(x * 0.7071067811865476))


def _mixer_ref(x, p, depth):
    h = x @ p["we"] + p["be"]
    for d in range(depth):
        y = _layernorm_rows(h, p["ln1g"][d], p["ln1b"][d])
        t = jnp.einsum("in,bnd->bid", p["w1t"][d], y) + p["b1t"][d][None, :, None]
        t = _gelu_exact(t)
        t = jnp.einsum("ni,bid->bnd", p["w2t"][d], t) + p["b2t"][d][None, :, None]
        h = h + t
        y = _layernorm_rows(h, p["ln2g"][d], p["ln2b"][d])
        c = _gelu_exact(y @ p["w1c"][d] + p["b1c"][d]) @ p["w2c"][d] + p["b2c"][d]
        h = h + c
    return _layernorm_rows(h, p["lnfg"], p["lnfb"])


def value_network_ref(grids, nat):
    bs, ntasks, board, nq = grids.shape
    x1 = jnp.transpose(grids.reshape(bs * ntasks, board, nq), (0, 2, 1))
    h1 = _mixer_ref(x1, nat["mixer1"], MLP_DEPTH)
    h2 = _mixer_ref(h1.reshape(bs, ntasks, nq * V_HSIZE), nat["mixer2"], MLP_DEPTH)
    flat = h2.reshape(bs, ntasks * V_HSIZE)
    hd = nat["heads"]
    corr = flat @ hd["wc"] + hd["bc"]
    lat = flat @ hd["wl"] + hd["bl"]
    g = flat @ hd["wg"] + hd["bg"]
    gate = jnp.where(g > 20.0, g, jnp.log1p(jnp.exp(jnp.minimum(g, 20.0))))
    return corr, lat, gate


# ---------------- main ----------------
if __name__ == "__main__":
    key = jax.random.PRNGKey(0)
    k_in, k1, k2, kh = jax.random.split(key, 4)
    nat = {
        "mixer1": init_mixer_params(k1, BOARD_SIZE, NQUBITS, V_HSIZE, MLP_DEPTH),
        "mixer2": init_mixer_params(k2, NQUBITS * V_HSIZE, NTASKS, V_HSIZE, MLP_DEPTH),
        "heads": init_head_params(kh, NTASKS * V_HSIZE, NUM_BINS),
    }
    slab, tok1, tok2 = prepare_kernel_params(nat)   # one-time re-layout into 3 packed slabs
    grids = jax.random.normal(k_in, (BS, NTASKS, BOARD_SIZE, NQUBITS), jnp.float32)

    corr, lat, gate = value_network_forward(grids, slab, tok1, tok2)
    jax.block_until_ready((corr, lat, gate))

    assert corr.shape == (BS, NUM_BINS)
    assert lat.shape == (BS, NUM_BINS)
    assert gate.shape == (BS, 1)
    assert bool(jnp.all(jnp.isfinite(corr)) & jnp.all(jnp.isfinite(lat)) & jnp.all(jnp.isfinite(gate)))
    assert bool(jnp.all(gate >= 0.0))      # softplus output is positive

    rc, rl, rg = value_network_ref(grids, nat)
    assert jnp.allclose(corr, rc, atol=5e-2, rtol=5e-2)
    assert jnp.allclose(lat, rl, atol=5e-2, rtol=5e-2)
    assert jnp.allclose(gate, rg, atol=5e-2, rtol=5e-2)

    print("KERNEL_OK")
</pallas_src>

<mosaic_0001>
module attributes {stable_mosaic.version = 11 : i64} {
  func.func @value_net_kernel(%arg0: memref<8x80xf32, #tpu.memory_space<vmem>>, %arg1: memref<832x40xf32, #tpu.memory_space<vmem>>, %arg2: memref<2x88x320xbf16, #tpu.memory_space<vmem>>, %arg3: memref<2x328x80xbf16, #tpu.memory_space<vmem>>, %arg4: memref<32x2xf32, #tpu.memory_space<vmem>>) attributes {dimension_semantics = [], scalar_prefetch = 0 : i64, scratch_operands = 0 : i64, tpu.core_type = #tpu.core_type<tc>} {
    %c0 = arith.constant 0 : index
    %c0_0 = arith.constant 0 : index
    %0 = vector.load %arg0[%c0, %c0_0] : memref<8x80xf32, #tpu.memory_space<vmem>>, vector<8x80xf32>
    %c32 = arith.constant 32 : index
    %c0_1 = arith.constant 0 : index
    %1 = vector.load %arg1[%c32, %c0_1] : memref<832x40xf32, #tpu.memory_space<vmem>>, vector<32x16xf32>
    %c0_2 = arith.constant 0 : index
    %c0_3 = arith.constant 0 : index
    %2 = vector.load %arg1[%c0_2, %c0_3] : memref<832x40xf32, #tpu.memory_space<vmem>>, vector<32x8xf32>
    %cst = arith.constant dense<0.000000e+00> : vector<32x80xf32>
    %3 = tpu.matmul %2, %0, %cst {dimension_numbers = #tpu.dot_dimension_numbers<[1], [0], [0], [1], [0, 0, 1, 1], [], []>} : vector<32x8xf32>, vector<8x80xf32>, vector<32x80xf32> -> vector<32x80xf32>
    %4 = vector.extract_strided_slice %1 {offsets = [0, 0], sizes = [32, 1], strides = [1, 1]} : vector<32x16xf32> to vector<32x1xf32>
    %5 = vector.broadcast %4 : vector<32x1xf32> to vector<32x80xf32>
    %6 = arith.addf %3, %5 : vector<32x80xf32>
    %c96 = arith.constant 96 : index
    %c0_4 = arith.constant 0 : index
    %7 = vector.load %arg1[%c96, %c0_4] : memref<832x40xf32, #tpu.memory_space<vmem>>, vector<32x32xf32>
    %c128 = arith.constant 128 : index
    %c0_5 = arith.constant 0 : index
    %8 = vector.load %arg1[%c128, %c0_5] : memref<832x40xf32, #tpu.memory_space<vmem>>, vector<64x16xf32>
    %9 = vector.extract_strided_slice %1 {offsets = [0, 1], sizes = [32, 1], strides = [1, 1]} : vector<32x16xf32> to vector<32x1xf32>
    %10 = vector.extract_strided_slice %1 {offsets = [0, 2], sizes = [32, 1], strides = [1, 1]} : vector<32x16xf32> to vector<32x1xf32>
    %cst_6 = arith.constant dense<0.000000e+00> : vector<80xf32>
    %11 = vector.multi_reduction <add>, %6, %cst_6 [0] : vector<32x80xf32> to vector<80xf32>
    %12 = vector.shape_cast %11 : vector<80xf32> to vector<1x80xf32>
    %cst_7 = arith.constant 3.200000e+01 : f32
    %13 = vector.broadcast %cst_7 : f32 to vector<1x80xf32>
    %14 = arith.divf %12, %13 : vector<1x80xf32>
    %15 = vector.broadcast %14 : vector<1x80xf32> to vector<32x80xf32>
    %16 = arith.subf %6, %15 : vector<32x80xf32>
    %17 = arith.mulf %16, %16 : vector<32x80xf32>
    %cst_8 = arith.constant dense<0.000000e+00> : vector<80xf32>
    %18 = vector.multi_reduction <add>, %17, %cst_8 [0] : vector<32x80xf32> to vector<80xf32>
    %19 = vector.shape_cast %18 : vector<80xf32> to vector<1x80xf32>
    %cst_9 = arith.constant 3.200000e+01 : f32
    %20 = vector.broadcast %cst_9 : f32 to vector<1x80xf32>
    %21 = arith.divf %19, %20 : vector<1x80xf32>
    %cst_10 = arith.constant 9.99999974E-6 : f32
    %22 = vector.broadcast %cst_10 : f32 to vector<1x80xf32>
    %23 = arith.addf %21, %22 : vector<1x80xf32>
    %24 = math.rsqrt %23 : vector<1x80xf32>
    %25 = vector.broadcast %24 : vector<1x80xf32> to vector<32x80xf32>
    %26 = arith.mulf %16, %25 : vector<32x80xf32>
    %27 = vector.broadcast %9 : vector<32x1xf32> to vector<32x80xf32>
    %28 = arith.mulf %26, %27 : vector<32x80xf32>
    %29 = vector.broadcast %10 : vector<32x1xf32> to vector<32x80xf32>
    %30 = arith.addf %28, %29 : vector<32x80xf32>
    %c0_11 = arith.constant 0 : index
    %c0_12 = arith.constant 0 : index
    %c0_13 = arith.constant 0 : index
    %31 = vector.load %arg2[%c0_11, %c0_12, %c0_13] : memref<2x88x320xbf16, #tpu.memory_space<vmem>>, vector<1x88x320xbf16>
    %32 = vector.shape_cast %31 : vector<1x88x320xbf16> to vector<88x320xbf16>
    %33 = arith.truncf %30 : vector<32x80xf32> to vector<32x80xbf16>
    %34 = vector.extract_strided_slice %32 {offsets = [0, 0], sizes = [80, 320], strides = [1, 1]} : vector<88x320xbf16> to vector<80x320xbf16>
    %cst_14 = arith.constant dense<0.000000e+00> : vector<32x320xf32>
    %35 = tpu.matmul %33, %34, %cst_14 {dimension_numbers = #tpu.dot_dimension_numbers<[1], [0], [0], [1], [0, 0, 1, 1], [], []>} : vector<32x80xbf16>, vector<80x320xbf16>, vector<32x320xf32> -> vector<32x320xf32>
    %36 = vector.extract_strided_slice %32 {offsets = [80, 0], sizes = [1, 320], strides = [1, 1]} : vector<88x320xbf16> to vector<1x320xbf16>
    %37 = arith.extf %36 : vector<1x320xbf16> to vector<1x320xf32>
    %38 = vector.broadcast %37 : vector<1x320xf32> to vector<32x320xf32>
    %39 = arith.addf %35, %38 : vector<32x320xf32>
    %cst_15 = arith.constant 5.000000e-01 : f32
    %40 = vector.broadcast %cst_15 : f32 to vector<32x320xf32>
    %41 = arith.mulf %40, %39 : vector<32x320xf32>
    %cst_16 = arith.constant 4.471500e-02 : f32
    %42 = vector.broadcast %cst_16 : f32 to vector<32x320xf32>
    %43 = arith.mulf %42, %39 : vector<32x320xf32>
    %44 = arith.mulf %43, %39 : vector<32x320xf32>
    %45 = arith.mulf %44, %39 : vector<32x320xf32>
    %46 = arith.addf %39, %45 : vector<32x320xf32>
    %cst_17 = arith.constant 0.797884583 : f32
    %47 = vector.broadcast %cst_17 : f32 to vector<32x320xf32>
    %48 = arith.mulf %47, %46 : vector<32x320xf32>
    %49 = math.tanh %48 : vector<32x320xf32>
    %cst_18 = arith.constant 1.000000e+00 : f32
    %50 = vector.broadcast %cst_18 : f32 to vector<32x320xf32>
    %51 = arith.addf %50, %49 : vector<32x320xf32>
    %52 = arith.mulf %41, %51 : vector<32x320xf32>
    %c0_19 = arith.constant 0 : index
    %c0_20 = arith.constant 0 : index
    %c0_21 = arith.constant 0 : index
    %53 = vector.load %arg3[%c0_19, %c0_20, %c0_21] : memref<2x328x80xbf16, #tpu.memory_space<vmem>>, vector<1x328x80xbf16>
    %54 = vector.shape_cast %53 : vector<1x328x80xbf16> to vector<328x80xbf16>
    %55 = arith.truncf %52 : vector<32x320xf32> to vector<32x320xbf16>
    %56 = vector.extract_strided_slice %54 {offsets = [0, 0], sizes = [320, 80], strides = [1, 1]} : vector<328x80xbf16> to vector<320x80xbf16>
    %cst_22 = arith.constant dense<0.000000e+00> : vector<32x80xf32>
    %57 = tpu.matmul %55, %56, %cst_22 {dimension_numbers = #tpu.dot_dimension_numbers<[1], [0], [0], [1], [0, 0, 1, 1], [], []>} : vector<32x320xbf16>, vector<320x80xbf16>, vector<32x80xf32> -> vector<32x80xf32>
    %58 = arith.addf %6, %57 : vector<32x80xf32>
    %59 = vector.extract_strided_slice %54 {offsets = [320, 0], sizes = [1, 80], strides = [1, 1]} : vector<328x80xbf16> to vector<1x80xbf16>
    %60 = arith.extf %59 : vector<1x80xbf16> to vector<1x80xf32>
    %61 = vector.broadcast %60 : vector<1x80xf32> to vector<32x80xf32>
    %62 = arith.addf %58, %61 : vector<32x80xf32>
    %63 = vector.extract_strided_slice %1 {offsets = [0, 3], sizes = [32, 1], strides = [1, 1]} : vector<32x16xf32> to vector<32x1xf32>
    %64 = vector.extract_strided_slice %1 {offsets = [0, 4], sizes = [32, 1], strides = [1, 1]} : vector<32x16xf32> to vector<32x1xf32>
    %cst_23 = arith.constant dense<0.000000e+00> : vector<80xf32>
    %65 = vector.multi_reduction <add>, %62, %cst_23 [0] : vector<32x80xf32> to vector<80xf32>
    %66 = vector.shape_cast %65 : vector<80xf32> to vector<1x80xf32>
    %cst_24 = arith.constant 3.200000e+01 : f32
    %67 = vector.broadcast %cst_24 : f32 to vector<1x80xf32>
    %68 = arith.divf %66, %67 : vector<1x80xf32>
    %69 = vector.broadcast %68 : vector<1x80xf32> to vector<32x80xf32>
    %70 = arith.subf %62, %69 : vector<32x80xf32>
    %71 = arith.mulf %70, %70 : vector<32x80xf32>
    %cst_25 = arith.constant dense<0.000000e+00> : vector<80xf32>
    %72 = vector.multi_reduction <add>, %71, %cst_25 [0] : vector<32x80xf32> to vector<80xf32>
    %73 = vector.shape_cast %72 : vector<80xf32> to vector<1x80xf32>
    %cst_26 = arith.constant 3.200000e+01 : f32
    %74 = vector.broadcast %cst_26 : f32 to vector<1x80xf32>
    %75 = arith.divf %73, %74 : vector<1x80xf32>
    %cst_27 = arith.constant 9.99999974E-6 : f32
    %76 = vector.broadcast %cst_27 : f32 to vector<1x80xf32>
    %77 = arith.addf %75, %76 : vector<1x80xf32>
    %78 = math.rsqrt %77 : vector<1x80xf32>
    %79 = vector.broadcast %78 : vector<1x80xf32> to vector<32x80xf32>
    %80 = arith.mulf %70, %79 : vector<32x80xf32>
    %81 = vector.broadcast %63 : vector<32x1xf32> to vector<32x80xf32>
    %82 = arith.mulf %80, %81 : vector<32x80xf32>
    %83 = vector.broadcast %64 : vector<32x1xf32> to vector<32x80xf32>
    %84 = arith.addf %82, %83 : vector<32x80xf32>
    %85 = vector.extract_strided_slice %7 {offsets = [0, 0], sizes = [16, 32], strides = [1, 1]} : vector<32x32xf32> to vector<16x32xf32>
    %cst_28 = arith.constant dense<0.000000e+00> : vector<16x80xf32>
    %86 = tpu.matmul %85, %84, %cst_28 {dimension_numbers = #tpu.dot_dimension_numbers<[1], [0], [0], [1], [0, 0, 1, 1], [], []>} : vector<16x32xf32>, vector<32x80xf32>, vector<16x80xf32> -> vector<16x80xf32>
    %87 = vector.extract_strided_slice %1 {offsets = [0, 13], sizes = [16, 1], strides = [1, 1]} : vector<32x16xf32> to vector<16x1xf32>
    %88 = vector.broadcast %87 : vector<16x1xf32> to vector<16x80xf32>
    %89 = arith.addf %86, %88 : vector<16x80xf32>
    %cst_29 = arith.constant 5.000000e-01 : f32
    %90 = vector.broadcast %cst_29 : f32 to vector<16x80xf32>
    %91 = arith.mulf %90, %89 : vector<16x80xf32>
    %cst_30 = arith.constant 4.471500e-02 : f32
    %92 = vector.broadcast %cst_30 : f32 to vector<16x80xf32>
    %93 = arith.mulf %92, %89 : vector<16x80xf32>
    %94 = arith.mulf %93, %89 : vector<16x80xf32>
    %95 = arith.mulf %94, %89 : vector<16x80xf32>
    %96 = arith.addf %89, %95 : vector<16x80xf32>
    %cst_31 = arith.constant 0.797884583 : f32
    %97 = vector.broadcast %cst_31 : f32 to vector<16x80xf32>
    %98 = arith.mulf %97, %96 : vector<16x80xf32>
    %99 = math.tanh %98 : vector<16x80xf32>
    %cst_32 = arith.constant 1.000000e+00 : f32
    %100 = vector.broadcast %cst_32 : f32 to vector<16x80xf32>
    %101 = arith.addf %100, %99 : vector<16x80xf32>
    %102 = arith.mulf %91, %101 : vector<16x80xf32>
    %103 = vector.extract_strided_slice %8 {offsets = [0, 0], sizes = [32, 16], strides = [1, 1]} : vector<64x16xf32> to vector<32x16xf32>
    %cst_33 = arith.constant dense<0.000000e+00> : vector<32x80xf32>
    %104 = tpu.matmul %103, %102, %cst_33 {dimension_numbers = #tpu.dot_dimension_numbers<[1], [0], [0], [1], [0, 0, 1, 1], [], []>} : vector<32x16xf32>, vector<16x80xf32>, vector<32x80xf32> -> vector<32x80xf32>
    %105 = arith.addf %62, %104 : vector<32x80xf32>
    %106 = vector.extract_strided_slice %1 {offsets = [0, 11], sizes = [32, 1], strides = [1, 1]} : vector<32x16xf32> to vector<32x1xf32>
    %107 = vector.broadcast %106 : vector<32x1xf32> to vector<32x80xf32>
    %108 = arith.addf %105, %107 : vector<32x80xf32>
    %109 = vector.extract_strided_slice %1 {offsets = [0, 5], sizes = [32, 1], strides = [1, 1]} : vector<32x16xf32> to vector<32x1xf32>
    %110 = vector.extract_strided_slice %1 {offsets = [0, 6], sizes = [32, 1], strides = [1, 1]} : vector<32x16xf32> to vector<32x1xf32>
    %cst_34 = arith.constant dense<0.000000e+00> : vector<80xf32>
    %111 = vector.multi_reduction <add>, %108, %cst_34 [0] : vector<32x80xf32> to vector<80xf32>
    %112 = vector.shape_cast %111 : vector<80xf32> to vector<1x80xf32>
    %cst_35 = arith.constant 3.200000e+01 : f32
    %113 = vector.broadcast %cst_35 : f32 to vector<1x80xf32>
    %114 = arith.divf %112, %113 : vector<1x80xf32>
    %115 = vector.broadcast %114 : vector<1x80xf32> to vector<32x80xf32>
    %116 = arith.subf %108, %115 : vector<32x80xf32>
    %117 = arith.mulf %116, %116 : vector<32x80xf32>
    %cst_36 = arith.constant dense<0.000000e+00> : vector<80xf32>
    %118 = vector.multi_reduction <add>, %117, %cst_36 [0] : vector<32x80xf32> to vector<80xf32>
    %119 = vector.shape_cast %118 : vector<80xf32> to vector<1x80xf32>
    %cst_37 = arith.constant 3.200000e+01 : f32
    %120 = vector.broadcast %cst_37 : f32 to vector<1x80xf32>
    %121 = arith.divf %119, %120 : vector<1x80xf32>
    %cst_38 = arith.constant 9.99999974E-6 : f32
    %122 = vector.broadcast %cst_38 : f32 to vector<1x80xf32>
    %123 = arith.addf %121, %122 : vector<1x80xf32>
    %124 = math.rsqrt %123 : vector<1x80xf32>
    %125 = vector.broadcast %124 : vector<1x80xf32> to vector<32x80xf32>
    %126 = arith.mulf %116, %125 : vector<32x80xf32>
    %127 = vector.broadcast %109 : vector<32x1xf32> to vector<32x80xf32>
    %128 = arith.mulf %126, %127 : vector<32x80xf32>
    %129 = vector.broadcast %110 : vector<32x1xf32> to vector<32x80xf32>
    %130 = arith.addf %128, %129 : vector<32x80xf32>
    %c1 = arith.constant 1 : index
    %c0_39 = arith.constant 0 : index
    %c0_40 = arith.constant 0 : index
    %131 = vector.load %arg2[%c1, %c0_39, %c0_40] : memref<2x88x320xbf16, #tpu.memory_space<vmem>>, vector<1x88x320xbf16>
    %132 = vector.shape_cast %131 : vector<1x88x320xbf16> to vector<88x320xbf16>
    %133 = arith.truncf %130 : vector<32x80xf32> to vector<32x80xbf16>
    %134 = vector.extract_strided_slice %132 {offsets = [0, 0], sizes = [80, 320], strides = [1, 1]} : vector<88x320xbf16> to vector<80x320xbf16>
    %cst_41 = arith.constant dense<0.000000e+00> : vector<32x320xf32>
    %135 = tpu.matmul %133, %134, %cst_41 {dimension_numbers = #tpu.dot_dimension_numbers<[1], [0], [0], [1], [0, 0, 1, 1], [], []>} : vector<32x80xbf16>, vector<80x320xbf16>, vector<32x320xf32> -> vector<32x320xf32>
    %136 = vector.extract_strided_slice %132 {offsets = [80, 0], sizes = [1, 320], strides = [1, 1]} : vector<88x320xbf16> to vector<1x320xbf16>
    %137 = arith.extf %136 : vector<1x320xbf16> to vector<1x320xf32>
    %138 = vector.broadcast %137 : vector<1x320xf32> to vector<32x320xf32>
    %139 = arith.addf %135, %138 : vector<32x320xf32>
    %cst_42 = arith.constant 5.000000e-01 : f32
    %140 = vector.broadcast %cst_42 : f32 to vector<32x320xf32>
    %141 = arith.mulf %140, %139 : vector<32x320xf32>
    %cst_43 = arith.constant 4.471500e-02 : f32
    %142 = vector.broadcast %cst_43 : f32 to vector<32x320xf32>
    %143 = arith.mulf %142, %139 : vector<32x320xf32>
    %144 = arith.mulf %143, %139 : vector<32x320xf32>
    %145 = arith.mulf %144, %139 : vector<32x320xf32>
    %146 = arith.addf %139, %145 : vector<32x320xf32>
    %cst_44 = arith.constant 0.797884583 : f32
    %147 = vector.broadcast %cst_44 : f32 to vector<32x320xf32>
    %148 = arith.mulf %147, %146 : vector<32x320xf32>
    %149 = math.tanh %148 : vector<32x320xf32>
    %cst_45 = arith.constant 1.000000e+00 : f32
    %150 = vector.broadcast %cst_45 : f32 to vector<32x320xf32>
    %151 = arith.addf %150, %149 : vector<32x320xf32>
    %152 = arith.mulf %141, %151 : vector<32x320xf32>
    %c1_46 = arith.constant 1 : index
    %c0_47 = arith.constant 0 : index
    %c0_48 = arith.constant 0 : index
    %153 = vector.load %arg3[%c1_46, %c0_47, %c0_48] : memref<2x328x80xbf16, #tpu.memory_space<vmem>>, vector<1x328x80xbf16>
    %154 = vector.shape_cast %153 : vector<1x328x80xbf16> to vector<328x80xbf16>
    %155 = arith.truncf %152 : vector<32x320xf32> to vector<32x320xbf16>
    %156 = vector.extract_strided_slice %154 {offsets = [0, 0], sizes = [320, 80], strides = [1, 1]} : vector<328x80xbf16> to vector<320x80xbf16>
    %cst_49 = arith.constant dense<0.000000e+00> : vector<32x80xf32>
    %157 = tpu.matmul %155, %156, %cst_49 {dimension_numbers = #tpu.dot_dimension_numbers<[1], [0], [0], [1], [0, 0, 1, 1], [], []>} : vector<32x320xbf16>, vector<320x80xbf16>, vector<32x80xf32> -> vector<32x80xf32>
    %158 = arith.addf %108, %157 : vector<32x80xf32>
    %159 = vector.extract_strided_slice %154 {offsets = [320, 0], sizes = [1, 80], strides = [1, 1]} : vector<328x80xbf16> to vector<1x80xbf16>
    %160 = arith.extf %159 : vector<1x80xbf16> to vector<1x80xf32>
    %161 = vector.broadcast %160 : vector<1x80xf32> to vector<32x80xf32>
    %162 = arith.addf %158, %161 : vector<32x80xf32>
    %163 = vector.extract_strided_slice %1 {offsets = [0, 7], sizes = [32, 1], strides = [1, 1]} : vector<32x16xf32> to vector<32x1xf32>
    %164 = vector.extract_strided_slice %1 {offsets = [0, 8], sizes = [32, 1], strides = [1, 1]} : vector<32x16xf32> to vector<32x1xf32>
    %cst_50 = arith.constant dense<0.000000e+00> : vector<80xf32>
    %165 = vector.multi_reduction <add>, %162, %cst_50 [0] : vector<32x80xf32> to vector<80xf32>
    %166 = vector.shape_cast %165 : vector<80xf32> to vector<1x80xf32>
    %cst_51 = arith.constant 3.200000e+01 : f32
    %167 = vector.broadcast %cst_51 : f32 to vector<1x80xf32>
    %168 = arith.divf %166, %167 : vector<1x80xf32>
    %169 = vector.broadcast %168 : vector<1x80xf32> to vector<32x80xf32>
    %170 = arith.subf %162, %169 : vector<32x80xf32>
    %171 = arith.mulf %170, %170 : vector<32x80xf32>
    %cst_52 = arith.constant dense<0.000000e+00> : vector<80xf32>
    %172 = vector.multi_reduction <add>, %171, %cst_52 [0] : vector<32x80xf32> to vector<80xf32>
    %173 = vector.shape_cast %172 : vector<80xf32> to vector<1x80xf32>
    %cst_53 = arith.constant 3.200000e+01 : f32
    %174 = vector.broadcast %cst_53 : f32 to vector<1x80xf32>
    %175 = arith.divf %173, %174 : vector<1x80xf32>
    %cst_54 = arith.constant 9.99999974E-6 : f32
    %176 = vector.broadcast %cst_54 : f32 to vector<1x80xf32>
    %177 = arith.addf %175, %176 : vector<1x80xf32>
    %178 = math.rsqrt %177 : vector<1x80xf32>
    %179 = vector.broadcast %178 : vector<1x80xf32> to vector<32x80xf32>
    %180 = arith.mulf %170, %179 : vector<32x80xf32>
    %181 = vector.broadcast %163 : vector<32x1xf32> to vector<32x80xf32>
    %182 = arith.mulf %180, %181 : vector<32x80xf32>
    %183 = vector.broadcast %164 : vector<32x1xf32> to vector<32x80xf32>
    %184 = arith.addf %182, %183 : vector<32x80xf32>
    %185 = vector.extract_strided_slice %7 {offsets = [16, 0], sizes = [16, 32], strides = [1, 1]} : vector<32x32xf32> to vector<16x32xf32>
    %cst_55 = arith.constant dense<0.000000e+00> : vector<16x80xf32>
    %186 = tpu.matmul %185, %184, %cst_55 {dimension_numbers = #tpu.dot_dimension_numbers<[1], [0], [0], [1], [0, 0, 1, 1], [], []>} : vector<16x32xf32>, vector<32x80xf32>, vector<16x80xf32> -> vector<16x80xf32>
    %187 = vector.extract_strided_slice %1 {offsets = [0, 14], sizes = [16, 1], strides = [1, 1]} : vector<32x16xf32> to vector<16x1xf32>
    %188 = vector.broadcast %187 : vector<16x1xf32> to vector<16x80xf32>
    %189 = arith.addf %186, %188 : vector<16x80xf32>
    %cst_56 = arith.constant 5.000000e-01 : f32
    %190 = vector.broadcast %cst_56 : f32 to vector<16x80xf32>
    %191 = arith.mulf %190, %189 : vector<16x80xf32>
    %cst_57 = arith.constant 4.471500e-02 : f32
    %192 = vector.broadcast %cst_57 : f32 to vector<16x80xf32>
    %193 = arith.mulf %192, %189 : vector<16x80xf32>
    %194 = arith.mulf %193, %189 : vector<16x80xf32>
    %195 = arith.mulf %194, %189 : vector<16x80xf32>
    %196 = arith.addf %189, %195 : vector<16x80xf32>
    %cst_58 = arith.constant 0.797884583 : f32
    %197 = vector.broadcast %cst_58 : f32 to vector<16x80xf32>
    %198 = arith.mulf %197, %196 : vector<16x80xf32>
    %199 = math.tanh %198 : vector<16x80xf32>
    %cst_59 = arith.constant 1.000000e+00 : f32
    %200 = vector.broadcast %cst_59 : f32 to vector<16x80xf32>
    %201 = arith.addf %200, %199 : vector<16x80xf32>
    %202 = arith.mulf %191, %201 : vector<16x80xf32>
    %203 = vector.extract_strided_slice %8 {offsets = [32, 0], sizes = [32, 16], strides = [1, 1]} : vector<64x16xf32> to vector<32x16xf32>
    %cst_60 = arith.constant dense<0.000000e+00> : vector<32x80xf32>
    %204 = tpu.matmul %203, %202, %cst_60 {dimension_numbers = #tpu.dot_dimension_numbers<[1], [0], [0], [1], [0, 0, 1, 1], [], []>} : vector<32x16xf32>, vector<16x80xf32>, vector<32x80xf32> -> vector<32x80xf32>
    %205 = arith.addf %162, %204 : vector<32x80xf32>
    %206 = vector.extract_strided_slice %1 {offsets = [0, 12], sizes = [32, 1], strides = [1, 1]} : vector<32x16xf32> to vector<32x1xf32>
    %207 = vector.broadcast %206 : vector<32x1xf32> to vector<32x80xf32>
    %208 = arith.addf %205, %207 : vector<32x80xf32>
    %209 = vector.extract_strided_slice %1 {offsets = [0, 9], sizes = [32, 1], strides = [1, 1]} : vector<32x16xf32> to vector<32x1xf32>
    %210 = vector.extract_strided_slice %1 {offsets = [0, 10], sizes = [32, 1], strides = [1, 1]} : vector<32x16xf32> to vector<32x1xf32>
    %cst_61 = arith.constant dense<0.000000e+00> : vector<80xf32>
    %211 = vector.multi_reduction <add>, %208, %cst_61 [0] : vector<32x80xf32> to vector<80xf32>
    %212 = vector.shape_cast %211 : vector<80xf32> to vector<1x80xf32>
    %cst_62 = arith.constant 3.200000e+01 : f32
    %213 = vector.broadcast %cst_62 : f32 to vector<1x80xf32>
    %214 = arith.divf %212, %213 : vector<1x80xf32>
    %215 = vector.broadcast %214 : vector<1x80xf32> to vector<32x80xf32>
    %216 = arith.subf %208, %215 : vector<32x80xf32>
    %217 = arith.mulf %216, %216 : vector<32x80xf32>
    %cst_63 = arith.constant dense<0.000000e+00> : vector<80xf32>
    %218 = vector.multi_reduction <add>, %217, %cst_63 [0] : vector<32x80xf32> to vector<80xf32>
    %219 = vector.shape_cast %218 : vector<80xf32> to vector<1x80xf32>
    %cst_64 = arith.constant 3.200000e+01 : f32
    %220 = vector.broadcast %cst_64 : f32 to vector<1x80xf32>
    %221 = arith.divf %219, %220 : vector<1x80xf32>
    %cst_65 = arith.constant 9.99999974E-6 : f32
    %222 = vector.broadcast %cst_65 : f32 to vector<1x80xf32>
    %223 = arith.addf %221, %222 : vector<1x80xf32>
    %224 = math.rsqrt %223 : vector<1x80xf32>
    %225 = vector.broadcast %224 : vector<1x80xf32> to vector<32x80xf32>
    %226 = arith.mulf %216, %225 : vector<32x80xf32>
    %227 = vector.broadcast %209 : vector<32x1xf32> to vector<32x80xf32>
    %228 = arith.mulf %226, %227 : vector<32x80xf32>
    %229 = vector.broadcast %210 : vector<32x1xf32> to vector<32x80xf32>
    %230 = arith.addf %228, %229 : vector<32x80xf32>
    %c64 = arith.constant 64 : index
    %c0_66 = arith.constant 0 : index
    %231 = vector.load %arg1[%c64, %c0_66] : memref<832x40xf32, #tpu.memory_space<vmem>>, vector<32x16xf32>
    %c288 = arith.constant 288 : index
    %c0_67 = arith.constant 0 : index
    %232 = vector.load %arg1[%c288, %c0_67] : memref<832x40xf32, #tpu.memory_space<vmem>>, vector<256x32xf32>
    %cst_68 = arith.constant dense<0.000000e+00> : vector<256x80xf32>
    %233 = tpu.matmul %232, %230, %cst_68 {dimension_numbers = #tpu.dot_dimension_numbers<[1], [0], [0], [1], [0, 0, 1, 1], [], []>} : vector<256x32xf32>, vector<32x80xf32>, vector<256x80xf32> -> vector<256x80xf32>
    %234 = tpu.iota {dimensions = array<i32: 0>} : vector<256x80xi32>
    %c5_i32 = arith.constant 5 : i32
    %235 = vector.broadcast %c5_i32 : i32 to vector<256x80xi32>
    %236 = arith.shrsi %234, %235 : vector<256x80xi32>
    %237 = tpu.iota {dimensions = array<i32: 1>} : vector<256x80xi32>
    %c7_i32 = arith.constant 7 : i32
    %238 = vector.broadcast %c7_i32 : i32 to vector<256x80xi32>
    %239 = arith.andi %237, %238 : vector<256x80xi32>
    %240 = arith.cmpi eq, %236, %239 : vector<256x80xi32>
    %cst_69 = arith.constant 0.000000e+00 : f32
    %241 = vector.broadcast %cst_69 : f32 to vector<256x80xf32>
    %242 = arith.select %240, %233, %241 : vector<256x80xi1>, vector<256x80xf32>
    %243 = vector.extract_strided_slice %242 {offsets = [0, 0], sizes = [32, 80], strides = [1, 1]} : vector<256x80xf32> to vector<32x80xf32>
    %244 = vector.extract_strided_slice %242 {offsets = [32, 0], sizes = [32, 80], strides = [1, 1]} : vector<256x80xf32> to vector<32x80xf32>
    %245 = arith.addf %243, %244 : vector<32x80xf32>
    %246 = vector.extract_strided_slice %242 {offsets = [64, 0], sizes = [32, 80], strides = [1, 1]} : vector<256x80xf32> to vector<32x80xf32>
    %247 = arith.addf %245, %246 : vector<32x80xf32>
    %248 = vector.extract_strided_slice %242 {offsets = [96, 0], sizes = [32, 80], strides = [1, 1]} : vector<256x80xf32> to vector<32x80xf32>
    %249 = arith.addf %247, %248 : vector<32x80xf32>
    %250 = vector.extract_strided_slice %242 {offsets = [128, 0], sizes = [32, 80], strides = [1, 1]} : vector<256x80xf32> to vector<32x80xf32>
    %251 = arith.addf %249, %250 : vector<32x80xf32>
    %252 = vector.extract_strided_slice %242 {offsets = [160, 0], sizes = [32, 80], strides = [1, 1]} : vector<256x80xf32> to vector<32x80xf32>
    %253 = arith.addf %251, %252 : vector<32x80xf32>
    %254 = vector.extract_strided_slice %242 {offsets = [192, 0], sizes = [32, 80], strides = [1, 1]} : vector<256x80xf32> to vector<32x80xf32>
    %255 = arith.addf %253, %254 : vector<32x80xf32>
    %256 = vector.extract_strided_slice %242 {offsets = [224, 0], sizes = [32, 80], strides = [1, 1]} : vector<256x80xf32> to vector<32x80xf32>
    %257 = arith.addf %255, %256 : vector<32x80xf32>
    %258 = tpu.iota {dimensions = array<i32: 0>} : vector<80x10xi32>
    %c3_i32 = arith.constant 3 : i32
    %259 = vector.broadcast %c3_i32 : i32 to vector<80x10xi32>
    %260 = arith.shrsi %258, %259 : vector<80x10xi32>
    %261 = tpu.iota {dimensions = array<i32: 1>} : vector<80x10xi32>
    %262 = arith.cmpi eq, %260, %261 : vector<80x10xi32>
    %263 = arith.extui %262 : vector<80x10xi1> to vector<80x10xi32>
    %264 = arith.sitofp %263 : vector<80x10xi32> to vector<80x10xf32>
    %cst_70 = arith.constant dense<0.000000e+00> : vector<32x10xf32>
    %265 = tpu.matmul %257, %264, %cst_70 {dimension_numbers = #tpu.dot_dimension_numbers<[1], [0], [0], [1], [0, 0, 1, 1], [], []>} : vector<32x80xf32>, vector<80x10xf32>, vector<32x10xf32> -> vector<32x10xf32>
    %266 = vector.extract_strided_slice %231 {offsets = [0, 0], sizes = [32, 1], strides = [1, 1]} : vector<32x16xf32> to vector<32x1xf32>
    %267 = vector.broadcast %266 : vector<32x1xf32> to vector<32x10xf32>
    %268 = arith.addf %265, %267 : vector<32x10xf32>
    %c192 = arith.constant 192 : index
    %c0_71 = arith.constant 0 : index
    %269 = vector.load %arg1[%c192, %c0_71] : memref<832x40xf32, #tpu.memory_space<vmem>>, vector<32x32xf32>
    %c224 = arith.constant 224 : index
    %c0_72 = arith.constant 0 : index
    %270 = vector.load %arg1[%c224, %c0_72] : memref<832x40xf32, #tpu.memory_space<vmem>>, vector<64x16xf32>
    %c704 = arith.constant 704 : index
    %c0_73 = arith.constant 0 : index
    %271 = vector.load %arg1[%c704, %c0_73] : memref<832x40xf32, #tpu.memory_space<vmem>>, vector<32x40xf32>
    %c736 = arith.constant 736 : index
    %c0_74 = arith.constant 0 : index
    %272 = vector.load %arg1[%c736, %c0_74] : memref<832x40xf32, #tpu.memory_space<vmem>>, vector<96x10xf32>
    %273 = vector.extract_strided_slice %231 {offsets = [0, 1], sizes = [32, 1], strides = [1, 1]} : vector<32x16xf32> to vector<32x1xf32>
    %274 = vector.extract_strided_slice %231 {offsets = [0, 2], sizes = [32, 1], strides = [1, 1]} : vector<32x16xf32> to vector<32x1xf32>
    %cst_75 = arith.constant dense<0.000000e+00> : vector<10xf32>
    %275 = vector.multi_reduction <add>, %268, %cst_75 [0] : vector<32x10xf32> to vector<10xf32>
    %276 = vector.shape_cast %275 : vector<10xf32> to vector<1x10xf32>
    %cst_76 = arith.constant 3.200000e+01 : f32
    %277 = vector.broadcast %cst_76 : f32 to vector<1x10xf32>
    %278 = arith.divf %276, %277 : vector<1x10xf32>
    %279 = vector.broadcast %278 : vector<1x10xf32> to vector<32x10xf32>
    %280 = arith.subf %268, %279 : vector<32x10xf32>
    %281 = arith.mulf %280, %280 : vector<32x10xf32>
    %cst_77 = arith.constant dense<0.000000e+00> : vector<10xf32>
    %282 = vector.multi_reduction <add>, %281, %cst_77 [0] : vector<32x10xf32> to vector<10xf32>
    %283 = vector.shape_cast %282 : vector<10xf32> to vector<1x10xf32>
    %cst_78 = arith.constant 3.200000e+01 : f32
    %284 = vector.broadcast %cst_78 : f32 to vector<1x10xf32>
    %285 = arith.divf %283, %284 : vector<1x10xf32>
    %cst_79 = arith.constant 9.99999974E-6 : f32
    %286 = vector.broadcast %cst_79 : f32 to vector<1x10xf32>
    %287 = arith.addf %285, %286 : vector<1x10xf32>
    %288 = math.rsqrt %287 : vector<1x10xf32>
    %289 = vector.broadcast %288 : vector<1x10xf32> to vector<32x10xf32>
    %290 = arith.mulf %280, %289 : vector<32x10xf32>
    %291 = vector.broadcast %273 : vector<32x1xf32> to vector<32x10xf32>
    %292 = arith.mulf %290, %291 : vector<32x10xf32>
    %293 = vector.broadcast %274 : vector<32x1xf32> to vector<32x10xf32>
    %294 = arith.addf %292, %293 : vector<32x10xf32>
    %295 = vector.extract_strided_slice %271 {offsets = [0, 0], sizes = [10, 40], strides = [1, 1]} : vector<32x40xf32> to vector<10x40xf32>
    %cst_80 = arith.constant dense<0.000000e+00> : vector<32x40xf32>
    %296 = tpu.matmul %294, %295, %cst_80 {dimension_numbers = #tpu.dot_dimension_numbers<[1], [0], [0], [1], [0, 0, 1, 1], [], []>} : vector<32x10xf32>, vector<10x40xf32>, vector<32x40xf32> -> vector<32x40xf32>
    %297 = vector.extract_strided_slice %271 {offsets = [10, 0], sizes = [1, 40], strides = [1, 1]} : vector<32x40xf32> to vector<1x40xf32>
    %298 = vector.broadcast %297 : vector<1x40xf32> to vector<32x40xf32>
    %299 = arith.addf %296, %298 : vector<32x40xf32>
    %cst_81 = arith.constant 5.000000e-01 : f32
    %300 = vector.broadcast %cst_81 : f32 to vector<32x40xf32>
    %301 = arith.mulf %300, %299 : vector<32x40xf32>
    %cst_82 = arith.constant 4.471500e-02 : f32
    %302 = vector.broadcast %cst_82 : f32 to vector<32x40xf32>
    %303 = arith.mulf %302, %299 : vector<32x40xf32>
    %304 = arith.mulf %303, %299 : vector<32x40xf32>
    %305 = arith.mulf %304, %299 : vector<32x40xf32>
    %306 = arith.addf %299, %305 : vector<32x40xf32>
    %cst_83 = arith.constant 0.797884583 : f32
    %307 = vector.broadcast %cst_83 : f32 to vector<32x40xf32>
    %308 = arith.mulf %307, %306 : vector<32x40xf32>
    %309 = math.tanh %308 : vector<32x40xf32>
    %cst_84 = arith.constant 1.000000e+00 : f32
    %310 = vector.broadcast %cst_84 : f32 to vector<32x40xf32>
    %311 = arith.addf %310, %309 : vector<32x40xf32>
    %312 = arith.mulf %301, %311 : vector<32x40xf32>
    %313 = vector.extract_strided_slice %272 {offsets = [0, 0], sizes = [40, 10], strides = [1, 1]} : vector<96x10xf32> to vector<40x10xf32>
    %cst_85 = arith.constant dense<0.000000e+00> : vector<32x10xf32>
    %314 = tpu.matmul %312, %313, %cst_85 {dimension_numbers = #tpu.dot_dimension_numbers<[1], [0], [0], [1], [0, 0, 1, 1], [], []>} : vector<32x40xf32>, vector<40x10xf32>, vector<32x10xf32> -> vector<32x10xf32>
    %315 = arith.addf %268, %314 : vector<32x10xf32>
    %316 = vector.extract_strided_slice %272 {offsets = [40, 0], sizes = [1, 10], strides = [1, 1]} : vector<96x10xf32> to vector<1x10xf32>
    %317 = vector.broadcast %316 : vector<1x10xf32> to vector<32x10xf32>
    %318 = arith.addf %315, %317 : vector<32x10xf32>
    %319 = vector.extract_strided_slice %231 {offsets = [0, 3], sizes = [32, 1], strides = [1, 1]} : vector<32x16xf32> to vector<32x1xf32>
    %320 = vector.extract_strided_slice %231 {offsets = [0, 4], sizes = [32, 1], strides = [1, 1]} : vector<32x16xf32> to vector<32x1xf32>
    %cst_86 = arith.constant dense<0.000000e+00> : vector<10xf32>
    %321 = vector.multi_reduction <add>, %318, %cst_86 [0] : vector<32x10xf32> to vector<10xf32>
    %322 = vector.shape_cast %321 : vector<10xf32> to vector<1x10xf32>
    %cst_87 = arith.constant 3.200000e+01 : f32
    %323 = vector.broadcast %cst_87 : f32 to vector<1x10xf32>
    %324 = arith.divf %322, %323 : vector<1x10xf32>
    %325 = vector.broadcast %324 : vector<1x10xf32> to vector<32x10xf32>
    %326 = arith.subf %318, %325 : vector<32x10xf32>
    %327 = arith.mulf %326, %326 : vector<32x10xf32>
    %cst_88 = arith.constant dense<0.000000e+00> : vector<10xf32>
    %328 = vector.multi_reduction <add>, %327, %cst_88 [0] : vector<32x10xf32> to vector<10xf32>
    %329 = vector.shape_cast %328 : vector<10xf32> to vector<1x10xf32>
    %cst_89 = arith.constant 3.200000e+01 : f32
    %330 = vector.broadcast %cst_89 : f32 to vector<1x10xf32>
    %331 = arith.divf %329, %330 : vector<1x10xf32>
    %cst_90 = arith.constant 9.99999974E-6 : f32
    %332 = vector.broadcast %cst_90 : f32 to vector<1x10xf32>
    %333 = arith.addf %331, %332 : vector<1x10xf32>
    %334 = math.rsqrt %333 : vector<1x10xf32>
    %335 = vector.broadcast %334 : vector<1x10xf32> to vector<32x10xf32>
    %336 = arith.mulf %326, %335 : vector<32x10xf32>
    %337 = vector.broadcast %319 : vector<32x1xf32> to vector<32x10xf32>
    %338 = arith.mulf %336, %337 : vector<32x10xf32>
    %339 = vector.broadcast %320 : vector<32x1xf32> to vector<32x10xf32>
    %340 = arith.addf %338, %339 : vector<32x10xf32>
    %341 = vector.extract_strided_slice %269 {offsets = [0, 0], sizes = [16, 32], strides = [1, 1]} : vector<32x32xf32> to vector<16x32xf32>
    %cst_91 = arith.constant dense<0.000000e+00> : vector<16x10xf32>
    %342 = tpu.matmul %341, %340, %cst_91 {dimension_numbers = #tpu.dot_dimension_numbers<[1], [0], [0], [1], [0, 0, 1, 1], [], []>} : vector<16x32xf32>, vector<32x10xf32>, vector<16x10xf32> -> vector<16x10xf32>
    %343 = vector.extract_strided_slice %231 {offsets = [0, 13], sizes = [16, 1], strides = [1, 1]} : vector<32x16xf32> to vector<16x1xf32>
    %344 = vector.broadcast %343 : vector<16x1xf32> to vector<16x10xf32>
    %345 = arith.addf %342, %344 : vector<16x10xf32>
    %cst_92 = arith.constant 5.000000e-01 : f32
    %346 = vector.broadcast %cst_92 : f32 to vector<16x10xf32>
    %347 = arith.mulf %346, %345 : vector<16x10xf32>
    %cst_93 = arith.constant 4.471500e-02 : f32
    %348 = vector.broadcast %cst_93 : f32 to vector<16x10xf32>
    %349 = arith.mulf %348, %345 : vector<16x10xf32>
    %350 = arith.mulf %349, %345 : vector<16x10xf32>
    %351 = arith.mulf %350, %345 : vector<16x10xf32>
    %352 = arith.addf %345, %351 : vector<16x10xf32>
    %cst_94 = arith.constant 0.797884583 : f32
    %353 = vector.broadcast %cst_94 : f32 to vector<16x10xf32>
    %354 = arith.mulf %353, %352 : vector<16x10xf32>
    %355 = math.tanh %354 : vector<16x10xf32>
    %cst_95 = arith.constant 1.000000e+00 : f32
    %356 = vector.broadcast %cst_95 : f32 to vector<16x10xf32>
    %357 = arith.addf %356, %355 : vector<16x10xf32>
    %358 = arith.mulf %347, %357 : vector<16x10xf32>
    %359 = vector.extract_strided_slice %270 {offsets = [0, 0], sizes = [32, 16], strides = [1, 1]} : vector<64x16xf32> to vector<32x16xf32>
    %cst_96 = arith.constant dense<0.000000e+00> : vector<32x10xf32>
    %360 = tpu.matmul %359, %358, %cst_96 {dimension_numbers = #tpu.dot_dimension_numbers<[1], [0], [0], [1], [0, 0, 1, 1], [], []>} : vector<32x16xf32>, vector<16x10xf32>, vector<32x10xf32> -> vector<32x10xf32>
    %361 = arith.addf %318, %360 : vector<32x10xf32>
    %362 = vector.extract_strided_slice %231 {offsets = [0, 11], sizes = [32, 1], strides = [1, 1]} : vector<32x16xf32> to vector<32x1xf32>
    %363 = vector.broadcast %362 : vector<32x1xf32> to vector<32x10xf32>
    %364 = arith.addf %361, %363 : vector<32x10xf32>
    %365 = vector.extract_strided_slice %231 {offsets = [0, 5], sizes = [32, 1], strides = [1, 1]} : vector<32x16xf32> to vector<32x1xf32>
    %366 = vector.extract_strided_slice %231 {offsets = [0, 6], sizes = [32, 1], strides = [1, 1]} : vector<32x16xf32> to vector<32x1xf32>
    %cst_97 = arith.constant dense<0.000000e+00> : vector<10xf32>
    %367 = vector.multi_reduction <add>, %364, %cst_97 [0] : vector<32x10xf32> to vector<10xf32>
    %368 = vector.shape_cast %367 : vector<10xf32> to vector<1x10xf32>
    %cst_98 = arith.constant 3.200000e+01 : f32
    %369 = vector.broadcast %cst_98 : f32 to vector<1x10xf32>
    %370 = arith.divf %368, %369 : vector<1x10xf32>
    %371 = vector.broadcast %370 : vector<1x10xf32> to vector<32x10xf32>
    %372 = arith.subf %364, %371 : vector<32x10xf32>
    %373 = arith.mulf %372, %372 : vector<32x10xf32>
    %cst_99 = arith.constant dense<0.000000e+00> : vector<10xf32>
    %374 = vector.multi_reduction <add>, %373, %cst_99 [0] : vector<32x10xf32> to vector<10xf32>
    %375 = vector.shape_cast %374 : vector<10xf32> to vector<1x10xf32>
    %cst_100 = arith.constant 3.200000e+01 : f32
    %376 = vector.broadcast %cst_100 : f32 to vector<1x10xf32>
    %377 = arith.divf %375, %376 : vector<1x10xf32>
    %cst_101 = arith.constant 9.99999974E-6 : f32
    %378 = vector.broadcast %cst_101 : f32 to vector<1x10xf32>
    %379 = arith.addf %377, %378 : vector<1x10xf32>
    %380 = math.rsqrt %379 : vector<1x10xf32>
    %381 = vector.broadcast %380 : vector<1x10xf32> to vector<32x10xf32>
    %382 = arith.mulf %372, %381 : vector<32x10xf32>
    %383 = vector.broadcast %365 : vector<32x1xf32> to vector<32x10xf32>
    %384 = arith.mulf %382, %383 : vector<32x10xf32>
    %385 = vector.broadcast %366 : vector<32x1xf32> to vector<32x10xf32>
    %386 = arith.addf %384, %385 : vector<32x10xf32>
    %387 = vector.extract_strided_slice %271 {offsets = [16, 0], sizes = [10, 40], strides = [1, 1]} : vector<32x40xf32> to vector<10x40xf32>
    %cst_102 = arith.constant dense<0.000000e+00> : vector<32x40xf32>
    %388 = tpu.matmul %386, %387, %cst_102 {dimension_numbers = #tpu.dot_dimension_numbers<[1], [0], [0], [1], [0, 0, 1, 1], [], []>} : vector<32x10xf32>, vector<10x40xf32>, vector<32x40xf32> -> vector<32x40xf32>
    %389 = vector.extract_strided_slice %271 {offsets = [26, 0], sizes = [1, 40], strides = [1, 1]} : vector<32x40xf32> to vector<1x40xf32>
    %390 = vector.broadcast %389 : vector<1x40xf32> to vector<32x40xf32>
    %391 = arith.addf %388, %390 : vector<32x40xf32>
    %cst_103 = arith.constant 5.000000e-01 : f32
    %392 = vector.broadcast %cst_103 : f32 to vector<32x40xf32>
    %393 = arith.mulf %392, %391 : vector<32x40xf32>
    %cst_104 = arith.constant 4.471500e-02 : f32
    %394 = vector.broadcast %cst_104 : f32 to vector<32x40xf32>
    %395 = arith.mulf %394, %391 : vector<32x40xf32>
    %396 = arith.mulf %395, %391 : vector<32x40xf32>
    %397 = arith.mulf %396, %391 : vector<32x40xf32>
    %398 = arith.addf %391, %397 : vector<32x40xf32>
    %cst_105 = arith.constant 0.797884583 : f32
    %399 = vector.broadcast %cst_105 : f32 to vector<32x40xf32>
    %400 = arith.mulf %399, %398 : vector<32x40xf32>
    %401 = math.tanh %400 : vector<32x40xf32>
    %cst_106 = arith.constant 1.000000e+00 : f32
    %402 = vector.broadcast %cst_106 : f32 to vector<32x40xf32>
    %403 = arith.addf %402, %401 : vector<32x40xf32>
    %404 = arith.mulf %393, %403 : vector<32x40xf32>
    %405 = vector.extract_strided_slice %272 {offsets = [48, 0], sizes = [40, 10], strides = [1, 1]} : vector<96x10xf32> to vector<40x10xf32>
    %cst_107 = arith.constant dense<0.000000e+00> : vector<32x10xf32>
    %406 = tpu.matmul %404, %405, %cst_107 {dimension_numbers = #tpu.dot_dimension_numbers<[1], [0], [0], [1], [0, 0, 1, 1], [], []>} : vector<32x40xf32>, vector<40x10xf32>, vector<32x10xf32> -> vector<32x10xf32>
    %407 = arith.addf %364, %406 : vector<32x10xf32>
    %408 = vector.extract_strided_slice %272 {offsets = [88, 0], sizes = [1, 10], strides = [1, 1]} : vector<96x10xf32> to vector<1x10xf32>
    %409 = vector.broadcast %408 : vector<1x10xf32> to vector<32x10xf32>
    %410 = arith.addf %407, %409 : vector<32x10xf32>
    %411 = vector.extract_strided_slice %231 {offsets = [0, 7], sizes = [32, 1], strides = [1, 1]} : vector<32x16xf32> to vector<32x1xf32>
    %412 = vector.extract_strided_slice %231 {offsets = [0, 8], sizes = [32, 1], strides = [1, 1]} : vector<32x16xf32> to vector<32x1xf32>
    %cst_108 = arith.constant dense<0.000000e+00> : vector<10xf32>
    %413 = vector.multi_reduction <add>, %410, %cst_108 [0] : vector<32x10xf32> to vector<10xf32>
    %414 = vector.shape_cast %413 : vector<10xf32> to vector<1x10xf32>
    %cst_109 = arith.constant 3.200000e+01 : f32
    %415 = vector.broadcast %cst_109 : f32 to vector<1x10xf32>
    %416 = arith.divf %414, %415 : vector<1x10xf32>
    %417 = vector.broadcast %416 : vector<1x10xf32> to vector<32x10xf32>
    %418 = arith.subf %410, %417 : vector<32x10xf32>
    %419 = arith.mulf %418, %418 : vector<32x10xf32>
    %cst_110 = arith.constant dense<0.000000e+00> : vector<10xf32>
    %420 = vector.multi_reduction <add>, %419, %cst_110 [0] : vector<32x10xf32> to vector<10xf32>
    %421 = vector.shape_cast %420 : vector<10xf32> to vector<1x10xf32>
    %cst_111 = arith.constant 3.200000e+01 : f32
    %422 = vector.broadcast %cst_111 : f32 to vector<1x10xf32>
    %423 = arith.divf %421, %422 : vector<1x10xf32>
    %cst_112 = arith.constant 9.99999974E-6 : f32
    %424 = vector.broadcast %cst_112 : f32 to vector<1x10xf32>
    %425 = arith.addf %423, %424 : vector<1x10xf32>
    %426 = math.rsqrt %425 : vector<1x10xf32>
    %427 = vector.broadcast %426 : vector<1x10xf32> to vector<32x10xf32>
    %428 = arith.mulf %418, %427 : vector<32x10xf32>
    %429 = vector.broadcast %411 : vector<32x1xf32> to vector<32x10xf32>
    %430 = arith.mulf %428, %429 : vector<32x10xf32>
    %431 = vector.broadcast %412 : vector<32x1xf32> to vector<32x10xf32>
    %432 = arith.addf %430, %431 : vector<32x10xf32>
    %433 = vector.extract_strided_slice %269 {offsets = [16, 0], sizes = [16, 32], strides = [1, 1]} : vector<32x32xf32> to vector<16x32xf32>
    %cst_113 = arith.constant dense<0.000000e+00> : vector<16x10xf32>
    %434 = tpu.matmul %433, %432, %cst_113 {dimension_numbers = #tpu.dot_dimension_numbers<[1], [0], [0], [1], [0, 0, 1, 1], [], []>} : vector<16x32xf32>, vector<32x10xf32>, vector<16x10xf32> -> vector<16x10xf32>
    %435 = vector.extract_strided_slice %231 {offsets = [0, 14], sizes = [16, 1], strides = [1, 1]} : vector<32x16xf32> to vector<16x1xf32>
    %436 = vector.broadcast %435 : vector<16x1xf32> to vector<16x10xf32>
    %437 = arith.addf %434, %436 : vector<16x10xf32>
    %cst_114 = arith.constant 5.000000e-01 : f32
    %438 = vector.broadcast %cst_114 : f32 to vector<16x10xf32>
    %439 = arith.mulf %438, %437 : vector<16x10xf32>
    %cst_115 = arith.constant 4.471500e-02 : f32
    %440 = vector.broadcast %cst_115 : f32 to vector<16x10xf32>
    %441 = arith.mulf %440, %437 : vector<16x10xf32>
    %442 = arith.mulf %441, %437 : vector<16x10xf32>
    %443 = arith.mulf %442, %437 : vector<16x10xf32>
    %444 = arith.addf %437, %443 : vector<16x10xf32>
    %cst_116 = arith.constant 0.797884583 : f32
    %445 = vector.broadcast %cst_116 : f32 to vector<16x10xf32>
    %446 = arith.mulf %445, %444 : vector<16x10xf32>
    %447 = math.tanh %446 : vector<16x10xf32>
    %cst_117 = arith.constant 1.000000e+00 : f32
    %448 = vector.broadcast %cst_117 : f32 to vector<16x10xf32>
    %449 = arith.addf %448, %447 : vector<16x10xf32>
    %450 = arith.mulf %439, %449 : vector<16x10xf32>
    %451 = vector.extract_strided_slice %270 {offsets = [32, 0], sizes = [32, 16], strides = [1, 1]} : vector<64x16xf32> to vector<32x16xf32>
    %cst_118 = arith.constant dense<0.000000e+00> : vector<32x10xf32>
    %452 = tpu.matmul %451, %450, %cst_118 {dimension_numbers = #tpu.dot_dimension_numbers<[1], [0], [0], [1], [0, 0, 1, 1], [], []>} : vector<32x16xf32>, vector<16x10xf32>, vector<32x10xf32> -> vector<32x10xf32>
    %453 = arith.addf %410, %452 : vector<32x10xf32>
    %454 = vector.extract_strided_slice %231 {offsets = [0, 12], sizes = [32, 1], strides = [1, 1]} : vector<32x16xf32> to vector<32x1xf32>
    %455 = vector.broadcast %454 : vector<32x1xf32> to vector<32x10xf32>
    %456 = arith.addf %453, %455 : vector<32x10xf32>
    %457 = vector.extract_strided_slice %231 {offsets = [0, 9], sizes = [32, 1], strides = [1, 1]} : vector<32x16xf32> to vector<32x1xf32>
    %458 = vector.extract_strided_slice %231 {offsets = [0, 10], sizes = [32, 1], strides = [1, 1]} : vector<32x16xf32> to vector<32x1xf32>
    %cst_119 = arith.constant dense<0.000000e+00> : vector<10xf32>
    %459 = vector.multi_reduction <add>, %456, %cst_119 [0] : vector<32x10xf32> to vector<10xf32>
    %460 = vector.shape_cast %459 : vector<10xf32> to vector<1x10xf32>
    %cst_120 = arith.constant 3.200000e+01 : f32
    %461 = vector.broadcast %cst_120 : f32 to vector<1x10xf32>
    %462 = arith.divf %460, %461 : vector<1x10xf32>
    %463 = vector.broadcast %462 : vector<1x10xf32> to vector<32x10xf32>
    %464 = arith.subf %456, %463 : vector<32x10xf32>
    %465 = arith.mulf %464, %464 : vector<32x10xf32>
    %cst_121 = arith.constant dense<0.000000e+00> : vector<10xf32>
    %466 = vector.multi_reduction <add>, %465, %cst_121 [0] : vector<32x10xf32> to vector<10xf32>
    %467 = vector.shape_cast %466 : vector<10xf32> to vector<1x10xf32>
    %cst_122 = arith.constant 3.200000e+01 : f32
    %468 = vector.broadcast %cst_122 : f32 to vector<1x10xf32>
    %469 = arith.divf %467, %468 : vector<1x10xf32>
    %cst_123 = arith.constant 9.99999974E-6 : f32
    %470 = vector.broadcast %cst_123 : f32 to vector<1x10xf32>
    %471 = arith.addf %469, %470 : vector<1x10xf32>
    %472 = math.rsqrt %471 : vector<1x10xf32>
    %473 = vector.broadcast %472 : vector<1x10xf32> to vector<32x10xf32>
    %474 = arith.mulf %464, %473 : vector<32x10xf32>
    %475 = vector.broadcast %457 : vector<32x1xf32> to vector<32x10xf32>
    %476 = arith.mulf %474, %475 : vector<32x10xf32>
    %477 = vector.broadcast %458 : vector<32x1xf32> to vector<32x10xf32>
    %478 = arith.addf %476, %477 : vector<32x10xf32>
    %c544 = arith.constant 544 : index
    %c0_124 = arith.constant 0 : index
    %479 = vector.load %arg1[%c544, %c0_124] : memref<832x40xf32, #tpu.memory_space<vmem>>, vector<160x32xf32>
    %cst_125 = arith.constant dense<0.000000e+00> : vector<160x10xf32>
    %480 = tpu.matmul %479, %478, %cst_125 {dimension_numbers = #tpu.dot_dimension_numbers<[1], [0], [0], [1], [0, 0, 1, 1], [], []>} : vector<160x32xf32>, vector<32x10xf32>, vector<160x10xf32> -> vector<160x10xf32>
    %481 = tpu.iota {dimensions = array<i32: 0>} : vector<160x10xi32>
    %482 = tpu.iota {dimensions = array<i32: 1>} : vector<160x10xi32>
    %c5_i32_126 = arith.constant 5 : i32
    %483 = vector.broadcast %c5_i32_126 : i32 to vector<160x10xi32>
    %484 = arith.cmpi sge, %482, %483 : vector<160x10xi32>
    %c5_i32_127 = arith.constant 5 : i32
    %485 = vector.broadcast %c5_i32_127 : i32 to vector<160x10xi32>
    %486 = arith.subi %482, %485 : vector<160x10xi32>
    %487 = arith.select %484, %486, %482 : vector<160x10xi1>, vector<160x10xi32>
    %c5_i32_128 = arith.constant 5 : i32
    %488 = vector.broadcast %c5_i32_128 : i32 to vector<160x10xi32>
    %489 = arith.shrsi %481, %488 : vector<160x10xi32>
    %490 = arith.cmpi eq, %489, %487 : vector<160x10xi32>
    %cst_129 = arith.constant 0.000000e+00 : f32
    %491 = vector.broadcast %cst_129 : f32 to vector<160x10xf32>
    %492 = arith.select %490, %480, %491 : vector<160x10xi1>, vector<160x10xf32>
    %493 = vector.extract_strided_slice %492 {offsets = [0, 0], sizes = [32, 10], strides = [1, 1]} : vector<160x10xf32> to vector<32x10xf32>
    %494 = vector.extract_strided_slice %492 {offsets = [32, 0], sizes = [32, 10], strides = [1, 1]} : vector<160x10xf32> to vector<32x10xf32>
    %495 = arith.addf %493, %494 : vector<32x10xf32>
    %496 = vector.extract_strided_slice %492 {offsets = [64, 0], sizes = [32, 10], strides = [1, 1]} : vector<160x10xf32> to vector<32x10xf32>
    %497 = arith.addf %495, %496 : vector<32x10xf32>
    %498 = vector.extract_strided_slice %492 {offsets = [96, 0], sizes = [32, 10], strides = [1, 1]} : vector<160x10xf32> to vector<32x10xf32>
    %499 = arith.addf %497, %498 : vector<32x10xf32>
    %500 = vector.extract_strided_slice %492 {offsets = [128, 0], sizes = [32, 10], strides = [1, 1]} : vector<160x10xf32> to vector<32x10xf32>
    %501 = arith.addf %499, %500 : vector<32x10xf32>
    %502 = tpu.iota {dimensions = array<i32: 0>} : vector<10x2xi32>
    %503 = tpu.iota {dimensions = array<i32: 1>} : vector<10x2xi32>
    %c5_i32_130 = arith.constant 5 : i32
    %504 = vector.broadcast %c5_i32_130 : i32 to vector<10x2xi32>
    %505 = arith.cmpi sge, %502, %504 : vector<10x2xi32>
    %506 = arith.extui %505 : vector<10x2xi1> to vector<10x2xi32>
    %507 = arith.cmpi eq, %506, %503 : vector<10x2xi32>
    %508 = arith.extui %507 : vector<10x2xi1> to vector<10x2xi32>
    %509 = arith.sitofp %508 : vector<10x2xi32> to vector<10x2xf32>
    %cst_131 = arith.constant dense<0.000000e+00> : vector<32x2xf32>
    %510 = tpu.matmul %501, %509, %cst_131 {dimension_numbers = #tpu.dot_dimension_numbers<[1], [0], [0], [1], [0, 0, 1, 1], [], []>} : vector<32x10xf32>, vector<10x2xf32>, vector<32x2xf32> -> vector<32x2xf32>
    %511 = vector.extract_strided_slice %231 {offsets = [0, 15], sizes = [32, 1], strides = [1, 1]} : vector<32x16xf32> to vector<32x1xf32>
    %512 = vector.broadcast %511 : vector<32x1xf32> to vector<32x2xf32>
    %513 = arith.addf %510, %512 : vector<32x2xf32>
    %514 = tpu.iota {dimensions = array<i32: 0>} : vector<32x2xi32>
    %c16_i32 = arith.constant 16 : i32
    %515 = vector.broadcast %c16_i32 : i32 to vector<32x2xi32>
    %516 = arith.cmpi eq, %514, %515 : vector<32x2xi32>
    %517 = math.absf %513 : vector<32x2xf32>
    %cst_132 = arith.constant 0.000000e+00 : f32
    %518 = vector.broadcast %cst_132 : f32 to vector<32x2xf32>
    %519 = arith.subf %518, %517 : vector<32x2xf32>
    %520 = math.exp %519 : vector<32x2xf32>
    %cst_133 = arith.constant 0.000000e+00 : f32
    %521 = vector.broadcast %cst_133 : f32 to vector<32x2xf32>
    %522 = arith.maximumf %513, %521 : vector<32x2xf32>
    %cst_134 = arith.constant 9.99999974E-5 : f32
    %523 = vector.broadcast %cst_134 : f32 to vector<32x2xf32>
    %524 = arith.cmpf olt, %520, %523 : vector<32x2xf32>
    %cst_135 = arith.constant 1.000000e+00 : f32
    %525 = vector.broadcast %cst_135 : f32 to vector<32x2xf32>
    %526 = arith.addf %525, %520 : vector<32x2xf32>
    %527 = math.log %526 : vector<32x2xf32>
    %528 = arith.select %524, %520, %527 : vector<32x2xi1>, vector<32x2xf32>
    %529 = arith.addf %522, %528 : vector<32x2xf32>
    %530 = arith.select %516, %529, %513 : vector<32x2xi1>, vector<32x2xf32>
    %c0_136 = arith.constant 0 : index
    %c0_137 = arith.constant 0 : index
    %531 = vector.load %arg4[%c0_136, %c0_137] : memref<32x2xf32, #tpu.memory_space<vmem>>, vector<32x2xf32>
    tpu.vector_store %arg4[%c0_136, %c0_137], %530 {strides = array<i32>} : memref<32x2xf32, #tpu.memory_space<vmem>>, vector<32x2xf32>,
    return
  }
}

</mosaic_0001>

<llo_original>
// kernel: value_network_forward.1
$region0: #{value_network_forward.1}
  #allocation0 [shape = 'u32[]', space=smem, size = 0x4, offset = 0x4, fixed_abs, tag = 'smem constant byte address 0x4 - core index']
  #allocation1 [shape = 'u32[144,128]{1,0:T(1,128)}', space=vmem, size = 0x12000, scoped, tag = 'internal scratch']
  %s0 = inlined_call_operand.vmem [shape: f32[8,80], index: 0, kind: input, shape index: {}]
  %s1 = inlined_call_operand.vmem [shape: f32[832,40], index: 1, kind: input, shape index: {}]
  %s2 = inlined_call_operand.vmem [shape: bf16[2,88,320], index: 2, kind: input, shape index: {}]
  %s3 = inlined_call_operand.vmem [shape: bf16[2,328,80], index: 3, kind: input, shape index: {}]
  %s4 = inlined_call_operand.vmem [shape: f32[32,2], index: 4, kind: output, shape index: {}]
  %s5 = sld [smem:[#allocation0]]
  $region26: #{value_network_forward.1} parent=0
    _
  %s7 = ssub.s32 1, %s5
  %s8 = scalar_select 0, %s7, %s5
  // Predicated region
  $region2: #{value_network_forward.1} parent=0 // pred_check
    _
  $region3: #{value_network_forward.1} parent=0 // pred_check_branch
    %10 = sbr.rel (0) target = $region5
  $region4: #{value_network_forward.1} parent=0 // pred_region
    _
  $region5: #{value_network_forward.1} parent=0 // pred_fallthru
    _
  // Predicated region
  $region6: #{value_network_forward.1} parent=0 // pred_check
    _
  $region7: #{value_network_forward.1} parent=0 // pred_check_branch
    %12 = sbr.rel (0) target = $region9
  $region8: #{value_network_forward.1} parent=0 // pred_region
    _
  $region9: #{value_network_forward.1} parent=0 // pred_fallthru
    _
  // Predicated region
  $region10: #{value_network_forward.1} parent=0 // pred_check
    _
  $region11: #{value_network_forward.1} parent=0 // pred_check_branch
    %14 = sbr.rel (0) target = $region13
  $region12: #{value_network_forward.1} parent=0 // pred_region
    _
  $region13: #{value_network_forward.1} parent=0 // pred_fallthru
    _
  // Predicated region
  $region14: #{value_network_forward.1} parent=0 // pred_check
    _
  $region15: #{value_network_forward.1} parent=0 // pred_check_branch
    %16 = sbr.rel (0) target = $region17
  $region16: #{value_network_forward.1} parent=0 // pred_region
    _
  $region17: #{value_network_forward.1} parent=0 // pred_fallthru
    _
  %v18 = vld [vmem:[%s0] sm:$0xff]
  %v19 = vld [vmem:[%s1 + $0x20] sm:$0xff]
  %v20 = vld [vmem:[%s1 + $0x28] sm:$0xff]
  %v21 = vld [vmem:[%s1 + $0x30] sm:$0xff]
  %v22 = vld [vmem:[%s1 + $0x38] sm:$0xff]
  %v23 = vld [vmem:[%s1] sm:$0xff]
  %v24 = vld [vmem:[%s1 + $0x8] sm:$0xff]
  %v25 = vld [vmem:[%s1 + $0x10] sm:$0xff]
  %v26 = vld [vmem:[%s1 + $0x18] sm:$0xff]
  %28 = vset.pattern.permute.xlu0 0
  %29 = vperm.xlu0 %28, %v19
  %v30 = vpop.permute.xlu0 %29
  %33 = vset.pattern.permute.xlu0 0
  %34 = vperm.xlu0 %33, %v20
  %v35 = vpop.permute.xlu0 %34
  %38 = vset.pattern.permute.xlu0 0
  %39 = vperm.xlu0 %38, %v21
  %v40 = vpop.permute.xlu0 %39
  %43 = vset.pattern.permute.xlu0 0
  %44 = vperm.xlu0 %43, %v22
  %v45 = vpop.permute.xlu0 %44
  %vm47 = vcmask 64512
  %v49 = vsel %vm47, %v23, 0
  %v52 = vsel %vm47, %v24, 0
  %v55 = vsel %vm47, %v25, 0
  %v58 = vsel %vm47, %v26, 0
  %60 = vmatprep.subr.mxu0 0.0
  %61 = vmatpush1.msra.mxu0 %v18
  %62 = vmatprep.subr.mxu0 0.0
  %63 = vmatpush1.msra.mxu0 0.0
  %64 = vmatprep.subr.mxu0 0.0
  %65 = vmatpush1.msra.mxu0 0.0
  %66 = vmatprep.subr.mxu0 0.0
  %67 = vmatpush1.msra.mxu0 0.0
  %68 = vmatprep.subr.mxu0 0.0
  %69 = vmatpush1.msra.mxu0 0.0
  %70 = vmatprep.subr.mxu0 0.0
  %71 = vmatpush1.msra.mxu0 0.0
  %72 = vmatprep.subr.mxu0 0.0
  %73 = vmatpush1.msra.mxu0 0.0
  %74 = vmatprep.subr.mxu0 0.0
  %75 = vmatpush1.msra.mxu0 0.0
  %76 = vmatprep.subr.mxu0 0.0
  %77 = vmatpush1.msra.mxu0 0.0
  %78 = vmatprep.subr.mxu0 0.0
  %79 = vmatpush1.msra.mxu0 0.0
  %80 = vmatprep.subr.mxu0 0.0
  %81 = vmatpush1.msra.mxu0 0.0
  %82 = vmatprep.subr.mxu0 0.0
  %83 = vmatpush1.msra.mxu0 0.0
  %84 = vmatprep.subr.mxu0 0.0
  %85 = vmatpush1.msra.mxu0 0.0
  %86 = vmatprep.subr.mxu0 0.0
  %87 = vmatpush1.msra.mxu0 0.0
  %88 = vmatprep.subr.mxu0 0.0
  %89 = vmatpush1.msra.mxu0 0.0
  %90 = vmatprep.subr.mxu0 0.0
  %91 = vmatpush1.msra.mxu0 0.0
  %92 = vmatprep.subr.mxu0 0.0
  %93 = vmatpush1.msra.mxu0 0.0
  %94 = vmatprep.subr.mxu0 0.0
  %95 = vmatpush1.msra.mxu0 0.0
  %96 = vmatprep.subr.mxu0 0.0
  %97 = vmatpush1.msra.mxu0 0.0
  %98 = vmatprep.subr.mxu0 0.0
  %99 = vmatpush1.msra.mxu0 0.0
  %100 = vmatprep.subr.mxu0 0.0
  %101 = vmatpush1.msra.mxu0 0.0
  %102 = vmatprep.subr.mxu0 0.0
  %103 = vmatpush1.msra.mxu0 0.0
  %104 = vmatprep.subr.mxu0 0.0
  %105 = vmatpush1.msra.mxu0 0.0
  %106 = vmatprep.subr.mxu0 0.0
  %107 = vmatpush1.msra.mxu0 0.0
  %108 = vmatprep.subr.mxu0 0.0
  %109 = vmatpush1.msra.mxu0 0.0
  %110 = vmatprep.subr.mxu0 0.0
  %111 = vmatpush1.msra.mxu0 0.0
  %112 = vmatprep.subr.mxu0 0.0
  %113 = vmatpush1.msra.mxu0 0.0
  %114 = vmatprep.subr.mxu0 0.0
  %115 = vmatpush1.msra.mxu0 0.0
  %116 = vmatprep.subr.mxu0 0.0
  %117 = vmatpush1.msra.mxu0 0.0
  %118 = vmatprep.subr.mxu0 0.0
  %119 = vmatpush1.msra.mxu0 0.0
  %120 = vmatprep.subr.mxu0 0.0
  %121 = vmatpush1.msra.mxu0 0.0
  %122 = vmatprep.subr.mxu0 0.0
  %123 = vmatpush1.msra.mxu0 0.0
  %124 = vmatprep.mubr.f32.mxu0 0.0
  %125 = vmatmul.mubr.f32.gmra.mrb[0].mxu0 %v49
  %v126 = vpop.f32.mrb[0].mxu0
  %v127 = vadd.f32 %v30, %v126
  %v128 = vpop.f32.mrb[0].mxu0
  %129 = vmatprep.mubr.f32.mxu0 0.0
  %130 = vmatmul.mubr.f32.gmra.mrb[0].mxu0 %v52
  %v131 = vpop.f32.mrb[0].mxu0
  %v132 = vadd.f32 %v35, %v131
  %v133 = vpop.f32.mrb[0].mxu0
  %134 = vmatprep.mubr.f32.mxu0 0.0
  %135 = vmatmul.mubr.f32.gmra.mrb[0].mxu0 %v55
  %v136 = vpop.f32.mrb[0].mxu0
  %v137 = vadd.f32 %v40, %v136
  %v138 = vpop.f32.mrb[0].mxu0
  %139 = vmatprep.mubr.f32.mxu0 0.0
  %140 = vmatmul.mubr.f32.gmra.mrb[0].mxu0 %v58
  %v141 = vpop.f32.mrb[0].mxu0
  %v142 = vadd.f32 %v45, %v141
  %v143 = vpop.f32.mrb[0].mxu0
  %144 = vdwg.mxu0
  %v145 = vld [vmem:[%s1 + $0x60] sm:$0xff]
  %v146 = vld [vmem:[%s1 + $0x68] sm:$0xff]
  %v147 = vld [vmem:[%s1 + $0x70] sm:$0xff]
  %v148 = vld [vmem:[%s1 + $0x78] sm:$0xff]
  %v149 = vld [vmem:[%s1 + $0x80] sm:$0xff]
  %v150 = vld [vmem:[%s1 + $0x88] sm:$0xff]
  %v151 = vld [vmem:[%s1 + $0x90] sm:$0xff]
  %v152 = vld [vmem:[%s1 + $0x98] sm:$0xff]
  %v153 = vld [vmem:[%s1 + $0xa0] sm:$0xff]
  %v154 = vld [vmem:[%s1 + $0xa8] sm:$0xff]
  %v155 = vld [vmem:[%s1 + $0xb0] sm:$0xff]
  %v156 = vld [vmem:[%s1 + $0xb8] sm:$0xff]
  %vm157 = vcmask 654336
  %v158 = vsel %vm157, %v127, 0.0
  %v159 = vsel %vm157, %v132, 0.0
  %v160 = vadd.f32 %v158, %v159
  %v161 = vsel %vm157, %v137, 0.0
  %v162 = vadd.f32 %v160, %v161
  %v163 = vsel %vm157, %v142, 0.0
  %v164 = vadd.f32 %v162, %v163
  %v165 = vrot.slane %v164, 4
  %v166 = vadd.f32 %v164, %v165
  %v167 = vrot.slane %v166, 2
  %v168 = vadd.f32 %v166, %v167
  %v169 = vrot.slane %v168, 1
  %v170 = vadd.f32 %v168, %v169
  %v171 = vrcp.pop 32.0
  %v172 = vmul.f32 %v170, %v171
  %v173 = vsub.f32 %v127, %v172
  %v174 = vsub.f32 %v132, %v172
  %v175 = vsub.f32 %v137, %v172
  %v176 = vsub.f32 %v142, %v172
  %v177 = vmul.f32 %v173, %v173
  %v178 = vmul.f32 %v174, %v174
  %v179 = vmul.f32 %v175, %v175
  %v180 = vmul.f32 %v176, %v176
  %v181 = vsel %vm157, %v177, 0.0
  %v182 = vsel %vm157, %v178, 0.0
  %v183 = vadd.f32 %v181, %v182
  %v184 = vsel %vm157, %v179, 0.0
  %v185 = vadd.f32 %v183, %v184
  %v186 = vsel %vm157, %v180, 0.0
  %v187 = vadd.f32 %v185, %v186
  %v188 = vrot.slane %v187, 4
  %v189 = vadd.f32 %v187, %v188
  %v190 = vrot.slane %v189, 2
  %v191 = vadd.f32 %v189, %v190
  %v192 = vrot.slane %v191, 1
  %v193 = vadd.f32 %v191, %v192
  %v194 = vmul.f32 %v193, %v171
  %v195 = vadd.f32 %v194, 1e-05
  %v196 = vrsqrt.pop %v195
  %v197 = vmul.f32 %v173, %v196
  %v198 = vmul.f32 %v174, %v196
  %v199 = vmul.f32 %v175, %v196
  %v200 = vmul.f32 %v176, %v196
  %201 = vset.pattern.permute.xlu0 1
  %202 = vperm.xlu0 %201, %v19
  %v203 = vpop.permute.xlu0 %202
  %205 = vset.pattern.permute.xlu0 1
  %206 = vperm.xlu0 %205, %v20
  %v207 = vpop.permute.xlu0 %206
  %209 = vset.pattern.permute.xlu0 1
  %210 = vperm.xlu0 %209, %v21
  %v211 = vpop.permute.xlu0 %210
  %213 = vset.pattern.permute.xlu0 1
  %214 = vperm.xlu0 %213, %v22
  %v215 = vpop.permute.xlu0 %214
  %v217 = vmul.f32 %v197, %v203
  %v218 = vmul.f32 %v198, %v207
  %v219 = vmul.f32 %v199, %v211
  %v220 = vmul.f32 %v200, %v215
  %221 = vset.pattern.permute.xlu0 2
  %222 = vperm.xlu0 %221, %v19
  %v223 = vpop.permute.xlu0 %222
  %225 = vset.pattern.permute.xlu0 2
  %226 = vperm.xlu0 %225, %v20
  %v227 = vpop.permute.xlu0 %226
  %229 = vset.pattern.permute.xlu0 2
  %230 = vperm.xlu0 %229, %v21
  %v231 = vpop.permute.xlu0 %230
  %233 = vset.pattern.permute.xlu0 2
  %234 = vperm.xlu0 %233, %v22
  %v235 = vpop.permute.xlu0 %234
  %v237 = vadd.f32 %v217, %v223
  %v238 = vadd.f32 %v218, %v227
  %v239 = vadd.f32 %v219, %v231
  %v240 = vadd.f32 %v220, %v235
  %v241 = vld [vmem:[%s2] sm:$0xff]
  %v242 = vld [vmem:[%s2 + $0x8] sm:$0xf]
  %v243 = vld [vmem:[%s2 + $0xc] sm:$0xff]
  %v244 = vld [vmem:[%s2 + $0x14] sm:$0xf]
  %v245 = vld [vmem:[%s2 + $0x18] sm:$0xff]
  %v246 = vld [vmem:[%s2 + $0x20] sm:$0xf]
  %v247 = vld [vmem:[%s2 + $0x24] sm:$0xff]
  %v248 = vld [vmem:[%s2 + $0x2c] sm:$0xf]
  %v249 = vld [vmem:[%s2 + $0x30] sm:$0xff]
  %v250 = vld [vmem:[%s2 + $0x38] sm:$0xf]
  %v251 = vld [vmem:[%s2 + $0x3c] sm:$0xff]
  %v252 = vld [vmem:[%s2 + $0x44] sm:$0xf]
  %v253 = vld [vmem:[%s2 + $0x48] sm:$0xff]
  %v254 = vld [vmem:[%s2 + $0x50] sm:$0xf]
  %v255 = vld [vmem:[%s2 + $0x54] sm:$0xff]
  %v256 = vld [vmem:[%s2 + $0x5c] sm:$0xf]
  %v257 = vld [vmem:[%s2 + $0x60] sm:$0xff]
  %v258 = vld [vmem:[%s2 + $0x68] sm:$0xf]
  %v259 = vld [vmem:[%s2 + $0x6c] sm:$0xff]
  %v260 = vld [vmem:[%s2 + $0x74] sm:$0xf]
  %v261 = vld [vmem:[%s2 + $0x78] sm:$0xff]
  %v262 = vld [vmem:[%s2 + $0x80] sm:$0xf]
  %v263 = vpack.c.bf16 %v238, %v237
  %v264 = vpack.c.bf16 %v240, %v239
  %v265 = vunpack.c.l.bf16 %v261
  %v266 = vunpack.c.h.bf16 %v261
  %v267 = vunpack.c.l.bf16 %v262
  %v268 = vlaneseq
  %v269 = vshrl.u32 %v268, 7
  %v270 = vsub.s32 0, %v269
  %v271 = vrot.slane %v265, %v270
  %v272 = vlaneseq
  %v273 = vshrl.u32 %v272, 7
  %v274 = vsub.s32 0, %v273
  %v275 = vrot.slane %v266, %v274
  %v276 = vlaneseq
  %v277 = vshrl.u32 %v276, 7
  %v278 = vsub.s32 0, %v277
  %v279 = vrot.slane %v267, %v278
  %v300 = vunpack.c.l.b16 %v241
  %v301 = vunpack.c.h.b16 %v241
  %v302 = vunpack.c.l.b16 %v242
  %v303 = vunpack.c.l.b16 %v243
  %v304 = vunpack.c.h.b16 %v243
  %v305 = vunpack.c.l.b16 %v244
  %v306 = vunpack.c.l.b16 %v245
  %v307 = vunpack.c.h.b16 %v245
  %v308 = vunpack.c.l.b16 %v246
  %v309 = vunpack.c.l.b16 %v247
  %v310 = vunpack.c.h.b16 %v247
  %v311 = vunpack.c.l.b16 %v248
  %v312 = vunpack.c.l.b16 %v249
  %v313 = vunpack.c.h.b16 %v249
  %v314 = vunpack.c.l.b16 %v250
  %v315 = vunpack.c.l.b16 %v251
  %v316 = vunpack.c.h.b16 %v251
  %v317 = vunpack.c.l.b16 %v252
  %v318 = vunpack.c.l.b16 %v253
  %v319 = vunpack.c.h.b16 %v253
  %v320 = vunpack.c.l.b16 %v254
  %v321 = vunpack.c.l.b16 %v255
  %v322 = vunpack.c.h.b16 %v255
  %v323 = vunpack.c.l.b16 %v256
  %v324 = vunpack.c.l.b16 %v257
  %v325 = vunpack.c.h.b16 %v257
  %v326 = vunpack.c.l.b16 %v258
  %v327 = vunpack.c.l.b16 %v259
  %v328 = vunpack.c.h.b16 %v259
  %v329 = vunpack.c.l.b16 %v260
  %v330 = vpack.c.b16 %v303, %v300
  %v331 = vpack.c.b16 %v304, %v301
  %v332 = vpack.c.b16 %v305, %v302
  %v333 = vpack.c.b16 %v309, %v306
  %v334 = vpack.c.b16 %v310, %v307
  %v335 = vpack.c.b16 %v311, %v308
  %v336 = vpack.c.b16 %v315, %v312
  %v337 = vpack.c.b16 %v316, %v313
  %v338 = vpack.c.b16 %v317, %v314
  %v339 = vpack.c.b16 %v321, %v318
  %v340 = vpack.c.b16 %v322, %v319
  %v341 = vpack.c.b16 %v323, %v320
  %v342 = vpack.c.b16 %v327, %v324
  %v343 = vpack.c.b16 %v328, %v325
  %v344 = vpack.c.b16 %v329, %v326
  %v361 = vsel %vm157, %v263, 0
  %v364 = vsel %vm157, %v264, 0
  %366 = vmatprep.subr.bf16.mxu0 %v331
  %367 = vmatpush1.bf16.msra.mxu0 %v330
  %368 = vmatprep.subr.bf16.mxu0 %v334
  %369 = vmatpush1.bf16.msra.mxu0 %v333
  %370 = vmatprep.subr.bf16.mxu0 %v337
  %371 = vmatpush1.bf16.msra.mxu0 %v336
  %372 = vmatprep.subr.bf16.mxu0 %v340
  %373 = vmatpush1.bf16.msra.mxu0 %v339
  %374 = vmatprep.subr.bf16.mxu0 %v343
  %375 = vmatpush1.bf16.msra.mxu0 %v342
  %376 = vmatprep.subr.bf16.mxu0 0
  %377 = vmatpush1.bf16.msra.mxu0 0
  %378 = vmatprep.subr.bf16.mxu0 0
  %379 = vmatpush1.bf16.msra.mxu0 0
  %380 = vmatprep.subr.bf16.mxu0 0
  %381 = vmatpush1.bf16.msra.mxu0 0
  %382 = vmatprep.subr.bf16.mxu0 0
  %383 = vmatpush1.bf16.msra.mxu0 0
  %384 = vmatprep.subr.bf16.mxu0 0
  %385 = vmatpush1.bf16.msra.mxu0 0
  %386 = vmatprep.subr.bf16.mxu0 0
  %387 = vmatpush1.bf16.msra.mxu0 0
  %388 = vmatprep.subr.bf16.mxu0 0
  %389 = vmatpush1.bf16.msra.mxu0 0
  %390 = vmatprep.subr.bf16.mxu0 0
  %391 = vmatpush1.bf16.msra.mxu0 0
  %392 = vmatprep.subr.bf16.mxu0 0
  %393 = vmatpush1.bf16.msra.mxu0 0
  %394 = vmatprep.subr.bf16.mxu0 0
  %395 = vmatpush1.bf16.msra.mxu0 0
  %396 = vmatprep.subr.bf16.mxu0 0
  %397 = vmatpush1.bf16.msra.mxu0 0
  %398 = vmatprep.mubr.bf16.mxu0 0
  %399 = vmatmul.mubr.bf16.gmra.mrb[0].mxu0 %v361
  %v400 = vpop.f32.mrb[0].mxu0
  %v401 = vadd.f32 %v271, %v400
  %v402 = vpop.f32.mrb[0].mxu0
  %v403 = vadd.f32 %v275, %v402
  %v404 = vpop.f32.mrb[0].mxu0
  %v405 = vadd.f32 %v271, %v404
  %v406 = vpop.f32.mrb[0].mxu0
  %v407 = vadd.f32 %v275, %v406
  %408 = vmatprep.mubr.bf16.mxu0 0
  %409 = vmatmul.mubr.bf16.gmra.mrb[0].mxu0 %v364
  %v410 = vpop.f32.mrb[0].mxu0
  %v411 = vadd.f32 %v271, %v410
  %v412 = vpop.f32.mrb[0].mxu0
  %v413 = vadd.f32 %v275, %v412
  %v414 = vpop.f32.mrb[0].mxu0
  %v415 = vadd.f32 %v271, %v414
  %v416 = vpop.f32.mrb[0].mxu0
  %v417 = vadd.f32 %v275, %v416
  %418 = vdwg.mxu0
  %419 = vmatprep.subr.bf16.mxu0 0
  %420 = vmatpush1.bf16.msra.mxu0 %v332
  %421 = vmatprep.subr.bf16.mxu0 0
  %422 = vmatpush1.bf16.msra.mxu0 %v335
  %423 = vmatprep.subr.bf16.mxu0 0
  %424 = vmatpush1.bf16.msra.mxu0 %v338
  %425 = vmatprep.subr.bf16.mxu0 0
  %426 = vmatpush1.bf16.msra.mxu0 %v341
  %427 = vmatprep.subr.bf16.mxu0 0
  %428 = vmatpush1.bf16.msra.mxu0 %v344
  %429 = vmatprep.subr.bf16.mxu0 0
  %430 = vmatpush1.bf16.msra.mxu0 0
  %431 = vmatprep.subr.bf16.mxu0 0
  %432 = vmatpush1.bf16.msra.mxu0 0
  %433 = vmatprep.subr.bf16.mxu0 0
  %434 = vmatpush1.bf16.msra.mxu0 0
  %435 = vmatprep.subr.bf16.mxu0 0
  %436 = vmatpush1.bf16.msra.mxu0 0
  %437 = vmatprep.subr.bf16.mxu0 0
  %438 = vmatpush1.bf16.msra.mxu0 0
  %439 = vmatprep.subr.bf16.mxu0 0
  %440 = vmatpush1.bf16.msra.mxu0 0
  %441 = vmatprep.subr.bf16.mxu0 0
  %442 = vmatpush1.bf16.msra.mxu0 0
  %443 = vmatprep.subr.bf16.mxu0 0
  %444 = vmatpush1.bf16.msra.mxu0 0
  %445 = vmatprep.subr.bf16.mxu0 0
  %446 = vmatpush1.bf16.msra.mxu0 0
  %447 = vmatprep.subr.bf16.mxu0 0
  %448 = vmatpush1.bf16.msra.mxu0 0
  %449 = vmatprep.subr.bf16.mxu0 0
  %450 = vmatpush1.bf16.msra.mxu0 0
  %451 = vmatprep.mubr.bf16.mxu0 0
  %452 = vmatmul.mubr.bf16.gmra.mrb[0].mxu0 %v361
  %v453 = vpop.f32.mrb[0].mxu0
  %v454 = vadd.f32 %v279, %v453
  %v455 = vpop.f32.mrb[0].mxu0
  %v456 = vpop.f32.mrb[0].mxu0
  %v457 = vadd.f32 %v279, %v456
  %v458 = vpop.f32.mrb[0].mxu0
  %459 = vmatprep.mubr.bf16.mxu0 0
  %460 = vmatmul.mubr.bf16.gmra.mrb[0].mxu0 %v364
  %v461 = vpop.f32.mrb[0].mxu0
  %v462 = vadd.f32 %v279, %v461
  %v463 = vpop.f32.mrb[0].mxu0
  %v464 = vpop.f32.mrb[0].mxu0
  %v465 = vadd.f32 %v279, %v464
  %v466 = vpop.f32.mrb[0].mxu0
  %467 = vdwg.mxu0
  %v468 = vmul.f32 %v401, 0.5
  %v469 = vmul.f32 %v403, 0.5
  %v470 = vmul.f32 %v454, 0.5
  %v471 = vmul.f32 %v405, 0.5
  %v472 = vmul.f32 %v407, 0.5
  %v473 = vmul.f32 %v457, 0.5
  %v474 = vmul.f32 %v411, 0.5
  %v475 = vmul.f32 %v413, 0.5
  %v476 = vmul.f32 %v462, 0.5
  %v477 = vmul.f32 %v415, 0.5
  %v478 = vmul.f32 %v417, 0.5
  %v479 = vmul.f32 %v465, 0.5
  %v480 = vmul.f32 %v401, 0.044715
  %v481 = vmul.f32 %v403, 0.044715
  %v482 = vmul.f32 %v454, 0.044715
  %v483 = vmul.f32 %v405, 0.044715
  %v484 = vmul.f32 %v407, 0.044715
  %v485 = vmul.f32 %v457, 0.044715
  %v486 = vmul.f32 %v411, 0.044715
  %v487 = vmul.f32 %v413, 0.044715
  %v488 = vmul.f32 %v462, 0.044715
  %v489 = vmul.f32 %v415, 0.044715
  %v490 = vmul.f32 %v417, 0.044715
  %v491 = vmul.f32 %v465, 0.044715
  %v492 = vmul.f32 %v480, %v401
  %v493 = vmul.f32 %v481, %v403
  %v494 = vmul.f32 %v482, %v454
  %v495 = vmul.f32 %v483, %v405
  %v496 = vmul.f32 %v484, %v407
  %v497 = vmul.f32 %v485, %v457
  %v498 = vmul.f32 %v486, %v411
  %v499 = vmul.f32 %v487, %v413
  %v500 = vmul.f32 %v488, %v462
  %v501 = vmul.f32 %v489, %v415
  %v502 = vmul.f32 %v490, %v417
  %v503 = vmul.f32 %v491, %v465
  %v504 = vmul.f32 %v492, %v401
  %v505 = vmul.f32 %v493, %v403
  %v506 = vmul.f32 %v494, %v454
  %v507 = vmul.f32 %v495, %v405
  %v508 = vmul.f32 %v496, %v407
  %v509 = vmul.f32 %v497, %v457
  %v510 = vmul.f32 %v498, %v411
  %v511 = vmul.f32 %v499, %v413
  %v512 = vmul.f32 %v500, %v462
  %v513 = vmul.f32 %v501, %v415
  %v514 = vmul.f32 %v502, %v417
  %v515 = vmul.f32 %v503, %v465
  %v516 = vadd.f32 %v401, %v504
  %v517 = vadd.f32 %v403, %v505
  %v518 = vadd.f32 %v454, %v506
  %v519 = vadd.f32 %v405, %v507
  %v520 = vadd.f32 %v407, %v508
  %v521 = vadd.f32 %v457, %v509
  %v522 = vadd.f32 %v411, %v510
  %v523 = vadd.f32 %v413, %v511
  %v524 = vadd.f32 %v462, %v512
  %v525 = vadd.f32 %v415, %v513
  %v526 = vadd.f32 %v417, %v514
  %v527 = vadd.f32 %v465, %v515
  %v528 = vmul.f32 %v516, 0.7978846
  %v529 = vmul.f32 %v517, 0.7978846
  %v530 = vmul.f32 %v518, 0.7978846
  %v531 = vmul.f32 %v519, 0.7978846
  %v532 = vmul.f32 %v520, 0.7978846
  %v533 = vmul.f32 %v521, 0.7978846
  %v534 = vmul.f32 %v522, 0.7978846
  %v535 = vmul.f32 %v523, 0.7978846
  %v536 = vmul.f32 %v524, 0.7978846
  %v537 = vmul.f32 %v525, 0.7978846
  %v538 = vmul.f32 %v526, 0.7978846
  %v539 = vmul.f32 %v527, 0.7978846
  %v540 = vtanh.pop %v528
  %v541 = vtanh.pop %v529
  %v542 = vtanh.pop %v530
  %v543 = vtanh.pop %v531
  %v544 = vtanh.pop %v532
  %v545 = vtanh.pop %v533
  %v546 = vtanh.pop %v534
  %v547 = vtanh.pop %v535
  %v548 = vtanh.pop %v536
  %v549 = vtanh.pop %v537
  %v550 = vtanh.pop %v538
  %v551 = vtanh.pop %v539
  %v552 = vadd.f32 %v540, 1.0
  %v553 = vadd.f32 %v541, 1.0
  %v554 = vadd.f32 %v542, 1.0
  %v555 = vadd.f32 %v543, 1.0
  %v556 = vadd.f32 %v544, 1.0
  %v557 = vadd.f32 %v545, 1.0
  %v558 = vadd.f32 %v546, 1.0
  %v559 = vadd.f32 %v547, 1.0
  %v560 = vadd.f32 %v548, 1.0
  %v561 = vadd.f32 %v549, 1.0
  %v562 = vadd.f32 %v550, 1.0
  %v563 = vadd.f32 %v551, 1.0
  %v564 = vmul.f32 %v468, %v552
  %v565 = vmul.f32 %v469, %v553
  %v566 = vmul.f32 %v470, %v554
  %v567 = vmul.f32 %v471, %v555
  %v568 = vmul.f32 %v472, %v556
  %v569 = vmul.f32 %v473, %v557
  %v570 = vmul.f32 %v474, %v558
  %v571 = vmul.f32 %v475, %v559
  %v572 = vmul.f32 %v476, %v560
  %v573 = vmul.f32 %v477, %v561
  %v574 = vmul.f32 %v478, %v562
  %v575 = vmul.f32 %v479, %v563
  %v576 = vld [vmem:[%s3] sm:$0xf]
  %v577 = vld [vmem:[%s3 + $0x4] sm:$0xf]
  %v578 = vld [vmem:[%s3 + $0x8] sm:$0xf]
  %v579 = vld [vmem:[%s3 + $0xc] sm:$0xf]
  %v580 = vld [vmem:[%s3 + $0x10] sm:$0xf]
  %v581 = vld [vmem:[%s3 + $0x14] sm:$0xf]
  %v582 = vld [vmem:[%s3 + $0x18] sm:$0xf]
  %v583 = vld [vmem:[%s3 + $0x1c] sm:$0xf]
  %v584 = vld [vmem:[%s3 + $0x20] sm:$0xf]
  %v585 = vld [vmem:[%s3 + $0x24] sm:$0xf]
  %v586 = vld [vmem:[%s3 + $0x28] sm:$0xf]
  %v587 = vld [vmem:[%s3 + $0x2c] sm:$0xf]
  %v588 = vld [vmem:[%s3 + $0x30] sm:$0xf]
  %v589 = vld [vmem:[%s3 + $0x34] sm:$0xf]
  %v590 = vld [vmem:[%s3 + $0x38] sm:$0xf]
  %v591 = vld [vmem:[%s3 + $0x3c] sm:$0xf]
  %v592 = vld [vmem:[%s3 + $0x40] sm:$0xf]
  %v593 = vld [vmem:[%s3 + $0x44] sm:$0xf]
  %v594 = vld [vmem:[%s3 + $0x48] sm:$0xf]
  %v595 = vld [vmem:[%s3 + $0x4c] sm:$0xf]
  %v596 = vld [vmem:[%s3 + $0x50] sm:$0xf]
  %v597 = vld [vmem:[%s3 + $0x54] sm:$0xf]
  %v598 = vld [vmem:[%s3 + $0x58] sm:$0xf]
  %v599 = vld [vmem:[%s3 + $0x5c] sm:$0xf]
  %v600 = vld [vmem:[%s3 + $0x60] sm:$0xf]
  %v601 = vld [vmem:[%s3 + $0x64] sm:$0xf]
  %v602 = vld [vmem:[%s3 + $0x68] sm:$0xf]
  %v603 = vld [vmem:[%s3 + $0x6c] sm:$0xf]
  %v604 = vld [vmem:[%s3 + $0x70] sm:$0xf]
  %v605 = vld [vmem:[%s3 + $0x74] sm:$0xf]
  %v606 = vld [vmem:[%s3 + $0x78] sm:$0xf]
  %v607 = vld [vmem:[%s3 + $0x7c] sm:$0xf]
  %v608 = vld [vmem:[%s3 + $0x80] sm:$0xf]
  %v609 = vld [vmem:[%s3 + $0x84] sm:$0xf]
  %v610 = vld [vmem:[%s3 + $0x88] sm:$0xf]
  %v611 = vld [vmem:[%s3 + $0x8c] sm:$0xf]
  %v612 = vld [vmem:[%s3 + $0x90] sm:$0xf]
  %v613 = vld [vmem:[%s3 + $0x94] sm:$0xf]
  %v614 = vld [vmem:[%s3 + $0x98] sm:$0xf]
  %v615 = vld [vmem:[%s3 + $0x9c] sm:$0xf]
  %v616 = vld [vmem:[%s3 + $0xa0] sm:$0xf]
  %v617 = vpack.c.bf16 %v567, %v564
  %v618 = vpack.c.bf16 %v568, %v565
  %v619 = vpack.c.bf16 %v569, %v566
  %v620 = vpack.c.bf16 %v573, %v570
  %v621 = vpack.c.bf16 %v574, %v571
  %v622 = vpack.c.bf16 %v575, %v572
  %v663 = vunpack.c.l.b16 %v576
  %v664 = vunpack.c.l.b16 %v577
  %v665 = vunpack.c.l.b16 %v578
  %v666 = vunpack.c.l.b16 %v579
  %v667 = vunpack.c.l.b16 %v580
  %v668 = vunpack.c.l.b16 %v581
  %v669 = vunpack.c.l.b16 %v582
  %v670 = vunpack.c.l.b16 %v583
  %v671 = vunpack.c.l.b16 %v584
  %v672 = vunpack.c.l.b16 %v585
  %v673 = vunpack.c.l.b16 %v586
  %v674 = vunpack.c.l.b16 %v587
  %v675 = vunpack.c.l.b16 %v588
  %v676 = vunpack.c.l.b16 %v589
  %v677 = vunpack.c.l.b16 %v590
  %v678 = vunpack.c.l.b16 %v591
  %v679 = vunpack.c.l.b16 %v592
  %v680 = vunpack.c.l.b16 %v593
  %v681 = vunpack.c.l.b16 %v594
  %v682 = vunpack.c.l.b16 %v595
  %v683 = vunpack.c.l.b16 %v596
  %v684 = vunpack.c.l.b16 %v597
  %v685 = vunpack.c.l.b16 %v598
  %v686 = vunpack.c.l.b16 %v599
  %v687 = vunpack.c.l.b16 %v600
  %v688 = vunpack.c.l.b16 %v601
  %v689 = vunpack.c.l.b16 %v602
  %v690 = vunpack.c.l.b16 %v603
  %v691 = vunpack.c.l.b16 %v604
  %v692 = vunpack.c.l.b16 %v605
  %v693 = vunpack.c.l.b16 %v606
  %v694 = vunpack.c.l.b16 %v607
  %v695 = vunpack.c.l.b16 %v608
  %v696 = vunpack.c.l.b16 %v609
  %v697 = vunpack.c.l.b16 %v610
  %v698 = vunpack.c.l.b16 %v611
  %v699 = vunpack.c.l.b16 %v612
  %v700 = vunpack.c.l.b16 %v613
  %v701 = vunpack.c.l.b16 %v614
  %v702 = vunpack.c.l.b16 %v615
  %v703 = vpack.c.b16 %v664, %v663
  %v704 = vpack.c.b16 %v666, %v665
  %v705 = vpack.c.b16 %v668, %v667
  %v706 = vpack.c.b16 %v670, %v669
  %v707 = vpack.c.b16 %v672, %v671
  %v708 = vpack.c.b16 %v674, %v673
  %v709 = vpack.c.b16 %v676, %v675
  %v710 = vpack.c.b16 %v678, %v677
  %v711 = vpack.c.b16 %v680, %v679
  %v712 = vpack.c.b16 %v682, %v681
  %v713 = vpack.c.b16 %v684, %v683
  %v714 = vpack.c.b16 %v686, %v685
  %v715 = vpack.c.b16 %v688, %v687
  %v716 = vpack.c.b16 %v690, %v689
  %v717 = vpack.c.b16 %v692, %v691
  %v718 = vpack.c.b16 %v694, %v693
  %v719 = vpack.c.b16 %v696, %v695
  %v720 = vpack.c.b16 %v698, %v697
  %v721 = vpack.c.b16 %v700, %v699
  %v722 = vpack.c.b16 %v702, %v701
  %vm743 = vcmask 523264
  %v745 = vsel %vm743, %v619, 0
  %v748 = vsel %vm743, %v622, 0
  %750 = vmatprep.subr.bf16.mxu0 0
  %751 = vmatpush1.bf16.msra.mxu0 %v703
  %752 = vmatprep.subr.bf16.mxu0 0
  %753 = vmatpush1.bf16.msra.mxu0 %v704
  %754 = vmatprep.subr.bf16.mxu0 0
  %755 = vmatpush1.bf16.msra.mxu0 %v705
  %756 = vmatprep.subr.bf16.mxu0 0
  %757 = vmatpush1.bf16.msra.mxu0 %v706
  %758 = vmatprep.subr.bf16.mxu0 0
  %759 = vmatpush1.bf16.msra.mxu0 %v707
  %760 = vmatprep.subr.bf16.mxu0 0
  %761 = vmatpush1.bf16.msra.mxu0 %v708
  %762 = vmatprep.subr.bf16.mxu0 0
  %763 = vmatpush1.bf16.msra.mxu0 %v709
  %764 = vmatprep.subr.bf16.mxu0 0
  %765 = vmatpush1.bf16.msra.mxu0 %v710
  %766 = vmatprep.subr.bf16.mxu0 0
  %767 = vmatpush1.bf16.msra.mxu0 %v711
  %768 = vmatprep.subr.bf16.mxu0 0
  %769 = vmatpush1.bf16.msra.mxu0 %v712
  %770 = vmatprep.subr.bf16.mxu0 0
  %771 = vmatpush1.bf16.msra.mxu0 %v713
  %772 = vmatprep.subr.bf16.mxu0 0
  %773 = vmatpush1.bf16.msra.mxu0 %v714
  %774 = vmatprep.subr.bf16.mxu0 0
  %775 = vmatpush1.bf16.msra.mxu0 %v715
  %776 = vmatprep.subr.bf16.mxu0 0
  %777 = vmatpush1.bf16.msra.mxu0 %v716
  %778 = vmatprep.subr.bf16.mxu0 0
  %779 = vmatpush1.bf16.msra.mxu0 %v717
  %780 = vmatprep.subr.bf16.mxu0 0
  %781 = vmatpush1.bf16.msra.mxu0 %v718
  %782 = vmatprep.mubr.bf16.mxu0 %v618
  %783 = vmatmul.mubr.bf16.gmra.mrb[0].mxu0 %v617
  %v784 = vpop.f32.mrb[0].mxu0
  %v785 = vadd.f32 0.0, %v784
  %v786 = vpop.f32.mrb[0].mxu0
  %v787 = vpop.f32.mrb[0].mxu0
  %v788 = vadd.f32 0.0, %v787
  %v789 = vpop.f32.mrb[0].mxu0
  %790 = vmatprep.mubr.bf16.mxu0 %v621
  %791 = vmatmul.mubr.bf16.gmra.mrb[0].mxu0 %v620
  %v792 = vpop.f32.mrb[0].mxu0
  %v793 = vadd.f32 0.0, %v792
  %v794 = vpop.f32.mrb[0].mxu0
  %v795 = vpop.f32.mrb[0].mxu0
  %v796 = vadd.f32 0.0, %v795
  %v797 = vpop.f32.mrb[0].mxu0
  %798 = vdwg.mxu0
  %799 = vmatprep.subr.bf16.mxu0 0
  %800 = vmatpush1.bf16.msra.mxu0 %v719
  %801 = vmatprep.subr.bf16.mxu0 0
  %802 = vmatpush1.bf16.msra.mxu0 %v720
  %803 = vmatprep.subr.bf16.mxu0 0
  %804 = vmatpush1.bf16.msra.mxu0 %v721
  %805 = vmatprep.subr.bf16.mxu0 0
  %806 = vmatpush1.bf16.msra.mxu0 %v722
  %807 = vmatprep.subr.bf16.mxu0 0
  %808 = vmatpush1.bf16.msra.mxu0 0
  %809 = vmatprep.subr.bf16.mxu0 0
  %810 = vmatpush1.bf16.msra.mxu0 0
  %811 = vmatprep.subr.bf16.mxu0 0
  %812 = vmatpush1.bf16.msra.mxu0 0
  %813 = vmatprep.subr.bf16.mxu0 0
  %814 = vmatpush1.bf16.msra.mxu0 0
  %815 = vmatprep.subr.bf16.mxu0 0
  %816 = vmatpush1.bf16.msra.mxu0 0
  %817 = vmatprep.subr.bf16.mxu0 0
  %818 = vmatpush1.bf16.msra.mxu0 0
  %819 = vmatprep.subr.bf16.mxu0 0
  %820 = vmatpush1.bf16.msra.mxu0 0
  %821 = vmatprep.subr.bf16.mxu0 0
  %822 = vmatpush1.bf16.msra.mxu0 0
  %823 = vmatprep.subr.bf16.mxu0 0
  %824 = vmatpush1.bf16.msra.mxu0 0
  %825 = vmatprep.subr.bf16.mxu0 0
  %826 = vmatpush1.bf16.msra.mxu0 0
  %827 = vmatprep.subr.bf16.mxu0 0
  %828 = vmatpush1.bf16.msra.mxu0 0
  %829 = vmatprep.subr.bf16.mxu0 0
  %830 = vmatpush1.bf16.msra.mxu0 0
  %831 = vmatprep.mubr.bf16.mxu0 0
  %832 = vmatmul.mubr.bf16.gmra.mrb[0].mxu0 %v745
  %v833 = vpop.f32.mrb[0].mxu0
  %v834 = vadd.f32 %v785, %v833
  %v835 = vpop.f32.mrb[0].mxu0
  %v836 = vpop.f32.mrb[0].mxu0
  %v837 = vadd.f32 %v788, %v836
  %v838 = vpop.f32.mrb[0].mxu0
  %839 = vmatprep.mubr.bf16.mxu0 0
  %840 = vmatmul.mubr.bf16.gmra.mrb[0].mxu0 %v748
  %v841 = vpop.f32.mrb[0].mxu0
  %v842 = vadd.f32 %v793, %v841
  %v843 = vpop.f32.mrb[0].mxu0
  %v844 = vpop.f32.mrb[0].mxu0
  %v845 = vadd.f32 %v796, %v844
  %v846 = vpop.f32.mrb[0].mxu0
  %847 = vdwg.mxu0
  %v848 = vadd.f32 %v127, %v834
  %v849 = vadd.f32 %v132, %v837
  %v850 = vadd.f32 %v137, %v842
  %v851 = vadd.f32 %v142, %v845
  %v852 = vunpack.c.l.bf16 %v616
  %v853 = vlaneseq
  %v854 = vshrl.u32 %v853, 7
  %v855 = vsub.s32 0, %v854
  %v856 = vrot.slane %v852, %v855
  %v857 = vadd.f32 %v848, %v856
  %v858 = vadd.f32 %v849, %v856
  %v859 = vadd.f32 %v850, %v856
  %v860 = vadd.f32 %v851, %v856
  %v861 = vsel %vm157, %v857, 0.0
  %v862 = vsel %vm157, %v858, 0.0
  %v863 = vadd.f32 %v861, %v862
  %v864 = vsel %vm157, %v859, 0.0
  %v865 = vadd.f32 %v863, %v864
  %v866 = vsel %vm157, %v860, 0.0
  %v867 = vadd.f32 %v865, %v866
  %v868 = vrot.slane %v867, 4
  %v869 = vadd.f32 %v867, %v868
  %v870 = vrot.slane %v869, 2
  %v871 = vadd.f32 %v869, %v870
  %v872 = vrot.slane %v871, 1
  %v873 = vadd.f32 %v871, %v872
  %v874 = vmul.f32 %v873, %v171
  %v875 = vsub.f32 %v857, %v874
  %v876 = vsub.f32 %v858, %v874
  %v877 = vsub.f32 %v859, %v874
  %v878 = vsub.f32 %v860, %v874
  %v879 = vmul.f32 %v875, %v875
  %v880 = vmul.f32 %v876, %v876
  %v881 = vmul.f32 %v877, %v877
  %v882 = vmul.f32 %v878, %v878
  %v883 = vsel %vm157, %v879, 0.0
  %v884 = vsel %vm157, %v880, 0.0
  %v885 = vadd.f32 %v883, %v884
  %v886 = vsel %vm157, %v881, 0.0
  %v887 = vadd.f32 %v885, %v886
  %v888 = vsel %vm157, %v882, 0.0
  %v889 = vadd.f32 %v887, %v888
  %v890 = vrot.slane %v889, 4
  %v891 = vadd.f32 %v889, %v890
  %v892 = vrot.slane %v891, 2
  %v893 = vadd.f32 %v891, %v892
  %v894 = vrot.slane %v893, 1
  %v895 = vadd.f32 %v893, %v894
  %v896 = vmul.f32 %v895, %v171
  %v897 = vadd.f32 %v896, 1e-05
  %v898 = vrsqrt.pop %v897
  %v899 = vmul.f32 %v875, %v898
  %v900 = vmul.f32 %v876, %v898
  %v901 = vmul.f32 %v877, %v898
  %v902 = vmul.f32 %v878, %v898
  %903 = vset.pattern.permute.xlu0 3
  %904 = vperm.xlu0 %903, %v19
  %v905 = vpop.permute.xlu0 %904
  %907 = vset.pattern.permute.xlu0 3
  %908 = vperm.xlu0 %907, %v20
  %v909 = vpop.permute.xlu0 %908
  %911 = vset.pattern.permute.xlu0 3
  %912 = vperm.xlu0 %911, %v21
  %v913 = vpop.permute.xlu0 %912
  %915 = vset.pattern.permute.xlu0 3
  %916 = vperm.xlu0 %915, %v22
  %v917 = vpop.permute.xlu0 %916
  %v919 = vmul.f32 %v899, %v905
  %v920 = vmul.f32 %v900, %v909
  %v921 = vmul.f32 %v901, %v913
  %v922 = vmul.f32 %v902, %v917
  %923 = vset.pattern.permute.xlu0 4
  %924 = vperm.xlu0 %923, %v19
  %v925 = vpop.permute.xlu0 %924
  %927 = vset.pattern.permute.xlu0 4
  %928 = vperm.xlu0 %927, %v20
  %v929 = vpop.permute.xlu0 %928
  %931 = vset.pattern.permute.xlu0 4
  %932 = vperm.xlu0 %931, %v21
  %v933 = vpop.permute.xlu0 %932
  %935 = vset.pattern.permute.xlu0 4
  %936 = vperm.xlu0 %935, %v22
  %v937 = vpop.permute.xlu0 %936
  %v939 = vadd.f32 %v919, %v925
  %v940 = vadd.f32 %v920, %v929
  %v941 = vadd.f32 %v921, %v933
  %v942 = vadd.f32 %v922, %v937
  %943 = vset.pattern.permute.xlu0 13
  %944 = vperm.xlu0 %943, %v19
  %v945 = vpop.permute.xlu0 %944
  %947 = vset.pattern.permute.xlu0 13
  %948 = vperm.xlu0 %947, %v20
  %v949 = vpop.permute.xlu0 %948
  %vm951 = vcmask 261120
  %v953 = vsel %vm951, %v145, 0
  %v956 = vsel %vm951, %v146, 0
  %958 = vmatprep.subr.mxu0 0.0
  %959 = vmatpush1.msra.mxu0 %v939
  %960 = vmatprep.subr.mxu0 0.0
  %961 = vmatpush1.msra.mxu0 %v940
  %962 = vmatprep.subr.mxu0 0.0
  %963 = vmatpush1.msra.mxu0 %v941
  %964 = vmatprep.subr.mxu0 0.0
  %965 = vmatpush1.msra.mxu0 %v942
  %966 = vmatprep.subr.mxu0 0.0
  %967 = vmatpush1.msra.mxu0 0.0
  %968 = vmatprep.subr.mxu0 0.0
  %969 = vmatpush1.msra.mxu0 0.0
  %970 = vmatprep.subr.mxu0 0.0
  %971 = vmatpush1.msra.mxu0 0.0
  %972 = vmatprep.subr.mxu0 0.0
  %973 = vmatpush1.msra.mxu0 0.0
  %974 = vmatprep.subr.mxu0 0.0
  %975 = vmatpush1.msra.mxu0 0.0
  %976 = vmatprep.subr.mxu0 0.0
  %977 = vmatpush1.msra.mxu0 0.0
  %978 = vmatprep.subr.mxu0 0.0
  %979 = vmatpush1.msra.mxu0 0.0
  %980 = vmatprep.subr.mxu0 0.0
  %981 = vmatpush1.msra.mxu0 0.0
  %982 = vmatprep.subr.mxu0 0.0
  %983 = vmatpush1.msra.mxu0 0.0
  %984 = vmatprep.subr.mxu0 0.0
  %985 = vmatpush1.msra.mxu0 0.0
  %986 = vmatprep.subr.mxu0 0.0
  %987 = vmatpush1.msra.mxu0 0.0
  %988 = vmatprep.subr.mxu0 0.0
  %989 = vmatpush1.msra.mxu0 0.0
  %990 = vmatprep.subr.mxu0 0.0
  %991 = vmatpush1.msra.mxu0 0.0
  %992 = vmatprep.subr.mxu0 0.0
  %993 = vmatpush1.msra.mxu0 0.0
  %994 = vmatprep.subr.mxu0 0.0
  %995 = vmatpush1.msra.mxu0 0.0
  %996 = vmatprep.subr.mxu0 0.0
  %997 = vmatpush1.msra.mxu0 0.0
  %998 = vmatprep.subr.mxu0 0.0
  %999 = vmatpush1.msra.mxu0 0.0
  %1000 = vmatprep.subr.mxu0 0.0
  %1001 = vmatpush1.msra.mxu0 0.0
  %1002 = vmatprep.subr.mxu0 0.0
  %1003 = vmatpush1.msra.mxu0 0.0
  %1004 = vmatprep.subr.mxu0 0.0
  %1005 = vmatpush1.msra.mxu0 0.0
  %1006 = vmatprep.subr.mxu0 0.0
  %1007 = vmatpush1.msra.mxu0 0.0
  %1008 = vmatprep.subr.mxu0 0.0
  %1009 = vmatpush1.msra.mxu0 0.0
  %1010 = vmatprep.subr.mxu0 0.0
  %1011 = vmatpush1.msra.mxu0 0.0
  %1012 = vmatprep.subr.mxu0 0.0
  %1013 = vmatpush1.msra.mxu0 0.0
  %1014 = vmatprep.subr.mxu0 0.0
  %1015 = vmatpush1.msra.mxu0 0.0
  %1016 = vmatprep.subr.mxu0 0.0
  %1017 = vmatpush1.msra.mxu0 0.0
  %1018 = vmatprep.subr.mxu0 0.0
  %1019 = vmatpush1.msra.mxu0 0.0
  %1020 = vmatprep.subr.mxu0 0.0
  %1021 = vmatpush1.msra.mxu0 0.0
  %1022 = vmatprep.mubr.f32.mxu0 0.0
  %1023 = vmatmul.mubr.f32.gmra.mrb[0].mxu0 %v953
  %v1024 = vpop.f32.mrb[0].mxu0
  %v1025 = vadd.f32 %v945, %v1024
  %v1026 = vpop.f32.mrb[0].mxu0
  %1027 = vmatprep.mubr.f32.mxu0 0.0
  %1028 = vmatmul.mubr.f32.gmra.mrb[0].mxu0 %v956
  %v1029 = vpop.f32.mrb[0].mxu0
  %v1030 = vadd.f32 %v949, %v1029
  %v1031 = vpop.f32.mrb[0].mxu0
  %1032 = vdwg.mxu0
  %v1033 = vmul.f32 %v1025, 0.5
  %v1034 = vmul.f32 %v1030, 0.5
  %v1035 = vmul.f32 %v1025, 0.044715
  %v1036 = vmul.f32 %v1030, 0.044715
  %v1037 = vmul.f32 %v1035, %v1025
  %v1038 = vmul.f32 %v1036, %v1030
  %v1039 = vmul.f32 %v1037, %v1025
  %v1040 = vmul.f32 %v1038, %v1030
  %v1041 = vadd.f32 %v1025, %v1039
  %v1042 = vadd.f32 %v1030, %v1040
  %v1043 = vmul.f32 %v1041, 0.7978846
  %v1044 = vmul.f32 %v1042, 0.7978846
  %v1045 = vtanh.pop %v1043
  %v1046 = vtanh.pop %v1044
  %v1047 = vadd.f32 %v1045, 1.0
  %v1048 = vadd.f32 %v1046, 1.0
  %v1049 = vmul.f32 %v1033, %v1047
  %v1050 = vmul.f32 %v1034, %v1048
  %vm1051 = vcmask 130048
  %v1053 = vsel %vm1051, %v149, 0
  %v1056 = vsel %vm1051, %v150, 0
  %v1059 = vsel %vm1051, %v151, 0
  %v1062 = vsel %vm1051, %v152, 0
  %1064 = vmatprep.subr.mxu0 0.0
  %1065 = vmatpush1.msra.mxu0 %v1049
  %1066 = vmatprep.subr.mxu0 0.0
  %1067 = vmatpush1.msra.mxu0 %v1050
  %1068 = vmatprep.subr.mxu0 0.0
  %1069 = vmatpush1.msra.mxu0 0.0
  %1070 = vmatprep.subr.mxu0 0.0
  %1071 = vmatpush1.msra.mxu0 0.0
  %1072 = vmatprep.subr.mxu0 0.0
  %1073 = vmatpush1.msra.mxu0 0.0
  %1074 = vmatprep.subr.mxu0 0.0
  %1075 = vmatpush1.msra.mxu0 0.0
  %1076 = vmatprep.subr.mxu0 0.0
  %1077 = vmatpush1.msra.mxu0 0.0
  %1078 = vmatprep.subr.mxu0 0.0
  %1079 = vmatpush1.msra.mxu0 0.0
  %1080 = vmatprep.subr.mxu0 0.0
  %1081 = vmatpush1.msra.mxu0 0.0
  %1082 = vmatprep.subr.mxu0 0.0
  %1083 = vmatpush1.msra.mxu0 0.0
  %1084 = vmatprep.subr.mxu0 0.0
  %1085 = vmatpush1.msra.mxu0 0.0
  %1086 = vmatprep.subr.mxu0 0.0
  %1087 = vmatpush1.msra.mxu0 0.0
  %1088 = vmatprep.subr.mxu0 0.0
  %1089 = vmatpush1.msra.mxu0 0.0
  %1090 = vmatprep.subr.mxu0 0.0
  %1091 = vmatpush1.msra.mxu0 0.0
  %1092 = vmatprep.subr.mxu0 0.0
  %1093 = vmatpush1.msra.mxu0 0.0
  %1094 = vmatprep.subr.mxu0 0.0
  %1095 = vmatpush1.msra.mxu0 0.0
  %1096 = vmatprep.subr.mxu0 0.0
  %1097 = vmatpush1.msra.mxu0 0.0
  %1098 = vmatprep.subr.mxu0 0.0
  %1099 = vmatpush1.msra.mxu0 0.0
  %1100 = vmatprep.subr.mxu0 0.0
  %1101 = vmatpush1.msra.mxu0 0.0
  %1102 = vmatprep.subr.mxu0 0.0
  %1103 = vmatpush1.msra.mxu0 0.0
  %1104 = vmatprep.subr.mxu0 0.0
  %1105 = vmatpush1.msra.mxu0 0.0
  %1106 = vmatprep.subr.mxu0 0.0
  %1107 = vmatpush1.msra.mxu0 0.0
  %1108 = vmatprep.subr.mxu0 0.0
  %1109 = vmatpush1.msra.mxu0 0.0
  %1110 = vmatprep.subr.mxu0 0.0
  %1111 = vmatpush1.msra.mxu0 0.0
  %1112 = vmatprep.subr.mxu0 0.0
  %1113 = vmatpush1.msra.mxu0 0.0
  %1114 = vmatprep.subr.mxu0 0.0
  %1115 = vmatpush1.msra.mxu0 0.0
  %1116 = vmatprep.subr.mxu0 0.0
  %1117 = vmatpush1.msra.mxu0 0.0
  %1118 = vmatprep.subr.mxu0 0.0
  %1119 = vmatpush1.msra.mxu0 0.0
  %1120 = vmatprep.subr.mxu0 0.0
  %1121 = vmatpush1.msra.mxu0 0.0
  %1122 = vmatprep.subr.mxu0 0.0
  %1123 = vmatpush1.msra.mxu0 0.0
  %1124 = vmatprep.subr.mxu0 0.0
  %1125 = vmatpush1.msra.mxu0 0.0
  %1126 = vmatprep.subr.mxu0 0.0
  %1127 = vmatpush1.msra.mxu0 0.0
  %1128 = vmatprep.mubr.f32.mxu0 0.0
  %1129 = vmatmul.mubr.f32.gmra.mrb[0].mxu0 %v1053
  %v1130 = vpop.f32.mrb[0].mxu0
  %v1131 = vadd.f32 0.0, %v1130
  %v1132 = vpop.f32.mrb[0].mxu0
  %1133 = vmatprep.mubr.f32.mxu0 0.0
  %1134 = vmatmul.mubr.f32.gmra.mrb[0].mxu0 %v1056
  %v1135 = vpop.f32.mrb[0].mxu0
  %v1136 = vadd.f32 0.0, %v1135
  %v1137 = vpop.f32.mrb[0].mxu0
  %1138 = vmatprep.mubr.f32.mxu0 0.0
  %1139 = vmatmul.mubr.f32.gmra.mrb[0].mxu0 %v1059
  %v1140 = vpop.f32.mrb[0].mxu0
  %v1141 = vadd.f32 0.0, %v1140
  %v1142 = vpop.f32.mrb[0].mxu0
  %1143 = vmatprep.mubr.f32.mxu0 0.0
  %1144 = vmatmul.mubr.f32.gmra.mrb[0].mxu0 %v1062
  %v1145 = vpop.f32.mrb[0].mxu0
  %v1146 = vadd.f32 0.0, %v1145
  %v1147 = vpop.f32.mrb[0].mxu0
  %1148 = vdwg.mxu0
  %v1149 = vadd.f32 %v857, %v1131
  %v1150 = vadd.f32 %v858, %v1136
  %v1151 = vadd.f32 %v859, %v1141
  %v1152 = vadd.f32 %v860, %v1146
  %1153 = vset.pattern.permute.xlu0 11
  %1154 = vperm.xlu0 %1153, %v19
  %v1155 = vpop.permute.xlu0 %1154
  %1157 = vset.pattern.permute.xlu0 11
  %1158 = vperm.xlu0 %1157, %v20
  %v1159 = vpop.permute.xlu0 %1158
  %1161 = vset.pattern.permute.xlu0 11
  %1162 = vperm.xlu0 %1161, %v21
  %v1163 = vpop.permute.xlu0 %1162
  %1165 = vset.pattern.permute.xlu0 11
  %1166 = vperm.xlu0 %1165, %v22
  %v1167 = vpop.permute.xlu0 %1166
  %v1169 = vadd.f32 %v1149, %v1155
  %v1170 = vadd.f32 %v1150, %v1159
  %v1171 = vadd.f32 %v1151, %v1163
  %v1172 = vadd.f32 %v1152, %v1167
  %v1173 = vsel %vm157, %v1169, 0.0
  %v1174 = vsel %vm157, %v1170, 0.0
  %v1175 = vadd.f32 %v1173, %v1174
  %v1176 = vsel %vm157, %v1171, 0.0
  %v1177 = vadd.f32 %v1175, %v1176
  %v1178 = vsel %vm157, %v1172, 0.0
  %v1179 = vadd.f32 %v1177, %v1178
  %v1180 = vrot.slane %v1179, 4
  %v1181 = vadd.f32 %v1179, %v1180
  %v1182 = vrot.slane %v1181, 2
  %v1183 = vadd.f32 %v1181, %v1182
  %v1184 = vrot.slane %v1183, 1
  %v1185 = vadd.f32 %v1183, %v1184
  %v1186 = vmul.f32 %v1185, %v171
  %v1187 = vsub.f32 %v1169, %v1186
  %v1188 = vsub.f32 %v1170, %v1186
  %v1189 = vsub.f32 %v1171, %v1186
  %v1190 = vsub.f32 %v1172, %v1186
  %v1191 = vmul.f32 %v1187, %v1187
  %v1192 = vmul.f32 %v1188, %v1188
  %v1193 = vmul.f32 %v1189, %v1189
  %v1194 = vmul.f32 %v1190, %v1190
  %v1195 = vsel %vm157, %v1191, 0.0
  %v1196 = vsel %vm157, %v1192, 0.0
  %v1197 = vadd.f32 %v1195, %v1196
  %v1198 = vsel %vm157, %v1193, 0.0
  %v1199 = vadd.f32 %v1197, %v1198
  %v1200 = vsel %vm157, %v1194, 0.0
  %v1201 = vadd.f32 %v1199, %v1200
  %v1202 = vrot.slane %v1201, 4
  %v1203 = vadd.f32 %v1201, %v1202
  %v1204 = vrot.slane %v1203, 2
  %v1205 = vadd.f32 %v1203, %v1204
  %v1206 = vrot.slane %v1205, 1
  %v1207 = vadd.f32 %v1205, %v1206
  %v1208 = vmul.f32 %v1207, %v171
  %v1209 = vadd.f32 %v1208, 1e-05
  %v1210 = vrsqrt.pop %v1209
  %v1211 = vmul.f32 %v1187, %v1210
  %v1212 = vmul.f32 %v1188, %v1210
  %v1213 = vmul.f32 %v1189, %v1210
  %v1214 = vmul.f32 %v1190, %v1210
  %1215 = vset.pattern.permute.xlu0 5
  %1216 = vperm.xlu0 %1215, %v19
  %v1217 = vpop.permute.xlu0 %1216
  %1219 = vset.pattern.permute.xlu0 5
  %1220 = vperm.xlu0 %1219, %v20
  %v1221 = vpop.permute.xlu0 %1220
  %1223 = vset.pattern.permute.xlu0 5
  %1224 = vperm.xlu0 %1223, %v21
  %v1225 = vpop.permute.xlu0 %1224
  %1227 = vset.pattern.permute.xlu0 5
  %1228 = vperm.xlu0 %1227, %v22
  %v1229 = vpop.permute.xlu0 %1228
  %v1231 = vmul.f32 %v1211, %v1217
  %v1232 = vmul.f32 %v1212, %v1221
  %v1233 = vmul.f32 %v1213, %v1225
  %v1234 = vmul.f32 %v1214, %v1229
  %1235 = vset.pattern.permute.xlu0 6
  %1236 = vperm.xlu0 %1235, %v19
  %v1237 = vpop.permute.xlu0 %1236
  %1239 = vset.pattern.permute.xlu0 6
  %1240 = vperm.xlu0 %1239, %v20
  %v1241 = vpop.permute.xlu0 %1240
  %1243 = vset.pattern.permute.xlu0 6
  %1244 = vperm.xlu0 %1243, %v21
  %v1245 = vpop.permute.xlu0 %1244
  %1247 = vset.pattern.permute.xlu0 6
  %1248 = vperm.xlu0 %1247, %v22
  %v1249 = vpop.permute.xlu0 %1248
  %v1251 = vadd.f32 %v1231, %v1237
  %v1252 = vadd.f32 %v1232, %v1241
  %v1253 = vadd.f32 %v1233, %v1245
  %v1254 = vadd.f32 %v1234, %v1249
  %s1255 = scalar_lea.vmem %s2, 132
  %v1256 = vld [vmem:[%s1255] sm:$0xff]
  %v1257 = vld [vmem:[%s1255 + $0x8] sm:$0xf]
  %v1258 = vld [vmem:[%s1255 + $0xc] sm:$0xff]
  %v1259 = vld [vmem:[%s1255 + $0x14] sm:$0xf]
  %v1260 = vld [vmem:[%s1255 + $0x18] sm:$0xff]
  %v1261 = vld [vmem:[%s1255 + $0x20] sm:$0xf]
  %v1262 = vld [vmem:[%s1255 + $0x24] sm:$0xff]
  %v1263 = vld [vmem:[%s1255 + $0x2c] sm:$0xf]
  %v1264 = vld [vmem:[%s1255 + $0x30] sm:$0xff]
  %v1265 = vld [vmem:[%s1255 + $0x38] sm:$0xf]
  %v1266 = vld [vmem:[%s1255 + $0x3c] sm:$0xff]
  %v1267 = vld [vmem:[%s1255 + $0x44] sm:$0xf]
  %v1268 = vld [vmem:[%s1255 + $0x48] sm:$0xff]
  %v1269 = vld [vmem:[%s1255 + $0x50] sm:$0xf]
  %v1270 = vld [vmem:[%s1255 + $0x54] sm:$0xff]
  %v1271 = vld [vmem:[%s1255 + $0x5c] sm:$0xf]
  %v1272 = vld [vmem:[%s1255 + $0x60] sm:$0xff]
  %v1273 = vld [vmem:[%s1255 + $0x68] sm:$0xf]
  %v1274 = vld [vmem:[%s1255 + $0x6c] sm:$0xff]
  %v1275 = vld [vmem:[%s1255 + $0x74] sm:$0xf]
  %v1276 = vld [vmem:[%s1255 + $0x78] sm:$0xff]
  %v1277 = vld [vmem:[%s1255 + $0x80] sm:$0xf]
  %v1278 = vpack.c.bf16 %v1252, %v1251
  %v1279 = vpack.c.bf16 %v1254, %v1253
  %v1280 = vunpack.c.l.bf16 %v1276
  %v1281 = vunpack.c.h.bf16 %v1276
  %v1282 = vunpack.c.l.bf16 %v1277
  %v1283 = vlaneseq
  %v1284 = vshrl.u32 %v1283, 7
  %v1285 = vsub.s32 0, %v1284
  %v1286 = vrot.slane %v1280, %v1285
  %v1287 = vlaneseq
  %v1288 = vshrl.u32 %v1287, 7
  %v1289 = vsub.s32 0, %v1288
  %v1290 = vrot.slane %v1281, %v1289
  %v1291 = vlaneseq
  %v1292 = vshrl.u32 %v1291, 7
  %v1293 = vsub.s32 0, %v1292
  %v1294 = vrot.slane %v1282, %v1293
  %v1315 = vunpack.c.l.b16 %v1256
  %v1316 = vunpack.c.h.b16 %v1256
  %v1317 = vunpack.c.l.b16 %v1257
  %v1318 = vunpack.c.l.b16 %v1258
  %v1319 = vunpack.c.h.b16 %v1258
  %v1320 = vunpack.c.l.b16 %v1259
  %v1321 = vunpack.c.l.b16 %v1260
  %v1322 = vunpack.c.h.b16 %v1260
  %v1323 = vunpack.c.l.b16 %v1261
  %v1324 = vunpack.c.l.b16 %v1262
  %v1325 = vunpack.c.h.b16 %v1262
  %v1326 = vunpack.c.l.b16 %v1263
  %v1327 = vunpack.c.l.b16 %v1264
  %v1328 = vunpack.c.h.b16 %v1264
  %v1329 = vunpack.c.l.b16 %v1265
  %v1330 = vunpack.c.l.b16 %v1266
  %v1331 = vunpack.c.h.b16 %v1266
  %v1332 = vunpack.c.l.b16 %v1267
  %v1333 = vunpack.c.l.b16 %v1268
  %v1334 = vunpack.c.h.b16 %v1268
  %v1335 = vunpack.c.l.b16 %v1269
  %v1336 = vunpack.c.l.b16 %v1270
  %v1337 = vunpack.c.h.b16 %v1270
  %v1338 = vunpack.c.l.b16 %v1271
  %v1339 = vunpack.c.l.b16 %v1272
  %v1340 = vunpack.c.h.b16 %v1272
  %v1341 = vunpack.c.l.b16 %v1273
  %v1342 = vunpack.c.l.b16 %v1274
  %v1343 = vunpack.c.h.b16 %v1274
  %v1344 = vunpack.c.l.b16 %v1275
  %v1345 = vpack.c.b16 %v1318, %v1315
  %v1346 = vpack.c.b16 %v1319, %v1316
  %v1347 = vpack.c.b16 %v1320, %v1317
  %v1348 = vpack.c.b16 %v1324, %v1321
  %v1349 = vpack.c.b16 %v1325, %v1322
  %v1350 = vpack.c.b16 %v1326, %v1323
  %v1351 = vpack.c.b16 %v1330, %v1327
  %v1352 = vpack.c.b16 %v1331, %v1328
  %v1353 = vpack.c.b16 %v1332, %v1329
  %v1354 = vpack.c.b16 %v1336, %v1333
  %v1355 = vpack.c.b16 %v1337, %v1334
  %v1356 = vpack.c.b16 %v1338, %v1335
  %v1357 = vpack.c.b16 %v1342, %v1339
  %v1358 = vpack.c.b16 %v1343, %v1340
  %v1359 = vpack.c.b16 %v1344, %v1341
  %v1376 = vsel %vm157, %v1278, 0
  %v1379 = vsel %vm157, %v1279, 0
  %1381 = vmatprep.subr.bf16.mxu0 %v1346
  %1382 = vmatpush1.bf16.msra.mxu0 %v1345
  %1383 = vmatprep.subr.bf16.mxu0 %v1349
  %1384 = vmatpush1.bf16.msra.mxu0 %v1348
  %1385 = vmatprep.subr.bf16.mxu0 %v1352
  %1386 = vmatpush1.bf16.msra.mxu0 %v1351
  %1387 = vmatprep.subr.bf16.mxu0 %v1355
  %1388 = vmatpush1.bf16.msra.mxu0 %v1354
  %1389 = vmatprep.subr.bf16.mxu0 %v1358
  %1390 = vmatpush1.bf16.msra.mxu0 %v1357
  %1391 = vmatprep.subr.bf16.mxu0 0
  %1392 = vmatpush1.bf16.msra.mxu0 0
  %1393 = vmatprep.subr.bf16.mxu0 0
  %1394 = vmatpush1.bf16.msra.mxu0 0
  %1395 = vmatprep.subr.bf16.mxu0 0
  %1396 = vmatpush1.bf16.msra.mxu0 0
  %1397 = vmatprep.subr.bf16.mxu0 0
  %1398 = vmatpush1.bf16.msra.mxu0 0
  %1399 = vmatprep.subr.bf16.mxu0 0
  %1400 = vmatpush1.bf16.msra.mxu0 0
  %1401 = vmatprep.subr.bf16.mxu0 0
  %1402 = vmatpush1.bf16.msra.mxu0 0
  %1403 = vmatprep.subr.bf16.mxu0 0
  %1404 = vmatpush1.bf16.msra.mxu0 0
  %1405 = vmatprep.subr.bf16.mxu0 0
  %1406 = vmatpush1.bf16.msra.mxu0 0
  %1407 = vmatprep.subr.bf16.mxu0 0
  %1408 = vmatpush1.bf16.msra.mxu0 0
  %1409 = vmatprep.subr.bf16.mxu0 0
  %1410 = vmatpush1.bf16.msra.mxu0 0
  %1411 = vmatprep.subr.bf16.mxu0 0
  %1412 = vmatpush1.bf16.msra.mxu0 0
  %1413 = vmatprep.mubr.bf16.mxu0 0
  %1414 = vmatmul.mubr.bf16.gmra.mrb[0].mxu0 %v1376
  %v1415 = vpop.f32.mrb[0].mxu0
  %v1416 = vadd.f32 %v1286, %v1415
  %v1417 = vpop.f32.mrb[0].mxu0
  %v1418 = vadd.f32 %v1290, %v1417
  %v1419 = vpop.f32.mrb[0].mxu0
  %v1420 = vadd.f32 %v1286, %v1419
  %v1421 = vpop.f32.mrb[0].mxu0
  %v1422 = vadd.f32 %v1290, %v1421
  %1423 = vmatprep.mubr.bf16.mxu0 0
  %1424 = vmatmul.mubr.bf16.gmra.mrb[0].mxu0 %v1379
  %v1425 = vpop.f32.mrb[0].mxu0
  %v1426 = vadd.f32 %v1286, %v1425
  %v1427 = vpop.f32.mrb[0].mxu0
  %v1428 = vadd.f32 %v1290, %v1427
  %v1429 = vpop.f32.mrb[0].mxu0
  %v1430 = vadd.f32 %v1286, %v1429
  %v1431 = vpop.f32.mrb[0].mxu0
  %v1432 = vadd.f32 %v1290, %v1431
  %1433 = vdwg.mxu0
  %1434 = vmatprep.subr.bf16.mxu0 0
  %1435 = vmatpush1.bf16.msra.mxu0 %v1347
  %1436 = vmatprep.subr.bf16.mxu0 0
  %1437 = vmatpush1.bf16.msra.mxu0 %v1350
  %1438 = vmatprep.subr.bf16.mxu0 0
  %1439 = vmatpush1.bf16.msra.mxu0 %v1353
  %1440 = vmatprep.subr.bf16.mxu0 0
  %1441 = vmatpush1.bf16.msra.mxu0 %v1356
  %1442 = vmatprep.subr.bf16.mxu0 0
  %1443 = vmatpush1.bf16.msra.mxu0 %v1359
  %1444 = vmatprep.subr.bf16.mxu0 0
  %1445 = vmatpush1.bf16.msra.mxu0 0
  %1446 = vmatprep.subr.bf16.mxu0 0
  %1447 = vmatpush1.bf16.msra.mxu0 0
  %1448 = vmatprep.subr.bf16.mxu0 0
  %1449 = vmatpush1.bf16.msra.mxu0 0
  %1450 = vmatprep.subr.bf16.mxu0 0
  %1451 = vmatpush1.bf16.msra.mxu0 0
  %1452 = vmatprep.subr.bf16.mxu0 0
  %1453 = vmatpush1.bf16.msra.mxu0 0
  %1454 = vmatprep.subr.bf16.mxu0 0
  %1455 = vmatpush1.bf16.msra.mxu0 0
  %1456 = vmatprep.subr.bf16.mxu0 0
  %1457 = vmatpush1.bf16.msra.mxu0 0
  %1458 = vmatprep.subr.bf16.mxu0 0
  %1459 = vmatpush1.bf16.msra.mxu0 0
  %1460 = vmatprep.subr.bf16.mxu0 0
  %1461 = vmatpush1.bf16.msra.mxu0 0
  %1462 = vmatprep.subr.bf16.mxu0 0
  %1463 = vmatpush1.bf16.msra.mxu0 0
  %1464 = vmatprep.subr.bf16.mxu0 0
  %1465 = vmatpush1.bf16.msra.mxu0 0
  %1466 = vmatprep.mubr.bf16.mxu0 0
  %1467 = vmatmul.mubr.bf16.gmra.mrb[0].mxu0 %v1376
  %v1468 = vpop.f32.mrb[0].mxu0
  %v1469 = vadd.f32 %v1294, %v1468
  %v1470 = vpop.f32.mrb[0].mxu0
  %v1471 = vpop.f32.mrb[0].mxu0
  %v1472 = vadd.f32 %v1294, %v1471
  %v1473 = vpop.f32.mrb[0].mxu0
  %1474 = vmatprep.mubr.bf16.mxu0 0
  %1475 = vmatmul.mubr.bf16.gmra.mrb[0].mxu0 %v1379
  %v1476 = vpop.f32.mrb[0].mxu0
  %v1477 = vadd.f32 %v1294, %v1476
  %v1478 = vpop.f32.mrb[0].mxu0
  %v1479 = vpop.f32.mrb[0].mxu0
  %v1480 = vadd.f32 %v1294, %v1479
  %v1481 = vpop.f32.mrb[0].mxu0
  %1482 = vdwg.mxu0
  %v1483 = vmul.f32 %v1416, 0.5
  %v1484 = vmul.f32 %v1418, 0.5
  %v1485 = vmul.f32 %v1469, 0.5
  %v1486 = vmul.f32 %v1420, 0.5
  %v1487 = vmul.f32 %v1422, 0.5
  %v1488 = vmul.f32 %v1472, 0.5
  %v1489 = vmul.f32 %v1426, 0.5
  %v1490 = vmul.f32 %v1428, 0.5
  %v1491 = vmul.f32 %v1477, 0.5
  %v1492 = vmul.f32 %v1430, 0.5
  %v1493 = vmul.f32 %v1432, 0.5
  %v1494 = vmul.f32 %v1480, 0.5
  %v1495 = vmul.f32 %v1416, 0.044715
  %v1496 = vmul.f32 %v1418, 0.044715
  %v1497 = vmul.f32 %v1469, 0.044715
  %v1498 = vmul.f32 %v1420, 0.044715
  %v1499 = vmul.f32 %v1422, 0.044715
  %v1500 = vmul.f32 %v1472, 0.044715
  %v1501 = vmul.f32 %v1426, 0.044715
  %v1502 = vmul.f32 %v1428, 0.044715
  %v1503 = vmul.f32 %v1477, 0.044715
  %v1504 = vmul.f32 %v1430, 0.044715
  %v1505 = vmul.f32 %v1432, 0.044715
  %v1506 = vmul.f32 %v1480, 0.044715
  %v1507 = vmul.f32 %v1495, %v1416
  %v1508 = vmul.f32 %v1496, %v1418
  %v1509 = vmul.f32 %v1497, %v1469
  %v1510 = vmul.f32 %v1498, %v1420
  %v1511 = vmul.f32 %v1499, %v1422
  %v1512 = vmul.f32 %v1500, %v1472
  %v1513 = vmul.f32 %v1501, %v1426
  %v1514 = vmul.f32 %v1502, %v1428
  %v1515 = vmul.f32 %v1503, %v1477
  %v1516 = vmul.f32 %v1504, %v1430
  %v1517 = vmul.f32 %v1505, %v1432
  %v1518 = vmul.f32 %v1506, %v1480
  %v1519 = vmul.f32 %v1507, %v1416
  %v1520 = vmul.f32 %v1508, %v1418
  %v1521 = vmul.f32 %v1509, %v1469
  %v1522 = vmul.f32 %v1510, %v1420
  %v1523 = vmul.f32 %v1511, %v1422
  %v1524 = vmul.f32 %v1512, %v1472
  %v1525 = vmul.f32 %v1513, %v1426
  %v1526 = vmul.f32 %v1514, %v1428
  %v1527 = vmul.f32 %v1515, %v1477
  %v1528 = vmul.f32 %v1516, %v1430
  %v1529 = vmul.f32 %v1517, %v1432
  %v1530 = vmul.f32 %v1518, %v1480
  %v1531 = vadd.f32 %v1416, %v1519
  %v1532 = vadd.f32 %v1418, %v1520
  %v1533 = vadd.f32 %v1469, %v1521
  %v1534 = vadd.f32 %v1420, %v1522
  %v1535 = vadd.f32 %v1422, %v1523
  %v1536 = vadd.f32 %v1472, %v1524
  %v1537 = vadd.f32 %v1426, %v1525
  %v1538 = vadd.f32 %v1428, %v1526
  %v1539 = vadd.f32 %v1477, %v1527
  %v1540 = vadd.f32 %v1430, %v1528
  %v1541 = vadd.f32 %v1432, %v1529
  %v1542 = vadd.f32 %v1480, %v1530
  %v1543 = vmul.f32 %v1531, 0.7978846
  %v1544 = vmul.f32 %v1532, 0.7978846
  %v1545 = vmul.f32 %v1533, 0.7978846
  %v1546 = vmul.f32 %v1534, 0.7978846
  %v1547 = vmul.f32 %v1535, 0.7978846
  %v1548 = vmul.f32 %v1536, 0.7978846
  %v1549 = vmul.f32 %v1537, 0.7978846
  %v1550 = vmul.f32 %v1538, 0.7978846
  %v1551 = vmul.f32 %v1539, 0.7978846
  %v1552 = vmul.f32 %v1540, 0.7978846
  %v1553 = vmul.f32 %v1541, 0.7978846
  %v1554 = vmul.f32 %v1542, 0.7978846
  %v1555 = vtanh.pop %v1543
  %v1556 = vtanh.pop %v1544
  %v1557 = vtanh.pop %v1545
  %v1558 = vtanh.pop %v1546
  %v1559 = vtanh.pop %v1547
  %v1560 = vtanh.pop %v1548
  %v1561 = vtanh.pop %v1549
  %v1562 = vtanh.pop %v1550
  %v1563 = vtanh.pop %v1551
  %v1564 = vtanh.pop %v1552
  %v1565 = vtanh.pop %v1553
  %v1566 = vtanh.pop %v1554
  %v1567 = vadd.f32 %v1555, 1.0
  %v1568 = vadd.f32 %v1556, 1.0
  %v1569 = vadd.f32 %v1557, 1.0
  %v1570 = vadd.f32 %v1558, 1.0
  %v1571 = vadd.f32 %v1559, 1.0
  %v1572 = vadd.f32 %v1560, 1.0
  %v1573 = vadd.f32 %v1561, 1.0
  %v1574 = vadd.f32 %v1562, 1.0
  %v1575 = vadd.f32 %v1563, 1.0
  %v1576 = vadd.f32 %v1564, 1.0
  %v1577 = vadd.f32 %v1565, 1.0
  %v1578 = vadd.f32 %v1566, 1.0
  %v1579 = vmul.f32 %v1483, %v1567
  %v1580 = vmul.f32 %v1484, %v1568
  %v1581 = vmul.f32 %v1485, %v1569
  %v1582 = vmul.f32 %v1486, %v1570
  %v1583 = vmul.f32 %v1487, %v1571
  %v1584 = vmul.f32 %v1488, %v1572
  %v1585 = vmul.f32 %v1489, %v1573
  %v1586 = vmul.f32 %v1490, %v1574
  %v1587 = vmul.f32 %v1491, %v1575
  %v1588 = vmul.f32 %v1492, %v1576
  %v1589 = vmul.f32 %v1493, %v1577
  %v1590 = vmul.f32 %v1494, %v1578
  %s1591 = scalar_lea.vmem %s3, 164
  %v1592 = vld [vmem:[%s1591] sm:$0xf]
  %v1593 = vld [vmem:[%s1591 + $0x4] sm:$0xf]
  %v1594 = vld [vmem:[%s1591 + $0x8] sm:$0xf]
  %v1595 = vld [vmem:[%s1591 + $0xc] sm:$0xf]
  %v1596 = vld [vmem:[%s1591 + $0x10] sm:$0xf]
  %v1597 = vld [vmem:[%s1591 + $0x14] sm:$0xf]
  %v1598 = vld [vmem:[%s1591 + $0x18] sm:$0xf]
  %v1599 = vld [vmem:[%s1591 + $0x1c] sm:$0xf]
  %v1600 = vld [vmem:[%s1591 + $0x20] sm:$0xf]
  %v1601 = vld [vmem:[%s1591 + $0x24] sm:$0xf]
  %v1602 = vld [vmem:[%s1591 + $0x28] sm:$0xf]
  %v1603 = vld [vmem:[%s1591 + $0x2c] sm:$0xf]
  %v1604 = vld [vmem:[%s1591 + $0x30] sm:$0xf]
  %v1605 = vld [vmem:[%s1591 + $0x34] sm:$0xf]
  %v1606 = vld [vmem:[%s1591 + $0x38] sm:$0xf]
  %v1607 = vld [vmem:[%s1591 + $0x3c] sm:$0xf]
  %v1608 = vld [vmem:[%s1591 + $0x40] sm:$0xf]
  %v1609 = vld [vmem:[%s1591 + $0x44] sm:$0xf]
  %v1610 = vld [vmem:[%s1591 + $0x48] sm:$0xf]
  %v1611 = vld [vmem:[%s1591 + $0x4c] sm:$0xf]
  %v1612 = vld [vmem:[%s1591 + $0x50] sm:$0xf]
  %v1613 = vld [vmem:[%s1591 + $0x54] sm:$0xf]
  %v1614 = vld [vmem:[%s1591 + $0x58] sm:$0xf]
  %v1615 = vld [vmem:[%s1591 + $0x5c] sm:$0xf]
  %v1616 = vld [vmem:[%s1591 + $0x60] sm:$0xf]
  %v1617 = vld [vmem:[%s1591 + $0x64] sm:$0xf]
  %v1618 = vld [vmem:[%s1591 + $0x68] sm:$0xf]
  %v1619 = vld [vmem:[%s1591 + $0x6c] sm:$0xf]
  %v1620 = vld [vmem:[%s1591 + $0x70] sm:$0xf]
  %v1621 = vld [vmem:[%s1591 + $0x74] sm:$0xf]
  %v1622 = vld [vmem:[%s1591 + $0x78] sm:$0xf]
  %v1623 = vld [vmem:[%s1591 + $0x7c] sm:$0xf]
  %v1624 = vld [vmem:[%s1591 + $0x80] sm:$0xf]
  %v1625 = vld [vmem:[%s1591 + $0x84] sm:$0xf]
  %v1626 = vld [vmem:[%s1591 + $0x88] sm:$0xf]
  %v1627 = vld [vmem:[%s1591 + $0x8c] sm:$0xf]
  %v1628 = vld [vmem:[%s1591 + $0x90] sm:$0xf]
  %v1629 = vld [vmem:[%s1591 + $0x94] sm:$0xf]
  %v1630 = vld [vmem:[%s1591 + $0x98] sm:$0xf]
  %v1631 = vld [vmem:[%s1591 + $0x9c] sm:$0xf]
  %v1632 = vld [vmem:[%s1591 + $0xa0] sm:$0xf]
  %v1633 = vpack.c.bf16 %v1582, %v1579
  %v1634 = vpack.c.bf16 %v1583, %v1580
  %v1635 = vpack.c.bf16 %v1584, %v1581
  %v1636 = vpack.c.bf16 %v1588, %v1585
  %v1637 = vpack.c.bf16 %v1589, %v1586
  %v1638 = vpack.c.bf16 %v1590, %v1587
  %v1679 = vunpack.c.l.b16 %v1592
  %v1680 = vunpack.c.l.b16 %v1593
  %v1681 = vunpack.c.l.b16 %v1594
  %v1682 = vunpack.c.l.b16 %v1595
  %v1683 = vunpack.c.l.b16 %v1596
  %v1684 = vunpack.c.l.b16 %v1597
  %v1685 = vunpack.c.l.b16 %v1598
  %v1686 = vunpack.c.l.b16 %v1599
  %v1687 = vunpack.c.l.b16 %v1600
  %v1688 = vunpack.c.l.b16 %v1601
  %v1689 = vunpack.c.l.b16 %v1602
  %v1690 = vunpack.c.l.b16 %v1603
  %v1691 = vunpack.c.l.b16 %v1604
  %v1692 = vunpack.c.l.b16 %v1605
  %v1693 = vunpack.c.l.b16 %v1606
  %v1694 = vunpack.c.l.b16 %v1607
  %v1695 = vunpack.c.l.b16 %v1608
  %v1696 = vunpack.c.l.b16 %v1609
  %v1697 = vunpack.c.l.b16 %v1610
  %v1698 = vunpack.c.l.b16 %v1611
  %v1699 = vunpack.c.l.b16 %v1612
  %v1700 = vunpack.c.l.b16 %v1613
  %v1701 = vunpack.c.l.b16 %v1614
  %v1702 = vunpack.c.l.b16 %v1615
  %v1703 = vunpack.c.l.b16 %v1616
  %v1704 = vunpack.c.l.b16 %v1617
  %v1705 = vunpack.c.l.b16 %v1618
  %v1706 = vunpack.c.l.b16 %v1619
  %v1707 = vunpack.c.l.b16 %v1620
  %v1708 = vunpack.c.l.b16 %v1621
  %v1709 = vunpack.c.l.b16 %v1622
  %v1710 = vunpack.c.l.b16 %v1623
  %v1711 = vunpack.c.l.b16 %v1624
  %v1712 = vunpack.c.l.b16 %v1625
  %v1713 = vunpack.c.l.b16 %v1626
  %v1714 = vunpack.c.l.b16 %v1627
  %v1715 = vunpack.c.l.b16 %v1628
  %v1716 = vunpack.c.l.b16 %v1629
  %v1717 = vunpack.c.l.b16 %v1630
  %v1718 = vunpack.c.l.b16 %v1631
  %v1719 = vpack.c.b16 %v1680, %v1679
  %v1720 = vpack.c.b16 %v1682, %v1681
  %v1721 = vpack.c.b16 %v1684, %v1683
  %v1722 = vpack.c.b16 %v1686, %v1685
  %v1723 = vpack.c.b16 %v1688, %v1687
  %v1724 = vpack.c.b16 %v1690, %v1689
  %v1725 = vpack.c.b16 %v1692, %v1691
  %v1726 = vpack.c.b16 %v1694, %v1693
  %v1727 = vpack.c.b16 %v1696, %v1695
  %v1728 = vpack.c.b16 %v1698, %v1697
  %v1729 = vpack.c.b16 %v1700, %v1699
  %v1730 = vpack.c.b16 %v1702, %v1701
  %v1731 = vpack.c.b16 %v1704, %v1703
  %v1732 = vpack.c.b16 %v1706, %v1705
  %v1733 = vpack.c.b16 %v1708, %v1707
  %v1734 = vpack.c.b16 %v1710, %v1709
  %v1735 = vpack.c.b16 %v1712, %v1711
  %v1736 = vpack.c.b16 %v1714, %v1713
  %v1737 = vpack.c.b16 %v1716, %v1715
  %v1738 = vpack.c.b16 %v1718, %v1717
  %v1760 = vsel %vm743, %v1635, 0
  %v1763 = vsel %vm743, %v1638, 0
  %1765 = vmatprep.subr.bf16.mxu0 0
  %1766 = vmatpush1.bf16.msra.mxu0 %v1719
  %1767 = vmatprep.subr.bf16.mxu0 0
  %1768 = vmatpush1.bf16.msra.mxu0 %v1720
  %1769 = vmatprep.subr.bf16.mxu0 0
  %1770 = vmatpush1.bf16.msra.mxu0 %v1721
  %1771 = vmatprep.subr.bf16.mxu0 0
  %1772 = vmatpush1.bf16.msra.mxu0 %v1722
  %1773 = vmatprep.subr.bf16.mxu0 0
  %1774 = vmatpush1.bf16.msra.mxu0 %v1723
  %1775 = vmatprep.subr.bf16.mxu0 0
  %1776 = vmatpush1.bf16.msra.mxu0 %v1724
  %1777 = vmatprep.subr.bf16.mxu0 0
  %1778 = vmatpush1.bf16.msra.mxu0 %v1725
  %1779 = vmatprep.subr.bf16.mxu0 0
  %1780 = vmatpush1.bf16.msra.mxu0 %v1726
  %1781 = vmatprep.subr.bf16.mxu0 0
  %1782 = vmatpush1.bf16.msra.mxu0 %v1727
  %1783 = vmatprep.subr.bf16.mxu0 0
  %1784 = vmatpush1.bf16.msra.mxu0 %v1728
  %1785 = vmatprep.subr.bf16.mxu0 0
  %1786 = vmatpush1.bf16.msra.mxu0 %v1729
  %1787 = vmatprep.subr.bf16.mxu0 0
  %1788 = vmatpush1.bf16.msra.mxu0 %v1730
  %1789 = vmatprep.subr.bf16.mxu0 0
  %1790 = vmatpush1.bf16.msra.mxu0 %v1731
  %1791 = vmatprep.subr.bf16.mxu0 0
  %1792 = vmatpush1.bf16.msra.mxu0 %v1732
  %1793 = vmatprep.subr.bf16.mxu0 0
  %1794 = vmatpush1.bf16.msra.mxu0 %v1733
  %1795 = vmatprep.subr.bf16.mxu0 0
  %1796 = vmatpush1.bf16.msra.mxu0 %v1734
  %1797 = vmatprep.mubr.bf16.mxu0 %v1634
  %1798 = vmatmul.mubr.bf16.gmra.mrb[0].mxu0 %v1633
  %v1799 = vpop.f32.mrb[0].mxu0
  %v1800 = vadd.f32 0.0, %v1799
  %v1801 = vpop.f32.mrb[0].mxu0
  %v1802 = vpop.f32.mrb[0].mxu0
  %v1803 = vadd.f32 0.0, %v1802
  %v1804 = vpop.f32.mrb[0].mxu0
  %1805 = vmatprep.mubr.bf16.mxu0 %v1637
  %1806 = vmatmul.mubr.bf16.gmra.mrb[0].mxu0 %v1636
  %v1807 = vpop.f32.mrb[0].mxu0
  %v1808 = vadd.f32 0.0, %v1807
  %v1809 = vpop.f32.mrb[0].mxu0
  %v1810 = vpop.f32.mrb[0].mxu0
  %v1811 = vadd.f32 0.0, %v1810
  %v1812 = vpop.f32.mrb[0].mxu0
  %1813 = vdwg.mxu0
  %1814 = vmatprep.subr.bf16.mxu0 0
  %1815 = vmatpush1.bf16.msra.mxu0 %v1735
  %1816 = vmatprep.subr.bf16.mxu0 0
  %1817 = vmatpush1.bf16.msra.mxu0 %v1736
  %1818 = vmatprep.subr.bf16.mxu0 0
  %1819 = vmatpush1.bf16.msra.mxu0 %v1737
  %1820 = vmatprep.subr.bf16.mxu0 0
  %1821 = vmatpush1.bf16.msra.mxu0 %v1738
  %1822 = vmatprep.subr.bf16.mxu0 0
  %1823 = vmatpush1.bf16.msra.mxu0 0
  %1824 = vmatprep.subr.bf16.mxu0 0
  %1825 = vmatpush1.bf16.msra.mxu0 0
  %1826 = vmatprep.subr.bf16.mxu0 0
  %1827 = vmatpush1.bf16.msra.mxu0 0
  %1828 = vmatprep.subr.bf16.mxu0 0
  %1829 = vmatpush1.bf16.msra.mxu0 0
  %1830 = vmatprep.subr.bf16.mxu0 0
  %1831 = vmatpush1.bf16.msra.mxu0 0
  %1832 = vmatprep.subr.bf16.mxu0 0
  %1833 = vmatpush1.bf16.msra.mxu0 0
  %1834 = vmatprep.subr.bf16.mxu0 0
  %1835 = vmatpush1.bf16.msra.mxu0 0
  %1836 = vmatprep.subr.bf16.mxu0 0
  %1837 = vmatpush1.bf16.msra.mxu0 0
  %1838 = vmatprep.subr.bf16.mxu0 0
  %1839 = vmatpush1.bf16.msra.mxu0 0
  %1840 = vmatprep.subr.bf16.mxu0 0
  %1841 = vmatpush1.bf16.msra.mxu0 0
  %1842 = vmatprep.subr.bf16.mxu0 0
  %1843 = vmatpush1.bf16.msra.mxu0 0
  %1844 = vmatprep.subr.bf16.mxu0 0
  %1845 = vmatpush1.bf16.msra.mxu0 0
  %1846 = vmatprep.mubr.bf16.mxu0 0
  %1847 = vmatmul.mubr.bf16.gmra.mrb[0].mxu0 %v1760
  %v1848 = vpop.f32.mrb[0].mxu0
  %v1849 = vadd.f32 %v1800, %v1848
  %v1850 = vpop.f32.mrb[0].mxu0
  %v1851 = vpop.f32.mrb[0].mxu0
  %v1852 = vadd.f32 %v1803, %v1851
  %v1853 = vpop.f32.mrb[0].mxu0
  %1854 = vmatprep.mubr.bf16.mxu0 0
  %1855 = vmatmul.mubr.bf16.gmra.mrb[0].mxu0 %v1763
  %v1856 = vpop.f32.mrb[0].mxu0
  %v1857 = vadd.f32 %v1808, %v1856
  %v1858 = vpop.f32.mrb[0].mxu0
  %v1859 = vpop.f32.mrb[0].mxu0
  %v1860 = vadd.f32 %v1811, %v1859
  %v1861 = vpop.f32.mrb[0].mxu0
  %1862 = vdwg.mxu0
  %v1863 = vadd.f32 %v1169, %v1849
  %v1864 = vadd.f32 %v1170, %v1852
  %v1865 = vadd.f32 %v1171, %v1857
  %v1866 = vadd.f32 %v1172, %v1860
  %v1867 = vunpack.c.l.bf16 %v1632
  %v1868 = vlaneseq
  %v1869 = vshrl.u32 %v1868, 7
  %v1870 = vsub.s32 0, %v1869
  %v1871 = vrot.slane %v1867, %v1870
  %v1872 = vadd.f32 %v1863, %v1871
  %v1873 = vadd.f32 %v1864, %v1871
  %v1874 = vadd.f32 %v1865, %v1871
  %v1875 = vadd.f32 %v1866, %v1871
  %v1876 = vsel %vm157, %v1872, 0.0
  %v1877 = vsel %vm157, %v1873, 0.0
  %v1878 = vadd.f32 %v1876, %v1877
  %v1879 = vsel %vm157, %v1874, 0.0
  %v1880 = vadd.f32 %v1878, %v1879
  %v1881 = vsel %vm157, %v1875, 0.0
  %v1882 = vadd.f32 %v1880, %v1881
  %v1883 = vrot.slane %v1882, 4
  %v1884 = vadd.f32 %v1882, %v1883
  %v1885 = vrot.slane %v1884, 2
  %v1886 = vadd.f32 %v1884, %v1885
  %v1887 = vrot.slane %v1886, 1
  %v1888 = vadd.f32 %v1886, %v1887
  %v1889 = vmul.f32 %v1888, %v171
  %v1890 = vsub.f32 %v1872, %v1889
  %v1891 = vsub.f32 %v1873, %v1889
  %v1892 = vsub.f32 %v1874, %v1889
  %v1893 = vsub.f32 %v1875, %v1889
  %v1894 = vmul.f32 %v1890, %v1890
  %v1895 = vmul.f32 %v1891, %v1891
  %v1896 = vmul.f32 %v1892, %v1892
  %v1897 = vmul.f32 %v1893, %v1893
  %v1898 = vsel %vm157, %v1894, 0.0
  %v1899 = vsel %vm157, %v1895, 0.0
  %v1900 = vadd.f32 %v1898, %v1899
  %v1901 = vsel %vm157, %v1896, 0.0
  %v1902 = vadd.f32 %v1900, %v1901
  %v1903 = vsel %vm157, %v1897, 0.0
  %v1904 = vadd.f32 %v1902, %v1903
  %v1905 = vrot.slane %v1904, 4
  %v1906 = vadd.f32 %v1904, %v1905
  %v1907 = vrot.slane %v1906, 2
  %v1908 = vadd.f32 %v1906, %v1907
  %v1909 = vrot.slane %v1908, 1
  %v1910 = vadd.f32 %v1908, %v1909
  %v1911 = vmul.f32 %v1910, %v171
  %v1912 = vadd.f32 %v1911, 1e-05
  %v1913 = vrsqrt.pop %v1912
  %v1914 = vmul.f32 %v1890, %v1913
  %v1915 = vmul.f32 %v1891, %v1913
  %v1916 = vmul.f32 %v1892, %v1913
  %v1917 = vmul.f32 %v1893, %v1913
  %1918 = vset.pattern.permute.xlu0 7
  %1919 = vperm.xlu0 %1918, %v19
  %v1920 = vpop.permute.xlu0 %1919
  %1922 = vset.pattern.permute.xlu0 7
  %1923 = vperm.xlu0 %1922, %v20
  %v1924 = vpop.permute.xlu0 %1923
  %1926 = vset.pattern.permute.xlu0 7
  %1927 = vperm.xlu0 %1926, %v21
  %v1928 = vpop.permute.xlu0 %1927
  %1930 = vset.pattern.permute.xlu0 7
  %1931 = vperm.xlu0 %1930, %v22
  %v1932 = vpop.permute.xlu0 %1931
  %v1934 = vmul.f32 %v1914, %v1920
  %v1935 = vmul.f32 %v1915, %v1924
  %v1936 = vmul.f32 %v1916, %v1928
  %v1937 = vmul.f32 %v1917, %v1932
  %1938 = vset.pattern.permute.xlu0 8
  %1939 = vperm.xlu0 %1938, %v19
  %v1940 = vpop.permute.xlu0 %1939
  %1942 = vset.pattern.permute.xlu0 8
  %1943 = vperm.xlu0 %1942, %v20
  %v1944 = vpop.permute.xlu0 %1943
  %1946 = vset.pattern.permute.xlu0 8
  %1947 = vperm.xlu0 %1946, %v21
  %v1948 = vpop.permute.xlu0 %1947
  %1950 = vset.pattern.permute.xlu0 8
  %1951 = vperm.xlu0 %1950, %v22
  %v1952 = vpop.permute.xlu0 %1951
  %v1954 = vadd.f32 %v1934, %v1940
  %v1955 = vadd.f32 %v1935, %v1944
  %v1956 = vadd.f32 %v1936, %v1948
  %v1957 = vadd.f32 %v1937, %v1952
  %1958 = vset.pattern.permute.xlu0 14
  %1959 = vperm.xlu0 %1958, %v19
  %v1960 = vpop.permute.xlu0 %1959
  %1962 = vset.pattern.permute.xlu0 14
  %1963 = vperm.xlu0 %1962, %v20
  %v1964 = vpop.permute.xlu0 %1963
  %v1967 = vsel %vm951, %v147, 0
  %v1970 = vsel %vm951, %v148, 0
  %1972 = vmatprep.subr.mxu0 0.0
  %1973 = vmatpush1.msra.mxu0 %v1954
  %1974 = vmatprep.subr.mxu0 0.0
  %1975 = vmatpush1.msra.mxu0 %v1955
  %1976 = vmatprep.subr.mxu0 0.0
  %1977 = vmatpush1.msra.mxu0 %v1956
  %1978 = vmatprep.subr.mxu0 0.0
  %1979 = vmatpush1.msra.mxu0 %v1957
  %1980 = vmatprep.subr.mxu0 0.0
  %1981 = vmatpush1.msra.mxu0 0.0
  %1982 = vmatprep.subr.mxu0 0.0
  %1983 = vmatpush1.msra.mxu0 0.0
  %1984 = vmatprep.subr.mxu0 0.0
  %1985 = vmatpush1.msra.mxu0 0.0
  %1986 = vmatprep.subr.mxu0 0.0
  %1987 = vmatpush1.msra.mxu0 0.0
  %1988 = vmatprep.subr.mxu0 0.0
  %1989 = vmatpush1.msra.mxu0 0.0
  %1990 = vmatprep.subr.mxu0 0.0
  %1991 = vmatpush1.msra.mxu0 0.0
  %1992 = vmatprep.subr.mxu0 0.0
  %1993 = vmatpush1.msra.mxu0 0.0
  %1994 = vmatprep.subr.mxu0 0.0
  %1995 = vmatpush1.msra.mxu0 0.0
  %1996 = vmatprep.subr.mxu0 0.0
  %1997 = vmatpush1.msra.mxu0 0.0
  %1998 = vmatprep.subr.mxu0 0.0
  %1999 = vmatpush1.msra.mxu0 0.0
  %2000 = vmatprep.subr.mxu0 0.0
  %2001 = vmatpush1.msra.mxu0 0.0
  %2002 = vmatprep.subr.mxu0 0.0
  %2003 = vmatpush1.msra.mxu0 0.0
  %2004 = vmatprep.subr.mxu0 0.0
  %2005 = vmatpush1.msra.mxu0 0.0
  %2006 = vmatprep.subr.mxu0 0.0
  %2007 = vmatpush1.msra.mxu0 0.0
  %2008 = vmatprep.subr.mxu0 0.0
  %2009 = vmatpush1.msra.mxu0 0.0
  %2010 = vmatprep.subr.mxu0 0.0
  %2011 = vmatpush1.msra.mxu0 0.0
  %2012 = vmatprep.subr.mxu0 0.0
  %2013 = vmatpush1.msra.mxu0 0.0
  %2014 = vmatprep.subr.mxu0 0.0
  %2015 = vmatpush1.msra.mxu0 0.0
  %2016 = vmatprep.subr.mxu0 0.0
  %2017 = vmatpush1.msra.mxu0 0.0
  %2018 = vmatprep.subr.mxu0 0.0
  %2019 = vmatpush1.msra.mxu0 0.0
  %2020 = vmatprep.subr.mxu0 0.0
  %2021 = vmatpush1.msra.mxu0 0.0
  %2022 = vmatprep.subr.mxu0 0.0
  %2023 = vmatpush1.msra.mxu0 0.0
  %2024 = vmatprep.subr.mxu0 0.0
  %2025 = vmatpush1.msra.mxu0 0.0
  %2026 = vmatprep.subr.mxu0 0.0
  %2027 = vmatpush1.msra.mxu0 0.0
  %2028 = vmatprep.subr.mxu0 0.0
  %2029 = vmatpush1.msra.mxu0 0.0
  %2030 = vmatprep.subr.mxu0 0.0
  %2031 = vmatpush1.msra.mxu0 0.0
  %2032 = vmatprep.subr.mxu0 0.0
  %2033 = vmatpush1.msra.mxu0 0.0
  %2034 = vmatprep.subr.mxu0 0.0
  %2035 = vmatpush1.msra.mxu0 0.0
  %2036 = vmatprep.mubr.f32.mxu0 0.0
  %2037 = vmatmul.mubr.f32.gmra.mrb[0].mxu0 %v1967
  %v2038 = vpop.f32.mrb[0].mxu0
  %v2039 = vadd.f32 %v1960, %v2038
  %v2040 = vpop.f32.mrb[0].mxu0
  %2041 = vmatprep.mubr.f32.mxu0 0.0
  %2042 = vmatmul.mubr.f32.gmra.mrb[0].mxu0 %v1970
  %v2043 = vpop.f32.mrb[0].mxu0
  %v2044 = vadd.f32 %v1964, %v2043
  %v2045 = vpop.f32.mrb[0].mxu0
  %2046 = vdwg.mxu0
  %v2047 = vmul.f32 %v2039, 0.5
  %v2048 = vmul.f32 %v2044, 0.5
  %v2049 = vmul.f32 %v2039, 0.044715
  %v2050 = vmul.f32 %v2044, 0.044715
  %v2051 = vmul.f32 %v2049, %v2039
  %v2052 = vmul.f32 %v2050, %v2044
  %v2053 = vmul.f32 %v2051, %v2039
  %v2054 = vmul.f32 %v2052, %v2044
  %v2055 = vadd.f32 %v2039, %v2053
  %v2056 = vadd.f32 %v2044, %v2054
  %v2057 = vmul.f32 %v2055, 0.7978846
  %v2058 = vmul.f32 %v2056, 0.7978846
  %v2059 = vtanh.pop %v2057
  %v2060 = vtanh.pop %v2058
  %v2061 = vadd.f32 %v2059, 1.0
  %v2062 = vadd.f32 %v2060, 1.0
  %v2063 = vmul.f32 %v2047, %v2061
  %v2064 = vmul.f32 %v2048, %v2062
  %v2066 = vsel %vm1051, %v153, 0
  %v2069 = vsel %vm1051, %v154, 0
  %v2072 = vsel %vm1051, %v155, 0
  %v2075 = vsel %vm1051, %v156, 0
  %2077 = vmatprep.subr.mxu0 0.0
  %2078 = vmatpush1.msra.mxu0 %v2063
  %2079 = vmatprep.subr.mxu0 0.0
  %2080 = vmatpush1.msra.mxu0 %v2064
  %2081 = vmatprep.subr.mxu0 0.0
  %2082 = vmatpush1.msra.mxu0 0.0
  %2083 = vmatprep.subr.mxu0 0.0
  %2084 = vmatpush1.msra.mxu0 0.0
  %2085 = vmatprep.subr.mxu0 0.0
  %2086 = vmatpush1.msra.mxu0 0.0
  %2087 = vmatprep.subr.mxu0 0.0
  %2088 = vmatpush1.msra.mxu0 0.0
  %2089 = vmatprep.subr.mxu0 0.0
  %2090 = vmatpush1.msra.mxu0 0.0
  %2091 = vmatprep.subr.mxu0 0.0
  %2092 = vmatpush1.msra.mxu0 0.0
  %2093 = vmatprep.subr.mxu0 0.0
  %2094 = vmatpush1.msra.mxu0 0.0
  %2095 = vmatprep.subr.mxu0 0.0
  %2096 = vmatpush1.msra.mxu0 0.0
  %2097 = vmatprep.subr.mxu0 0.0
  %2098 = vmatpush1.msra.mxu0 0.0
  %2099 = vmatprep.subr.mxu0 0.0
  %2100 = vmatpush1.msra.mxu0 0.0
  %2101 = vmatprep.subr.mxu0 0.0
  %2102 = vmatpush1.msra.mxu0 0.0
  %2103 = vmatprep.subr.mxu0 0.0
  %2104 = vmatpush1.msra.mxu0 0.0
  %2105 = vmatprep.subr.mxu0 0.0
  %2106 = vmatpush1.msra.mxu0 0.0
  %2107 = vmatprep.subr.mxu0 0.0
  %2108 = vmatpush1.msra.mxu0 0.0
  %2109 = vmatprep.subr.mxu0 0.0
  %2110 = vmatpush1.msra.mxu0 0.0
  %2111 = vmatprep.subr.mxu0 0.0
  %2112 = vmatpush1.msra.mxu0 0.0
  %2113 = vmatprep.subr.mxu0 0.0
  %2114 = vmatpush1.msra.mxu0 0.0
  %2115 = vmatprep.subr.mxu0 0.0
  %2116 = vmatpush1.msra.mxu0 0.0
  %2117 = vmatprep.subr.mxu0 0.0
  %2118 = vmatpush1.msra.mxu0 0.0
  %2119 = vmatprep.subr.mxu0 0.0
  %2120 = vmatpush1.msra.mxu0 0.0
  %2121 = vmatprep.subr.mxu0 0.0
  %2122 = vmatpush1.msra.mxu0 0.0
  %2123 = vmatprep.subr.mxu0 0.0
  %2124 = vmatpush1.msra.mxu0 0.0
  %2125 = vmatprep.subr.mxu0 0.0
  %2126 = vmatpush1.msra.mxu0 0.0
  %2127 = vmatprep.subr.mxu0 0.0
  %2128 = vmatpush1.msra.mxu0 0.0
  %2129 = vmatprep.subr.mxu0 0.0
  %2130 = vmatpush1.msra.mxu0 0.0
  %2131 = vmatprep.subr.mxu0 0.0
  %2132 = vmatpush1.msra.mxu0 0.0
  %2133 = vmatprep.subr.mxu0 0.0
  %2134 = vmatpush1.msra.mxu0 0.0
  %2135 = vmatprep.subr.mxu0 0.0
  %2136 = vmatpush1.msra.mxu0 0.0
  %2137 = vmatprep.subr.mxu0 0.0
  %2138 = vmatpush1.msra.mxu0 0.0
  %2139 = vmatprep.subr.mxu0 0.0
  %2140 = vmatpush1.msra.mxu0 0.0
  %2141 = vmatprep.mubr.f32.mxu0 0.0
  %2142 = vmatmul.mubr.f32.gmra.mrb[0].mxu0 %v2066
  %v2143 = vpop.f32.mrb[0].mxu0
  %v2144 = vadd.f32 0.0, %v2143
  %v2145 = vpop.f32.mrb[0].mxu0
  %2146 = vmatprep.mubr.f32.mxu0 0.0
  %2147 = vmatmul.mubr.f32.gmra.mrb[0].mxu0 %v2069
  %v2148 = vpop.f32.mrb[0].mxu0
  %v2149 = vadd.f32 0.0, %v2148
  %v2150 = vpop.f32.mrb[0].mxu0
  %2151 = vmatprep.mubr.f32.mxu0 0.0
  %2152 = vmatmul.mubr.f32.gmra.mrb[0].mxu0 %v2072
  %v2153 = vpop.f32.mrb[0].mxu0
  %v2154 = vadd.f32 0.0, %v2153
  %v2155 = vpop.f32.mrb[0].mxu0
  %2156 = vmatprep.mubr.f32.mxu0 0.0
  %2157 = vmatmul.mubr.f32.gmra.mrb[0].mxu0 %v2075
  %v2158 = vpop.f32.mrb[0].mxu0
  %v2159 = vadd.f32 0.0, %v2158
  %v2160 = vpop.f32.mrb[0].mxu0
  %2161 = vdwg.mxu0
  %v2162 = vadd.f32 %v1872, %v2144
  %v2163 = vadd.f32 %v1873, %v2149
  %v2164 = vadd.f32 %v1874, %v2154
  %v2165 = vadd.f32 %v1875, %v2159
  %2166 = vset.pattern.permute.xlu0 12
  %2167 = vperm.xlu0 %2166, %v19
  %v2168 = vpop.permute.xlu0 %2167
  %2170 = vset.pattern.permute.xlu0 12
  %2171 = vperm.xlu0 %2170, %v20
  %v2172 = vpop.permute.xlu0 %2171
  %2174 = vset.pattern.permute.xlu0 12
  %2175 = vperm.xlu0 %2174, %v21
  %v2176 = vpop.permute.xlu0 %2175
  %2178 = vset.pattern.permute.xlu0 12
  %2179 = vperm.xlu0 %2178, %v22
  %v2180 = vpop.permute.xlu0 %2179
  %v2182 = vadd.f32 %v2162, %v2168
  %v2183 = vadd.f32 %v2163, %v2172
  %v2184 = vadd.f32 %v2164, %v2176
  %v2185 = vadd.f32 %v2165, %v2180
  %v2186 = vsel %vm157, %v2182, 0.0
  %v2187 = vsel %vm157, %v2183, 0.0
  %v2188 = vadd.f32 %v2186, %v2187
  %v2189 = vsel %vm157, %v2184, 0.0
  %v2190 = vadd.f32 %v2188, %v2189
  %v2191 = vsel %vm157, %v2185, 0.0
  %v2192 = vadd.f32 %v2190, %v2191
  %v2193 = vrot.slane %v2192, 4
  %v2194 = vadd.f32 %v2192, %v2193
  %v2195 = vrot.slane %v2194, 2
  %v2196 = vadd.f32 %v2194, %v2195
  %v2197 = vrot.slane %v2196, 1
  %v2198 = vadd.f32 %v2196, %v2197
  %v2199 = vmul.f32 %v2198, %v171
  %v2200 = vsub.f32 %v2182, %v2199
  %v2201 = vsub.f32 %v2183, %v2199
  %v2202 = vsub.f32 %v2184, %v2199
  %v2203 = vsub.f32 %v2185, %v2199
  %v2204 = vmul.f32 %v2200, %v2200
  %v2205 = vmul.f32 %v2201, %v2201
  %v2206 = vmul.f32 %v2202, %v2202
  %v2207 = vmul.f32 %v2203, %v2203
  %v2208 = vsel %vm157, %v2204, 0.0
  %v2209 = vsel %vm157, %v2205, 0.0
  %v2210 = vadd.f32 %v2208, %v2209
  %v2211 = vsel %vm157, %v2206, 0.0
  %v2212 = vadd.f32 %v2210, %v2211
  %v2213 = vsel %vm157, %v2207, 0.0
  %v2214 = vadd.f32 %v2212, %v2213
  %v2215 = vrot.slane %v2214, 4
  %v2216 = vadd.f32 %v2214, %v2215
  %v2217 = vrot.slane %v2216, 2
  %v2218 = vadd.f32 %v2216, %v2217
  %v2219 = vrot.slane %v2218, 1
  %v2220 = vadd.f32 %v2218, %v2219
  %v2221 = vmul.f32 %v2220, %v171
  %v2222 = vadd.f32 %v2221, 1e-05
  %v2223 = vrsqrt.pop %v2222
  %v2224 = vmul.f32 %v2200, %v2223
  %v2225 = vmul.f32 %v2201, %v2223
  %v2226 = vmul.f32 %v2202, %v2223
  %v2227 = vmul.f32 %v2203, %v2223
  %2228 = vset.pattern.permute.xlu0 9
  %2229 = vperm.xlu0 %2228, %v19
  %v2230 = vpop.permute.xlu0 %2229
  %2232 = vset.pattern.permute.xlu0 9
  %2233 = vperm.xlu0 %2232, %v20
  %v2234 = vpop.permute.xlu0 %2233
  %2236 = vset.pattern.permute.xlu0 9
  %2237 = vperm.xlu0 %2236, %v21
  %v2238 = vpop.permute.xlu0 %2237
  %2240 = vset.pattern.permute.xlu0 9
  %2241 = vperm.xlu0 %2240, %v22
  %v2242 = vpop.permute.xlu0 %2241
  %v2244 = vmul.f32 %v2224, %v2230
  %v2245 = vmul.f32 %v2225, %v2234
  %v2246 = vmul.f32 %v2226, %v2238
  %v2247 = vmul.f32 %v2227, %v2242
  %2248 = vset.pattern.permute.xlu0 10
  %2249 = vperm.xlu0 %2248, %v19
  %v2250 = vpop.permute.xlu0 %2249
  %2252 = vset.pattern.permute.xlu0 10
  %2253 = vperm.xlu0 %2252, %v20
  %v2254 = vpop.permute.xlu0 %2253
  %2256 = vset.pattern.permute.xlu0 10
  %2257 = vperm.xlu0 %2256, %v21
  %v2258 = vpop.permute.xlu0 %2257
  %2260 = vset.pattern.permute.xlu0 10
  %2261 = vperm.xlu0 %2260, %v22
  %v2262 = vpop.permute.xlu0 %2261
  %v2264 = vadd.f32 %v2244, %v2250
  %v2265 = vadd.f32 %v2245, %v2254
  %v2266 = vadd.f32 %v2246, %v2258
  %v2267 = vadd.f32 %v2247, %v2262
  %v2268 = vld [vmem:[%s1 + $0x40] sm:$0xff]
  %v2269 = vld [vmem:[%s1 + $0x48] sm:$0xff]
  %v2270 = vld [vmem:[%s1 + $0x50] sm:$0xff]
  %v2271 = vld [vmem:[%s1 + $0x58] sm:$0xff]
  %v2272 = vld [vmem:[%s1 + $0x120] sm:$0xff]
  %v2273 = vld [vmem:[%s1 + $0x128] sm:$0xff]
  %v2274 = vld [vmem:[%s1 + $0x130] sm:$0xff]
  %v2275 = vld [vmem:[%s1 + $0x138] sm:$0xff]
  %v2276 = vld [vmem:[%s1 + $0x140] sm:$0xff]
  %v2277 = vld [vmem:[%s1 + $0x148] sm:$0xff]
  %v2278 = vld [vmem:[%s1 + $0x150] sm:$0xff]
  %v2279 = vld [vmem:[%s1 + $0x158] sm:$0xff]
  %v2280 = vld [vmem:[%s1 + $0x160] sm:$0xff]
  %v2281 = vld [vmem:[%s1 + $0x168] sm:$0xff]
  %v2282 = vld [vmem:[%s1 + $0x170] sm:$0xff]
  %v2283 = vld [vmem:[%s1 + $0x178] sm:$0xff]
  %v2284 = vld [vmem:[%s1 + $0x180] sm:$0xff]
  %v2285 = vld [vmem:[%s1 + $0x188] sm:$0xff]
  %v2286 = vld [vmem:[%s1 + $0x190] sm:$0xff]
  %v2287 = vld [vmem:[%s1 + $0x198] sm:$0xff]
  %v2288 = vld [vmem:[%s1 + $0x1a0] sm:$0xff]
  %v2289 = vld [vmem:[%s1 + $0x1a8] sm:$0xff]
  %v2290 = vld [vmem:[%s1 + $0x1b0] sm:$0xff]
  %v2291 = vld [vmem:[%s1 + $0x1b8] sm:$0xff]
  %v2292 = vld [vmem:[%s1 + $0x1c0] sm:$0xff]
  %v2293 = vld [vmem:[%s1 + $0x1c8] sm:$0xff]
  %v2294 = vld [vmem:[%s1 + $0x1d0] sm:$0xff]
  %v2295 = vld [vmem:[%s1 + $0x1d8] sm:$0xff]
  %v2296 = vld [vmem:[%s1 + $0x1e0] sm:$0xff]
  %v2297 = vld [vmem:[%s1 + $0x1e8] sm:$0xff]
  %v2298 = vld [vmem:[%s1 + $0x1f0] sm:$0xff]
  %v2299 = vld [vmem:[%s1 + $0x1f8] sm:$0xff]
  %v2300 = vld [vmem:[%s1 + $0x200] sm:$0xff]
  %v2301 = vld [vmem:[%s1 + $0x208] sm:$0xff]
  %v2302 = vld [vmem:[%s1 + $0x210] sm:$0xff]
  %v2303 = vld [vmem:[%s1 + $0x218] sm:$0xff]
  %v2305 = vsel %vm951, %v2272, 0
  %v2308 = vsel %vm951, %v2273, 0
  %v2311 = vsel %vm951, %v2274, 0
  %v2314 = vsel %vm951, %v2275, 0
  %v2317 = vsel %vm951, %v2276, 0
  %v2320 = vsel %vm951, %v2277, 0
  %v2323 = vsel %vm951, %v2278, 0
  %v2326 = vsel %vm951, %v2279, 0
  %v2329 = vsel %vm951, %v2280, 0
  %v2332 = vsel %vm951, %v2281, 0
  %v2335 = vsel %vm951, %v2282, 0
  %v2338 = vsel %vm951, %v2283, 0
  %v2341 = vsel %vm951, %v2284, 0
  %v2344 = vsel %vm951, %v2285, 0
  %v2347 = vsel %vm951, %v2286, 0
  %v2350 = vsel %vm951, %v2287, 0
  %v2353 = vsel %vm951, %v2288, 0
  %v2356 = vsel %vm951, %v2289, 0
  %v2359 = vsel %vm951, %v2290, 0
  %v2362 = vsel %vm951, %v2291, 0
  %v2365 = vsel %vm951, %v2292, 0
  %v2368 = vsel %vm951, %v2293, 0
  %v2371 = vsel %vm951, %v2294, 0
  %v2374 = vsel %vm951, %v2295, 0
  %v2377 = vsel %vm951, %v2296, 0
  %v2380 = vsel %vm951, %v2297, 0
  %v2383 = vsel %vm951, %v2298, 0
  %v2386 = vsel %vm951, %v2299, 0
  %v2389 = vsel %vm951, %v2300, 0
  %v2392 = vsel %vm951, %v2301, 0
  %v2395 = vsel %vm951, %v2302, 0
  %v2398 = vsel %vm951, %v2303, 0
  %2400 = vmatprep.subr.mxu0 0.0
  %2401 = vmatpush1.msra.mxu0 %v2264
  %2402 = vmatprep.subr.mxu0 0.0
  %2403 = vmatpush1.msra.mxu0 %v2265
  %2404 = vmatprep.subr.mxu0 0.0
  %2405 = vmatpush1.msra.mxu0 %v2266
  %2406 = vmatprep.subr.mxu0 0.0
  %2407 = vmatpush1.msra.mxu0 %v2267
  %2408 = vmatprep.subr.mxu0 0.0
  %2409 = vmatpush1.msra.mxu0 0.0
  %2410 = vmatprep.subr.mxu0 0.0
  %2411 = vmatpush1.msra.mxu0 0.0
  %2412 = vmatprep.subr.mxu0 0.0
  %2413 = vmatpush1.msra.mxu0 0.0
  %2414 = vmatprep.subr.mxu0 0.0
  %2415 = vmatpush1.msra.mxu0 0.0
  %2416 = vmatprep.subr.mxu0 0.0
  %2417 = vmatpush1.msra.mxu0 0.0
  %2418 = vmatprep.subr.mxu0 0.0
  %2419 = vmatpush1.msra.mxu0 0.0
  %2420 = vmatprep.subr.mxu0 0.0
  %2421 = vmatpush1.msra.mxu0 0.0
  %2422 = vmatprep.subr.mxu0 0.0
  %2423 = vmatpush1.msra.mxu0 0.0
  %2424 = vmatprep.subr.mxu0 0.0
  %2425 = vmatpush1.msra.mxu0 0.0
  %2426 = vmatprep.subr.mxu0 0.0
  %2427 = vmatpush1.msra.mxu0 0.0
  %2428 = vmatprep.subr.mxu0 0.0
  %2429 = vmatpush1.msra.mxu0 0.0
  %2430 = vmatprep.subr.mxu0 0.0
  %2431 = vmatpush1.msra.mxu0 0.0
  %2432 = vmatprep.subr.mxu0 0.0
  %2433 = vmatpush1.msra.mxu0 0.0
  %2434 = vmatprep.subr.mxu0 0.0
  %2435 = vmatpush1.msra.mxu0 0.0
  %2436 = vmatprep.subr.mxu0 0.0
  %2437 = vmatpush1.msra.mxu0 0.0
  %2438 = vmatprep.subr.mxu0 0.0
  %2439 = vmatpush1.msra.mxu0 0.0
  %2440 = vmatprep.subr.mxu0 0.0
  %2441 = vmatpush1.msra.mxu0 0.0
  %2442 = vmatprep.subr.mxu0 0.0
  %2443 = vmatpush1.msra.mxu0 0.0
  %2444 = vmatprep.subr.mxu0 0.0
  %2445 = vmatpush1.msra.mxu0 0.0
  %2446 = vmatprep.subr.mxu0 0.0
  %2447 = vmatpush1.msra.mxu0 0.0
  %2448 = vmatprep.subr.mxu0 0.0
  %2449 = vmatpush1.msra.mxu0 0.0
  %2450 = vmatprep.subr.mxu0 0.0
  %2451 = vmatpush1.msra.mxu0 0.0
  %2452 = vmatprep.subr.mxu0 0.0
  %2453 = vmatpush1.msra.mxu0 0.0
  %2454 = vmatprep.subr.mxu0 0.0
  %2455 = vmatpush1.msra.mxu0 0.0
  %2456 = vmatprep.subr.mxu0 0.0
  %2457 = vmatpush1.msra.mxu0 0.0
  %2458 = vmatprep.subr.mxu0 0.0
  %2459 = vmatpush1.msra.mxu0 0.0
  %2460 = vmatprep.subr.mxu0 0.0
  %2461 = vmatpush1.msra.mxu0 0.0
  %2462 = vmatprep.subr.mxu0 0.0
  %2463 = vmatpush1.msra.mxu0 0.0
  %2464 = vmatprep.mubr.f32.mxu0 0.0
  %2465 = vmatmul.mubr.f32.gmra.mrb[0].mxu0 %v2305
  %v2466 = vpop.f32.mrb[0].mxu0
  %v2467 = vadd.f32 0.0, %v2466
  %v2468 = vpop.f32.mrb[0].mxu0
  %2469 = vmatprep.mubr.f32.mxu0 0.0
  %2470 = vmatmul.mubr.f32.gmra.mrb[0].mxu0 %v2308
  %v2471 = vpop.f32.mrb[0].mxu0
  %v2472 = vadd.f32 0.0, %v2471
  %v2473 = vpop.f32.mrb[0].mxu0
  %2474 = vmatprep.mubr.f32.mxu0 0.0
  %2475 = vmatmul.mubr.f32.gmra.mrb[0].mxu0 %v2311
  %v2476 = vpop.f32.mrb[0].mxu0
  %v2477 = vadd.f32 0.0, %v2476
  %v2478 = vpop.f32.mrb[0].mxu0
  %2479 = vmatprep.mubr.f32.mxu0 0.0
  %2480 = vmatmul.mubr.f32.gmra.mrb[0].mxu0 %v2314
  %v2481 = vpop.f32.mrb[0].mxu0
  %v2482 = vadd.f32 0.0, %v2481
  %v2483 = vpop.f32.mrb[0].mxu0
  %2484 = vmatprep.mubr.f32.mxu0 0.0
  %2485 = vmatmul.mubr.f32.gmra.mrb[0].mxu0 %v2317
  %v2486 = vpop.f32.mrb[0].mxu0
  %v2487 = vadd.f32 0.0, %v2486
  %v2488 = vpop.f32.mrb[0].mxu0
  %2489 = vmatprep.mubr.f32.mxu0 0.0
  %2490 = vmatmul.mubr.f32.gmra.mrb[0].mxu0 %v2320
  %v2491 = vpop.f32.mrb[0].mxu0
  %v2492 = vadd.f32 0.0, %v2491
  %v2493 = vpop.f32.mrb[0].mxu0
  %2494 = vmatprep.mubr.f32.mxu0 0.0
  %2495 = vmatmul.mubr.f32.gmra.mrb[0].mxu0 %v2323
  %v2496 = vpop.f32.mrb[0].mxu0
  %v2497 = vadd.f32 0.0, %v2496
  %v2498 = vpop.f32.mrb[0].mxu0
  %2499 = vmatprep.mubr.f32.mxu0 0.0
  %2500 = vmatmul.mubr.f32.gmra.mrb[0].mxu0 %v2326
  %v2501 = vpop.f32.mrb[0].mxu0
  %v2502 = vadd.f32 0.0, %v2501
  %v2503 = vpop.f32.mrb[0].mxu0
  %2504 = vmatprep.mubr.f32.mxu0 0.0
  %2505 = vmatmul.mubr.f32.gmra.mrb[0].mxu0 %v2329
  %v2506 = vpop.f32.mrb[0].mxu0
  %v2507 = vadd.f32 0.0, %v2506
  %v2508 = vpop.f32.mrb[0].mxu0
  %2509 = vmatprep.mubr.f32.mxu0 0.0
  %2510 = vmatmul.mubr.f32.gmra.mrb[0].mxu0 %v2332
  %v2511 = vpop.f32.mrb[0].mxu0
  %v2512 = vadd.f32 0.0, %v2511
  %v2513 = vpop.f32.mrb[0].mxu0
  %2514 = vmatprep.mubr.f32.mxu0 0.0
  %2515 = vmatmul.mubr.f32.gmra.mrb[0].mxu0 %v2335
  %v2516 = vpop.f32.mrb[0].mxu0
  %v2517 = vadd.f32 0.0, %v2516
  %v2518 = vpop.f32.mrb[0].mxu0
  %2519 = vmatprep.mubr.f32.mxu0 0.0
  %2520 = vmatmul.mubr.f32.gmra.mrb[0].mxu0 %v2338
  %v2521 = vpop.f32.mrb[0].mxu0
  %v2522 = vadd.f32 0.0, %v2521
  %v2523 = vpop.f32.mrb[0].mxu0
  %2524 = vmatprep.mubr.f32.mxu0 0.0
  %2525 = vmatmul.mubr.f32.gmra.mrb[0].mxu0 %v2341
  %v2526 = vpop.f32.mrb[0].mxu0
  %v2527 = vadd.f32 0.0, %v2526
  %v2528 = vpop.f32.mrb[0].mxu0
  %2529 = vmatprep.mubr.f32.mxu0 0.0
  %2530 = vmatmul.mubr.f32.gmra.mrb[0].mxu0 %v2344
  %v2531 = vpop.f32.mrb[0].mxu0
  %v2532 = vadd.f32 0.0, %v2531
  %v2533 = vpop.f32.mrb[0].mxu0
  %2534 = vmatprep.mubr.f32.mxu0 0.0
  %2535 = vmatmul.mubr.f32.gmra.mrb[0].mxu0 %v2347
  %v2536 = vpop.f32.mrb[0].mxu0
  %v2537 = vadd.f32 0.0, %v2536
  %v2538 = vpop.f32.mrb[0].mxu0
  %2539 = vmatprep.mubr.f32.mxu0 0.0
  %2540 = vmatmul.mubr.f32.gmra.mrb[0].mxu0 %v2350
  %v2541 = vpop.f32.mrb[0].mxu0
  %v2542 = vadd.f32 0.0, %v2541
  %v2543 = vpop.f32.mrb[0].mxu0
  %2544 = vmatprep.mubr.f32.mxu0 0.0
  %2545 = vmatmul.mubr.f32.gmra.mrb[0].mxu0 %v2353
  %v2546 = vpop.f32.mrb[0].mxu0
  %v2547 = vadd.f32 0.0, %v2546
  %v2548 = vpop.f32.mrb[0].mxu0
  %2549 = vmatprep.mubr.f32.mxu0 0.0
  %2550 = vmatmul.mubr.f32.gmra.mrb[0].mxu0 %v2356
  %v2551 = vpop.f32.mrb[0].mxu0
  %v2552 = vadd.f32 0.0, %v2551
  %v2553 = vpop.f32.mrb[0].mxu0
  %2554 = vmatprep.mubr.f32.mxu0 0.0
  %2555 = vmatmul.mubr.f32.gmra.mrb[0].mxu0 %v2359
  %v2556 = vpop.f32.mrb[0].mxu0
  %v2557 = vadd.f32 0.0, %v2556
  %v2558 = vpop.f32.mrb[0].mxu0
  %2559 = vmatprep.mubr.f32.mxu0 0.0
  %2560 = vmatmul.mubr.f32.gmra.mrb[0].mxu0 %v2362
  %v2561 = vpop.f32.mrb[0].mxu0
  %v2562 = vadd.f32 0.0, %v2561
  %v2563 = vpop.f32.mrb[0].mxu0
  %2564 = vmatprep.mubr.f32.mxu0 0.0
  %2565 = vmatmul.mubr.f32.gmra.mrb[0].mxu0 %v2365
  %v2566 = vpop.f32.mrb[0].mxu0
  %v2567 = vadd.f32 0.0, %v2566
  %v2568 = vpop.f32.mrb[0].mxu0
  %2569 = vmatprep.mubr.f32.mxu0 0.0
  %2570 = vmatmul.mubr.f32.gmra.mrb[0].mxu0 %v2368
  %v2571 = vpop.f32.mrb[0].mxu0
  %v2572 = vadd.f32 0.0, %v2571
  %v2573 = vpop.f32.mrb[0].mxu0
  %2574 = vmatprep.mubr.f32.mxu0 0.0
  %2575 = vmatmul.mubr.f32.gmra.mrb[0].mxu0 %v2371
  %v2576 = vpop.f32.mrb[0].mxu0
  %v2577 = vadd.f32 0.0, %v2576
  %v2578 = vpop.f32.mrb[0].mxu0
  %2579 = vmatprep.mubr.f32.mxu0 0.0
  %2580 = vmatmul.mubr.f32.gmra.mrb[0].mxu0 %v2374
  %v2581 = vpop.f32.mrb[0].mxu0
  %v2582 = vadd.f32 0.0, %v2581
  %v2583 = vpop.f32.mrb[0].mxu0
  %2584 = vmatprep.mubr.f32.mxu0 0.0
  %2585 = vmatmul.mubr.f32.gmra.mrb[0].mxu0 %v2377
  %v2586 = vpop.f32.mrb[0].mxu0
  %v2587 = vadd.f32 0.0, %v2586
  %v2588 = vpop.f32.mrb[0].mxu0
  %2589 = vmatprep.mubr.f32.mxu0 0.0
  %2590 = vmatmul.mubr.f32.gmra.mrb[0].mxu0 %v2380
  %v2591 = vpop.f32.mrb[0].mxu0
  %v2592 = vadd.f32 0.0, %v2591
  %v2593 = vpop.f32.mrb[0].mxu0
  %2594 = vmatprep.mubr.f32.mxu0 0.0
  %2595 = vmatmul.mubr.f32.gmra.mrb[0].mxu0 %v2383
  %v2596 = vpop.f32.mrb[0].mxu0
  %v2597 = vadd.f32 0.0, %v2596
  %v2598 = vpop.f32.mrb[0].mxu0
  %2599 = vmatprep.mubr.f32.mxu0 0.0
  %2600 = vmatmul.mubr.f32.gmra.mrb[0].mxu0 %v2386
  %v2601 = vpop.f32.mrb[0].mxu0
  %v2602 = vadd.f32 0.0, %v2601
  %v2603 = vpop.f32.mrb[0].mxu0
  %2604 = vmatprep.mubr.f32.mxu0 0.0
  %2605 = vmatmul.mubr.f32.gmra.mrb[0].mxu0 %v2389
  %v2606 = vpop.f32.mrb[0].mxu0
  %v2607 = vadd.f32 0.0, %v2606
  %v2608 = vpop.f32.mrb[0].mxu0
  %2609 = vmatprep.mubr.f32.mxu0 0.0
  %2610 = vmatmul.mubr.f32.gmra.mrb[0].mxu0 %v2392
  %v2611 = vpop.f32.mrb[0].mxu0
  %v2612 = vadd.f32 0.0, %v2611
  %v2613 = vpop.f32.mrb[0].mxu0
  %2614 = vmatprep.mubr.f32.mxu0 0.0
  %2615 = vmatmul.mubr.f32.gmra.mrb[0].mxu0 %v2395
  %v2616 = vpop.f32.mrb[0].mxu0
  %v2617 = vadd.f32 0.0, %v2616
  %v2618 = vpop.f32.mrb[0].mxu0
  %2619 = vmatprep.mubr.f32.mxu0 0.0
  %2620 = vmatmul.mubr.f32.gmra.mrb[0].mxu0 %v2398
  %v2621 = vpop.f32.mrb[0].mxu0
  %v2622 = vadd.f32 0.0, %v2621
  %v2623 = vpop.f32.mrb[0].mxu0
  %2624 = vdwg.mxu0
  %v2625 = vlaneseq
  %v2626 = vshrl.u32 %v2625, 7
  %v2627 = vadd.s32 %v2626, 8
  %v2628 = vadd.s32 %v2626, 16
  %v2629 = vadd.s32 %v2626, 24
  %v2630 = vadd.s32 %v2626, 32
  %v2631 = vadd.s32 %v2626, 40
  %v2632 = vadd.s32 %v2626, 48
  %v2633 = vadd.s32 %v2626, 56
  %v2634 = vadd.s32 %v2626, 64
  %v2635 = vadd.s32 %v2626, 72
  %v2636 = vadd.s32 %v2626, 80
  %v2637 = vadd.s32 %v2626, 88
  %v2638 = vadd.s32 %v2626, 96
  %v2639 = vadd.s32 %v2626, 104
  %v2640 = vadd.s32 %v2626, 112
  %v2641 = vadd.s32 %v2626, 120
  %v2642 = vadd.s32 %v2626, 128
  %v2643 = vadd.s32 %v2626, 136
  %v2644 = vadd.s32 %v2626, 144
  %v2645 = vadd.s32 %v2626, 152
  %v2646 = vadd.s32 %v2626, 160
  %v2647 = vadd.s32 %v2626, 168
  %v2648 = vadd.s32 %v2626, 176
  %v2649 = vadd.s32 %v2626, 184
  %v2650 = vadd.s32 %v2626, 192
  %v2651 = vadd.s32 %v2626, 200
  %v2652 = vadd.s32 %v2626, 208
  %v2653 = vadd.s32 %v2626, 216
  %v2654 = vadd.s32 %v2626, 224
  %v2655 = vadd.s32 %v2626, 232
  %v2656 = vadd.s32 %v2626, 240
  %v2657 = vadd.s32 %v2626, 248
  %v2658 = vshra.s32 %v2626, 5
  %v2659 = vshra.s32 %v2627, 5
  %v2660 = vshra.s32 %v2628, 5
  %v2661 = vshra.s32 %v2629, 5
  %v2662 = vshra.s32 %v2630, 5
  %v2663 = vshra.s32 %v2631, 5
  %v2664 = vshra.s32 %v2632, 5
  %v2665 = vshra.s32 %v2633, 5
  %v2666 = vshra.s32 %v2634, 5
  %v2667 = vshra.s32 %v2635, 5
  %v2668 = vshra.s32 %v2636, 5
  %v2669 = vshra.s32 %v2637, 5
  %v2670 = vshra.s32 %v2638, 5
  %v2671 = vshra.s32 %v2639, 5
  %v2672 = vshra.s32 %v2640, 5
  %v2673 = vshra.s32 %v2641, 5
  %v2674 = vshra.s32 %v2642, 5
  %v2675 = vshra.s32 %v2643, 5
  %v2676 = vshra.s32 %v2644, 5
  %v2677 = vshra.s32 %v2645, 5
  %v2678 = vshra.s32 %v2646, 5
  %v2679 = vshra.s32 %v2647, 5
  %v2680 = vshra.s32 %v2648, 5
  %v2681 = vshra.s32 %v2649, 5
  %v2682 = vshra.s32 %v2650, 5
  %v2683 = vshra.s32 %v2651, 5
  %v2684 = vshra.s32 %v2652, 5
  %v2685 = vshra.s32 %v2653, 5
  %v2686 = vshra.s32 %v2654, 5
  %v2687 = vshra.s32 %v2655, 5
  %v2688 = vshra.s32 %v2656, 5
  %v2689 = vshra.s32 %v2657, 5
  %v2690 = vlaneseq
  %v2691 = vand.u32 %v2690, 127
  %v2692 = vand.u32 %v2691, 7
  %vm2693 = vcmp.eq.s32.totalorder %v2658, %v2692
  %vm2694 = vcmp.eq.s32.totalorder %v2659, %v2692
  %vm2695 = vcmp.eq.s32.totalorder %v2660, %v2692
  %vm2696 = vcmp.eq.s32.totalorder %v2661, %v2692
  %vm2697 = vcmp.eq.s32.totalorder %v2662, %v2692
  %vm2698 = vcmp.eq.s32.totalorder %v2663, %v2692
  %vm2699 = vcmp.eq.s32.totalorder %v2664, %v2692
  %vm2700 = vcmp.eq.s32.totalorder %v2665, %v2692
  %vm2701 = vcmp.eq.s32.totalorder %v2666, %v2692
  %vm2702 = vcmp.eq.s32.totalorder %v2667, %v2692
  %vm2703 = vcmp.eq.s32.totalorder %v2668, %v2692
  %vm2704 = vcmp.eq.s32.totalorder %v2669, %v2692
  %vm2705 = vcmp.eq.s32.totalorder %v2670, %v2692
  %vm2706 = vcmp.eq.s32.totalorder %v2671, %v2692
  %vm2707 = vcmp.eq.s32.totalorder %v2672, %v2692
  %vm2708 = vcmp.eq.s32.totalorder %v2673, %v2692
  %vm2709 = vcmp.eq.s32.totalorder %v2674, %v2692
  %vm2710 = vcmp.eq.s32.totalorder %v2675, %v2692
  %vm2711 = vcmp.eq.s32.totalorder %v2676, %v2692
  %vm2712 = vcmp.eq.s32.totalorder %v2677, %v2692
  %vm2713 = vcmp.eq.s32.totalorder %v2678, %v2692
  %vm2714 = vcmp.eq.s32.totalorder %v2679, %v2692
  %vm2715 = vcmp.eq.s32.totalorder %v2680, %v2692
  %vm2716 = vcmp.eq.s32.totalorder %v2681, %v2692
  %vm2717 = vcmp.eq.s32.totalorder %v2682, %v2692
  %vm2718 = vcmp.eq.s32.totalorder %v2683, %v2692
  %vm2719 = vcmp.eq.s32.totalorder %v2684, %v2692
  %vm2720 = vcmp.eq.s32.totalorder %v2685, %v2692
  %vm2721 = vcmp.eq.s32.totalorder %v2686, %v2692
  %vm2722 = vcmp.eq.s32.totalorder %v2687, %v2692
  %vm2723 = vcmp.eq.s32.totalorder %v2688, %v2692
  %vm2724 = vcmp.eq.s32.totalorder %v2689, %v2692
  %v2725 = vsel %vm2693, %v2467, 0.0
  %v2726 = vsel %vm2694, %v2472, 0.0
  %v2727 = vsel %vm2695, %v2477, 0.0
  %v2728 = vsel %vm2696, %v2482, 0.0
  %v2729 = vsel %vm2697, %v2487, 0.0
  %v2730 = vsel %vm2698, %v2492, 0.0
  %v2731 = vsel %vm2699, %v2497, 0.0
  %v2732 = vsel %vm2700, %v2502, 0.0
  %v2733 = vsel %vm2701, %v2507, 0.0
  %v2734 = vsel %vm2702, %v2512, 0.0
  %v2735 = vsel %vm2703, %v2517, 0.0
  %v2736 = vsel %vm2704, %v2522, 0.0
  %v2737 = vsel %vm2705, %v2527, 0.0
  %v2738 = vsel %vm2706, %v2532, 0.0
  %v2739 = vsel %vm2707, %v2537, 0.0
  %v2740 = vsel %vm2708, %v2542, 0.0
  %v2741 = vsel %vm2709, %v2547, 0.0
  %v2742 = vsel %vm2710, %v2552, 0.0
  %v2743 = vsel %vm2711, %v2557, 0.0
  %v2744 = vsel %vm2712, %v2562, 0.0
  %v2745 = vsel %vm2713, %v2567, 0.0
  %v2746 = vsel %vm2714, %v2572, 0.0
  %v2747 = vsel %vm2715, %v2577, 0.0
  %v2748 = vsel %vm2716, %v2582, 0.0
  %v2749 = vsel %vm2717, %v2587, 0.0
  %v2750 = vsel %vm2718, %v2592, 0.0
  %v2751 = vsel %vm2719, %v2597, 0.0
  %v2752 = vsel %vm2720, %v2602, 0.0
  %v2753 = vsel %vm2721, %v2607, 0.0
  %v2754 = vsel %vm2722, %v2612, 0.0
  %v2755 = vsel %vm2723, %v2617, 0.0
  %v2756 = vsel %vm2724, %v2622, 0.0
  %v2757 = vadd.f32 %v2725, %v2729
  %v2758 = vadd.f32 %v2726, %v2730
  %v2759 = vadd.f32 %v2727, %v2731
  %v2760 = vadd.f32 %v2728, %v2732
  %v2761 = vadd.f32 %v2757, %v2733
  %v2762 = vadd.f32 %v2758, %v2734
  %v2763 = vadd.f32 %v2759, %v2735
  %v2764 = vadd.f32 %v2760, %v2736
  %v2765 = vadd.f32 %v2761, %v2737
  %v2766 = vadd.f32 %v2762, %v2738
  %v2767 = vadd.f32 %v2763, %v2739
  %v2768 = vadd.f32 %v2764, %v2740
  %v2769 = vadd.f32 %v2765, %v2741
  %v2770 = vadd.f32 %v2766, %v2742
  %v2771 = vadd.f32 %v2767, %v2743
  %v2772 = vadd.f32 %v2768, %v2744
  %v2773 = vadd.f32 %v2769, %v2745
  %v2774 = vadd.f32 %v2770, %v2746
  %v2775 = vadd.f32 %v2771, %v2747
  %v2776 = vadd.f32 %v2772, %v2748
  %v2777 = vadd.f32 %v2773, %v2749
  %v2778 = vadd.f32 %v2774, %v2750
  %v2779 = vadd.f32 %v2775, %v2751
  %v2780 = vadd.f32 %v2776, %v2752
  %v2781 = vadd.f32 %v2777, %v2753
  %v2782 = vadd.f32 %v2778, %v2754
  %v2783 = vadd.f32 %v2779, %v2755
  %v2784 = vadd.f32 %v2780, %v2756
  %v2785 = vshra.s32 %v2626, 3
  %v2786 = vshra.s32 %v2627, 3
  %v2787 = vshra.s32 %v2628, 3
  %v2788 = vshra.s32 %v2629, 3
  %v2789 = vshra.s32 %v2630, 3
  %v2790 = vshra.s32 %v2631, 3
  %v2791 = vshra.s32 %v2632, 3
  %v2792 = vshra.s32 %v2633, 3
  %v2793 = vshra.s32 %v2634, 3
  %v2794 = vshra.s32 %v2635, 3
  %vm2795 = vcmp.eq.s32.totalorder %v2785, %v2691
  %vm2796 = vcmp.eq.s32.totalorder %v2786, %v2691
  %vm2797 = vcmp.eq.s32.totalorder %v2787, %v2691
  %vm2798 = vcmp.eq.s32.totalorder %v2788, %v2691
  %vm2799 = vcmp.eq.s32.totalorder %v2789, %v2691
  %vm2800 = vcmp.eq.s32.totalorder %v2790, %v2691
  %vm2801 = vcmp.eq.s32.totalorder %v2791, %v2691
  %vm2802 = vcmp.eq.s32.totalorder %v2792, %v2691
  %vm2803 = vcmp.eq.s32.totalorder %v2793, %v2691
  %vm2804 = vcmp.eq.s32.totalorder %v2794, %v2691
  %v2805 = vsel %vm2795, 1, 0
  %v2806 = vsel %vm2796, 1, 0
  %v2807 = vsel %vm2797, 1, 0
  %v2808 = vsel %vm2798, 1, 0
  %v2809 = vsel %vm2799, 1, 0
  %v2810 = vsel %vm2800, 1, 0
  %v2811 = vsel %vm2801, 1, 0
  %v2812 = vsel %vm2802, 1, 0
  %v2813 = vsel %vm2803, 1, 0
  %v2814 = vsel %vm2804, 1, 0
  %v2815 = vcvt.s32.f32 %v2805
  %v2816 = vcvt.s32.f32 %v2806
  %v2817 = vcvt.s32.f32 %v2807
  %v2818 = vcvt.s32.f32 %v2808
  %v2819 = vcvt.s32.f32 %v2809
  %v2820 = vcvt.s32.f32 %v2810
  %v2821 = vcvt.s32.f32 %v2811
  %v2822 = vcvt.s32.f32 %v2812
  %v2823 = vcvt.s32.f32 %v2813
  %v2824 = vcvt.s32.f32 %v2814
  %2826 = vset.pattern.permute.xlu0 0
  %2827 = vperm.xlu0 %2826, %v2268
  %v2828 = vpop.permute.xlu0 %2827
  %2831 = vset.pattern.permute.xlu0 0
  %2832 = vperm.xlu0 %2831, %v2269
  %v2833 = vpop.permute.xlu0 %2832
  %2836 = vset.pattern.permute.xlu0 0
  %2837 = vperm.xlu0 %2836, %v2270
  %v2838 = vpop.permute.xlu0 %2837
  %2841 = vset.pattern.permute.xlu0 0
  %2842 = vperm.xlu0 %2841, %v2271
  %v2843 = vpop.permute.xlu0 %2842
  %v2846 = vsel %vm157, %v2781, 0
  %v2849 = vsel %vm157, %v2782, 0
  %v2852 = vsel %vm157, %v2783, 0
  %v2855 = vsel %vm157, %v2784, 0
  %2857 = vmatprep.subr.mxu0 0.0
  %2858 = vmatpush1.msra.mxu0 %v2815
  %2859 = vmatprep.subr.mxu0 0.0
  %2860 = vmatpush1.msra.mxu0 %v2816
  %2861 = vmatprep.subr.mxu0 0.0
  %2862 = vmatpush1.msra.mxu0 %v2817
  %2863 = vmatprep.subr.mxu0 0.0
  %2864 = vmatpush1.msra.mxu0 %v2818
  %2865 = vmatprep.subr.mxu0 0.0
  %2866 = vmatpush1.msra.mxu0 %v2819
  %2867 = vmatprep.subr.mxu0 0.0
  %2868 = vmatpush1.msra.mxu0 %v2820
  %2869 = vmatprep.subr.mxu0 0.0
  %2870 = vmatpush1.msra.mxu0 %v2821
  %2871 = vmatprep.subr.mxu0 0.0
  %2872 = vmatpush1.msra.mxu0 %v2822
  %2873 = vmatprep.subr.mxu0 0.0
  %2874 = vmatpush1.msra.mxu0 %v2823
  %2875 = vmatprep.subr.mxu0 0.0
  %2876 = vmatpush1.msra.mxu0 %v2824
  %2877 = vmatprep.subr.mxu0 0.0
  %2878 = vmatpush1.msra.mxu0 0.0
  %2879 = vmatprep.subr.mxu0 0.0
  %2880 = vmatpush1.msra.mxu0 0.0
  %2881 = vmatprep.subr.mxu0 0.0
  %2882 = vmatpush1.msra.mxu0 0.0
  %2883 = vmatprep.subr.mxu0 0.0
  %2884 = vmatpush1.msra.mxu0 0.0
  %2885 = vmatprep.subr.mxu0 0.0
  %2886 = vmatpush1.msra.mxu0 0.0
  %2887 = vmatprep.subr.mxu0 0.0
  %2888 = vmatpush1.msra.mxu0 0.0
  %2889 = vmatprep.subr.mxu0 0.0
  %2890 = vmatpush1.msra.mxu0 0.0
  %2891 = vmatprep.subr.mxu0 0.0
  %2892 = vmatpush1.msra.mxu0 0.0
  %2893 = vmatprep.subr.mxu0 0.0
  %2894 = vmatpush1.msra.mxu0 0.0
  %2895 = vmatprep.subr.mxu0 0.0
  %2896 = vmatpush1.msra.mxu0 0.0
  %2897 = vmatprep.subr.mxu0 0.0
  %2898 = vmatpush1.msra.mxu0 0.0
  %2899 = vmatprep.subr.mxu0 0.0
  %2900 = vmatpush1.msra.mxu0 0.0
  %2901 = vmatprep.subr.mxu0 0.0
  %2902 = vmatpush1.msra.mxu0 0.0
  %2903 = vmatprep.subr.mxu0 0.0
  %2904 = vmatpush1.msra.mxu0 0.0
  %2905 = vmatprep.subr.mxu0 0.0
  %2906 = vmatpush1.msra.mxu0 0.0
  %2907 = vmatprep.subr.mxu0 0.0
  %2908 = vmatpush1.msra.mxu0 0.0
  %2909 = vmatprep.subr.mxu0 0.0
  %2910 = vmatpush1.msra.mxu0 0.0
  %2911 = vmatprep.subr.mxu0 0.0
  %2912 = vmatpush1.msra.mxu0 0.0
  %2913 = vmatprep.subr.mxu0 0.0
  %2914 = vmatpush1.msra.mxu0 0.0
  %2915 = vmatprep.subr.mxu0 0.0
  %2916 = vmatpush1.msra.mxu0 0.0
  %2917 = vmatprep.subr.mxu0 0.0
  %2918 = vmatpush1.msra.mxu0 0.0
  %2919 = vmatprep.subr.mxu0 0.0
  %2920 = vmatpush1.msra.mxu0 0.0
  %2921 = vmatprep.mubr.f32.mxu0 0.0
  %2922 = vmatmul.mubr.f32.gmra.mrb[0].mxu0 %v2846
  %v2923 = vpop.f32.mrb[0].mxu0
  %v2924 = vadd.f32 %v2828, %v2923
  %v2925 = vpop.f32.mrb[0].mxu0
  %2926 = vmatprep.mubr.f32.mxu0 0.0
  %2927 = vmatmul.mubr.f32.gmra.mrb[0].mxu0 %v2849
  %v2928 = vpop.f32.mrb[0].mxu0
  %v2929 = vadd.f32 %v2833, %v2928
  %v2930 = vpop.f32.mrb[0].mxu0
  %2931 = vmatprep.mubr.f32.mxu0 0.0
  %2932 = vmatmul.mubr.f32.gmra.mrb[0].mxu0 %v2852
  %v2933 = vpop.f32.mrb[0].mxu0
  %v2934 = vadd.f32 %v2838, %v2933
  %v2935 = vpop.f32.mrb[0].mxu0
  %2936 = vmatprep.mubr.f32.mxu0 0.0
  %2937 = vmatmul.mubr.f32.gmra.mrb[0].mxu0 %v2855
  %v2938 = vpop.f32.mrb[0].mxu0
  %v2939 = vadd.f32 %v2843, %v2938
  %v2940 = vpop.f32.mrb[0].mxu0
  %2941 = vdwg.mxu0
  %v2942 = vld [vmem:[%s1 + $0xc0] sm:$0xff]
  %v2943 = vld [vmem:[%s1 + $0xc8] sm:$0xff]
  %v2944 = vld [vmem:[%s1 + $0xd0] sm:$0xff]
  %v2945 = vld [vmem:[%s1 + $0xd8] sm:$0xff]
  %v2946 = vld [vmem:[%s1 + $0xe0] sm:$0xff]
  %v2947 = vld [vmem:[%s1 + $0xe8] sm:$0xff]
  %v2948 = vld [vmem:[%s1 + $0xf0] sm:$0xff]
  %v2949 = vld [vmem:[%s1 + $0xf8] sm:$0xff]
  %v2950 = vld [vmem:[%s1 + $0x100] sm:$0xff]
  %v2951 = vld [vmem:[%s1 + $0x108] sm:$0xff]
  %v2952 = vld [vmem:[%s1 + $0x110] sm:$0xff]
  %v2953 = vld [vmem:[%s1 + $0x118] sm:$0xff]
  %v2954 = vld [vmem:[%s1 + $0x2c0] sm:$0xff]
  %v2955 = vld [vmem:[%s1 + $0x2c8] sm:$0xff]
  %v2956 = vld [vmem:[%s1 + $0x2d0] sm:$0xff]
  %v2957 = vld [vmem:[%s1 + $0x2d8] sm:$0xff]
  %v2958 = vld [vmem:[%s1 + $0x2e0] sm:$0xff]
  %v2959 = vld [vmem:[%s1 + $0x2e8] sm:$0xff]
  %v2960 = vld [vmem:[%s1 + $0x2f0] sm:$0xff]
  %v2961 = vld [vmem:[%s1 + $0x2f8] sm:$0xff]
  %v2962 = vld [vmem:[%s1 + $0x300] sm:$0xff]
  %v2963 = vld [vmem:[%s1 + $0x308] sm:$0xff]
  %v2964 = vld [vmem:[%s1 + $0x310] sm:$0xff]
  %v2965 = vld [vmem:[%s1 + $0x318] sm:$0xff]
  %v2966 = vld [vmem:[%s1 + $0x320] sm:$0xff]
  %v2967 = vld [vmem:[%s1 + $0x328] sm:$0xff]
  %v2968 = vld [vmem:[%s1 + $0x330] sm:$0xff]
  %v2969 = vld [vmem:[%s1 + $0x338] sm:$0xff]
  %vm2970 = vcmask 80896
  %v2971 = vsel %vm2970, %v2924, 0.0
  %v2972 = vsel %vm2970, %v2929, 0.0
  %v2973 = vadd.f32 %v2971, %v2972
  %v2974 = vsel %vm2970, %v2934, 0.0
  %v2975 = vadd.f32 %v2973, %v2974
  %v2976 = vsel %vm2970, %v2939, 0.0
  %v2977 = vadd.f32 %v2975, %v2976
  %v2978 = vrot.slane %v2977, 4
  %v2979 = vadd.f32 %v2977, %v2978
  %v2980 = vrot.slane %v2979, 2
  %v2981 = vadd.f32 %v2979, %v2980
  %v2982 = vrot.slane %v2981, 1
  %v2983 = vadd.f32 %v2981, %v2982
  %v2984 = vmul.f32 %v2983, %v171
  %v2985 = vsub.f32 %v2924, %v2984
  %v2986 = vsub.f32 %v2929, %v2984
  %v2987 = vsub.f32 %v2934, %v2984
  %v2988 = vsub.f32 %v2939, %v2984
  %v2989 = vmul.f32 %v2985, %v2985
  %v2990 = vmul.f32 %v2986, %v2986
  %v2991 = vmul.f32 %v2987, %v2987
  %v2992 = vmul.f32 %v2988, %v2988
  %v2993 = vsel %vm2970, %v2989, 0.0
  %v2994 = vsel %vm2970, %v2990, 0.0
  %v2995 = vadd.f32 %v2993, %v2994
  %v2996 = vsel %vm2970, %v2991, 0.0
  %v2997 = vadd.f32 %v2995, %v2996
  %v2998 = vsel %vm2970, %v2992, 0.0
  %v2999 = vadd.f32 %v2997, %v2998
  %v3000 = vrot.slane %v2999, 4
  %v3001 = vadd.f32 %v2999, %v3000
  %v3002 = vrot.slane %v3001, 2
  %v3003 = vadd.f32 %v3001, %v3002
  %v3004 = vrot.slane %v3003, 1
  %v3005 = vadd.f32 %v3003, %v3004
  %v3006 = vmul.f32 %v3005, %v171
  %v3007 = vadd.f32 %v3006, 1e-05
  %v3008 = vrsqrt.pop %v3007
  %v3009 = vmul.f32 %v2985, %v3008
  %v3010 = vmul.f32 %v2986, %v3008
  %v3011 = vmul.f32 %v2987, %v3008
  %v3012 = vmul.f32 %v2988, %v3008
  %3013 = vset.pattern.permute.xlu0 1
  %3014 = vperm.xlu0 %3013, %v2268
  %v3015 = vpop.permute.xlu0 %3014
  %3017 = vset.pattern.permute.xlu0 1
  %3018 = vperm.xlu0 %3017, %v2269
  %v3019 = vpop.permute.xlu0 %3018
  %3021 = vset.pattern.permute.xlu0 1
  %3022 = vperm.xlu0 %3021, %v2270
  %v3023 = vpop.permute.xlu0 %3022
  %3025 = vset.pattern.permute.xlu0 1
  %3026 = vperm.xlu0 %3025, %v2271
  %v3027 = vpop.permute.xlu0 %3026
  %v3029 = vmul.f32 %v3009, %v3015
  %v3030 = vmul.f32 %v3010, %v3019
  %v3031 = vmul.f32 %v3011, %v3023
  %v3032 = vmul.f32 %v3012, %v3027
  %3033 = vset.pattern.permute.xlu0 2
  %3034 = vperm.xlu0 %3033, %v2268
  %v3035 = vpop.permute.xlu0 %3034
  %3037 = vset.pattern.permute.xlu0 2
  %3038 = vperm.xlu0 %3037, %v2269
  %v3039 = vpop.permute.xlu0 %3038
  %3041 = vset.pattern.permute.xlu0 2
  %3042 = vperm.xlu0 %3041, %v2270
  %v3043 = vpop.permute.xlu0 %3042
  %3045 = vset.pattern.permute.xlu0 2
  %3046 = vperm.xlu0 %3045, %v2271
  %v3047 = vpop.permute.xlu0 %3046
  %v3049 = vadd.f32 %v3029, %v3035
  %v3050 = vadd.f32 %v3030, %v3039
  %v3051 = vadd.f32 %v3031, %v3043
  %v3052 = vadd.f32 %v3032, %v3047
  %v3053 = vlaneseq
  %v3054 = vshrl.u32 %v3053, 7
  %v3055 = vsub.s32 2, %v3054
  %v3056 = vrot.slane %v2955, %v3055
  %v3058 = vsel %vm2970, %v3049, 0
  %v3061 = vsel %vm2970, %v3050, 0
  %v3064 = vsel %vm2970, %v3051, 0
  %v3067 = vsel %vm2970, %v3052, 0
  %vm3069 = vcmask 1041408
  %v3071 = vsel %vm3069, %v2955, 0
  %3073 = vmatprep.subr.mxu0 0.0
  %3074 = vmatpush1.msra.mxu0 %v2954
  %3075 = vmatprep.subr.mxu0 0.0
  %3076 = vmatpush1.msra.mxu0 %v3071
  %3077 = vmatprep.subr.mxu0 0.0
  %3078 = vmatpush1.msra.mxu0 0.0
  %3079 = vmatprep.subr.mxu0 0.0
  %3080 = vmatpush1.msra.mxu0 0.0
  %3081 = vmatprep.subr.mxu0 0.0
  %3082 = vmatpush1.msra.mxu0 0.0
  %3083 = vmatprep.subr.mxu0 0.0
  %3084 = vmatpush1.msra.mxu0 0.0
  %3085 = vmatprep.subr.mxu0 0.0
  %3086 = vmatpush1.msra.mxu0 0.0
  %3087 = vmatprep.subr.mxu0 0.0
  %3088 = vmatpush1.msra.mxu0 0.0
  %3089 = vmatprep.subr.mxu0 0.0
  %3090 = vmatpush1.msra.mxu0 0.0
  %3091 = vmatprep.subr.mxu0 0.0
  %3092 = vmatpush1.msra.mxu0 0.0
  %3093 = vmatprep.subr.mxu0 0.0
  %3094 = vmatpush1.msra.mxu0 0.0
  %3095 = vmatprep.subr.mxu0 0.0
  %3096 = vmatpush1.msra.mxu0 0.0
  %3097 = vmatprep.subr.mxu0 0.0
  %3098 = vmatpush1.msra.mxu0 0.0
  %3099 = vmatprep.subr.mxu0 0.0
  %3100 = vmatpush1.msra.mxu0 0.0
  %3101 = vmatprep.subr.mxu0 0.0
  %3102 = vmatpush1.msra.mxu0 0.0
  %3103 = vmatprep.subr.mxu0 0.0
  %3104 = vmatpush1.msra.mxu0 0.0
  %3105 = vmatprep.subr.mxu0 0.0
  %3106 = vmatpush1.msra.mxu0 0.0
  %3107 = vmatprep.subr.mxu0 0.0
  %3108 = vmatpush1.msra.mxu0 0.0
  %3109 = vmatprep.subr.mxu0 0.0
  %3110 = vmatpush1.msra.mxu0 0.0
  %3111 = vmatprep.subr.mxu0 0.0
  %3112 = vmatpush1.msra.mxu0 0.0
  %3113 = vmatprep.subr.mxu0 0.0
  %3114 = vmatpush1.msra.mxu0 0.0
  %3115 = vmatprep.subr.mxu0 0.0
  %3116 = vmatpush1.msra.mxu0 0.0
  %3117 = vmatprep.subr.mxu0 0.0
  %3118 = vmatpush1.msra.mxu0 0.0
  %3119 = vmatprep.subr.mxu0 0.0
  %3120 = vmatpush1.msra.mxu0 0.0
  %3121 = vmatprep.subr.mxu0 0.0
  %3122 = vmatpush1.msra.mxu0 0.0
  %3123 = vmatprep.subr.mxu0 0.0
  %3124 = vmatpush1.msra.mxu0 0.0
  %3125 = vmatprep.subr.mxu0 0.0
  %3126 = vmatpush1.msra.mxu0 0.0
  %3127 = vmatprep.subr.mxu0 0.0
  %3128 = vmatpush1.msra.mxu0 0.0
  %3129 = vmatprep.subr.mxu0 0.0
  %3130 = vmatpush1.msra.mxu0 0.0
  %3131 = vmatprep.subr.mxu0 0.0
  %3132 = vmatpush1.msra.mxu0 0.0
  %3133 = vmatprep.subr.mxu0 0.0
  %3134 = vmatpush1.msra.mxu0 0.0
  %3135 = vmatprep.subr.mxu0 0.0
  %3136 = vmatpush1.msra.mxu0 0.0
  %3137 = vmatprep.mubr.f32.mxu0 0.0
  %3138 = vmatmul.mubr.f32.gmra.mrb[0].mxu0 %v3058
  %v3139 = vpop.f32.mrb[0].mxu0
  %v3140 = vadd.f32 %v3056, %v3139
  %v3141 = vpop.f32.mrb[0].mxu0
  %3142 = vmatprep.mubr.f32.mxu0 0.0
  %3143 = vmatmul.mubr.f32.gmra.mrb[0].mxu0 %v3061
  %v3144 = vpop.f32.mrb[0].mxu0
  %v3145 = vadd.f32 %v3056, %v3144
  %v3146 = vpop.f32.mrb[0].mxu0
  %3147 = vmatprep.mubr.f32.mxu0 0.0
  %3148 = vmatmul.mubr.f32.gmra.mrb[0].mxu0 %v3064
  %v3149 = vpop.f32.mrb[0].mxu0
  %v3150 = vadd.f32 %v3056, %v3149
  %v3151 = vpop.f32.mrb[0].mxu0
  %3152 = vmatprep.mubr.f32.mxu0 0.0
  %3153 = vmatmul.mubr.f32.gmra.mrb[0].mxu0 %v3067
  %v3154 = vpop.f32.mrb[0].mxu0
  %v3155 = vadd.f32 %v3056, %v3154
  %v3156 = vpop.f32.mrb[0].mxu0
  %3157 = vdwg.mxu0
  %v3158 = vmul.f32 %v3140, 0.5
  %v3159 = vmul.f32 %v3145, 0.5
  %v3160 = vmul.f32 %v3150, 0.5
  %v3161 = vmul.f32 %v3155, 0.5
  %v3162 = vmul.f32 %v3140, 0.044715
  %v3163 = vmul.f32 %v3145, 0.044715
  %v3164 = vmul.f32 %v3150, 0.044715
  %v3165 = vmul.f32 %v3155, 0.044715
  %v3166 = vmul.f32 %v3162, %v3140
  %v3167 = vmul.f32 %v3163, %v3145
  %v3168 = vmul.f32 %v3164, %v3150
  %v3169 = vmul.f32 %v3165, %v3155
  %v3170 = vmul.f32 %v3166, %v3140
  %v3171 = vmul.f32 %v3167, %v3145
  %v3172 = vmul.f32 %v3168, %v3150
  %v3173 = vmul.f32 %v3169, %v3155
  %v3174 = vadd.f32 %v3140, %v3170
  %v3175 = vadd.f32 %v3145, %v3171
  %v3176 = vadd.f32 %v3150, %v3172
  %v3177 = vadd.f32 %v3155, %v3173
  %v3178 = vmul.f32 %v3174, 0.7978846
  %v3179 = vmul.f32 %v3175, 0.7978846
  %v3180 = vmul.f32 %v3176, 0.7978846
  %v3181 = vmul.f32 %v3177, 0.7978846
  %v3182 = vtanh.pop %v3178
  %v3183 = vtanh.pop %v3179
  %v3184 = vtanh.pop %v3180
  %v3185 = vtanh.pop %v3181
  %v3186 = vadd.f32 %v3182, 1.0
  %v3187 = vadd.f32 %v3183, 1.0
  %v3188 = vadd.f32 %v3184, 1.0
  %v3189 = vadd.f32 %v3185, 1.0
  %v3190 = vmul.f32 %v3158, %v3186
  %v3191 = vmul.f32 %v3159, %v3187
  %v3192 = vmul.f32 %v3160, %v3188
  %v3193 = vmul.f32 %v3161, %v3189
  %vm3194 = vcmask 326656
  %v3196 = vsel %vm3194, %v3190, 0
  %v3199 = vsel %vm3194, %v3191, 0
  %v3202 = vsel %vm3194, %v3192, 0
  %v3205 = vsel %vm3194, %v3193, 0
  %3207 = vmatprep.subr.mxu0 0.0
  %3208 = vmatpush1.msra.mxu0 %v2958
  %3209 = vmatprep.subr.mxu0 0.0
  %3210 = vmatpush1.msra.mxu0 %v2959
  %3211 = vmatprep.subr.mxu0 0.0
  %3212 = vmatpush1.msra.mxu0 %v2960
  %3213 = vmatprep.subr.mxu0 0.0
  %3214 = vmatpush1.msra.mxu0 %v2961
  %3215 = vmatprep.subr.mxu0 0.0
  %3216 = vmatpush1.msra.mxu0 %v2962
  %3217 = vmatprep.subr.mxu0 0.0
  %3218 = vmatpush1.msra.mxu0 0.0
  %3219 = vmatprep.subr.mxu0 0.0
  %3220 = vmatpush1.msra.mxu0 0.0
  %3221 = vmatprep.subr.mxu0 0.0
  %3222 = vmatpush1.msra.mxu0 0.0
  %3223 = vmatprep.subr.mxu0 0.0
  %3224 = vmatpush1.msra.mxu0 0.0
  %3225 = vmatprep.subr.mxu0 0.0
  %3226 = vmatpush1.msra.mxu0 0.0
  %3227 = vmatprep.subr.mxu0 0.0
  %3228 = vmatpush1.msra.mxu0 0.0
  %3229 = vmatprep.subr.mxu0 0.0
  %3230 = vmatpush1.msra.mxu0 0.0
  %3231 = vmatprep.subr.mxu0 0.0
  %3232 = vmatpush1.msra.mxu0 0.0
  %3233 = vmatprep.subr.mxu0 0.0
  %3234 = vmatpush1.msra.mxu0 0.0
  %3235 = vmatprep.subr.mxu0 0.0
  %3236 = vmatpush1.msra.mxu0 0.0
  %3237 = vmatprep.subr.mxu0 0.0
  %3238 = vmatpush1.msra.mxu0 0.0
  %3239 = vmatprep.subr.mxu0 0.0
  %3240 = vmatpush1.msra.mxu0 0.0
  %3241 = vmatprep.subr.mxu0 0.0
  %3242 = vmatpush1.msra.mxu0 0.0
  %3243 = vmatprep.subr.mxu0 0.0
  %3244 = vmatpush1.msra.mxu0 0.0
  %3245 = vmatprep.subr.mxu0 0.0
  %3246 = vmatpush1.msra.mxu0 0.0
  %3247 = vmatprep.subr.mxu0 0.0
  %3248 = vmatpush1.msra.mxu0 0.0
  %3249 = vmatprep.subr.mxu0 0.0
  %3250 = vmatpush1.msra.mxu0 0.0
  %3251 = vmatprep.subr.mxu0 0.0
  %3252 = vmatpush1.msra.mxu0 0.0
  %3253 = vmatprep.subr.mxu0 0.0
  %3254 = vmatpush1.msra.mxu0 0.0
  %3255 = vmatprep.subr.mxu0 0.0
  %3256 = vmatpush1.msra.mxu0 0.0
  %3257 = vmatprep.subr.mxu0 0.0
  %3258 = vmatpush1.msra.mxu0 0.0
  %3259 = vmatprep.subr.mxu0 0.0
  %3260 = vmatpush1.msra.mxu0 0.0
  %3261 = vmatprep.subr.mxu0 0.0
  %3262 = vmatpush1.msra.mxu0 0.0
  %3263 = vmatprep.subr.mxu0 0.0
  %3264 = vmatpush1.msra.mxu0 0.0
  %3265 = vmatprep.subr.mxu0 0.0
  %3266 = vmatpush1.msra.mxu0 0.0
  %3267 = vmatprep.subr.mxu0 0.0
  %3268 = vmatpush1.msra.mxu0 0.0
  %3269 = vmatprep.subr.mxu0 0.0
  %3270 = vmatpush1.msra.mxu0 0.0
  %3271 = vmatprep.mubr.f32.mxu0 0.0
  %3272 = vmatmul.mubr.f32.gmra.mrb[0].mxu0 %v3196
  %v3273 = vpop.f32.mrb[0].mxu0
  %v3274 = vadd.f32 0.0, %v3273
  %v3275 = vpop.f32.mrb[0].mxu0
  %3276 = vmatprep.mubr.f32.mxu0 0.0
  %3277 = vmatmul.mubr.f32.gmra.mrb[0].mxu0 %v3199
  %v3278 = vpop.f32.mrb[0].mxu0
  %v3279 = vadd.f32 0.0, %v3278
  %v3280 = vpop.f32.mrb[0].mxu0
  %3281 = vmatprep.mubr.f32.mxu0 0.0
  %3282 = vmatmul.mubr.f32.gmra.mrb[0].mxu0 %v3202
  %v3283 = vpop.f32.mrb[0].mxu0
  %v3284 = vadd.f32 0.0, %v3283
  %v3285 = vpop.f32.mrb[0].mxu0
  %3286 = vmatprep.mubr.f32.mxu0 0.0
  %3287 = vmatmul.mubr.f32.gmra.mrb[0].mxu0 %v3205
  %v3288 = vpop.f32.mrb[0].mxu0
  %v3289 = vadd.f32 0.0, %v3288
  %v3290 = vpop.f32.mrb[0].mxu0
  %3291 = vdwg.mxu0
  %v3292 = vadd.f32 %v2924, %v3274
  %v3293 = vadd.f32 %v2929, %v3279
  %v3294 = vadd.f32 %v2934, %v3284
  %v3295 = vadd.f32 %v2939, %v3289
  %v3296 = vlaneseq
  %v3297 = vshrl.u32 %v3296, 7
  %v3298 = vsub.s32 0, %v3297
  %v3299 = vrot.slane %v2963, %v3298
  %v3300 = vadd.f32 %v3292, %v3299
  %v3301 = vadd.f32 %v3293, %v3299
  %v3302 = vadd.f32 %v3294, %v3299
  %v3303 = vadd.f32 %v3295, %v3299
  %v3304 = vsel %vm2970, %v3300, 0.0
  %v3305 = vsel %vm2970, %v3301, 0.0
  %v3306 = vadd.f32 %v3304, %v3305
  %v3307 = vsel %vm2970, %v3302, 0.0
  %v3308 = vadd.f32 %v3306, %v3307
  %v3309 = vsel %vm2970, %v3303, 0.0
  %v3310 = vadd.f32 %v3308, %v3309
  %v3311 = vrot.slane %v3310, 4
  %v3312 = vadd.f32 %v3310, %v3311
  %v3313 = vrot.slane %v3312, 2
  %v3314 = vadd.f32 %v3312, %v3313
  %v3315 = vrot.slane %v3314, 1
  %v3316 = vadd.f32 %v3314, %v3315
  %v3317 = vmul.f32 %v3316, %v171
  %v3318 = vsub.f32 %v3300, %v3317
  %v3319 = vsub.f32 %v3301, %v3317
  %v3320 = vsub.f32 %v3302, %v3317
  %v3321 = vsub.f32 %v3303, %v3317
  %v3322 = vmul.f32 %v3318, %v3318
  %v3323 = vmul.f32 %v3319, %v3319
  %v3324 = vmul.f32 %v3320, %v3320
  %v3325 = vmul.f32 %v3321, %v3321
  %v3326 = vsel %vm2970, %v3322, 0.0
  %v3327 = vsel %vm2970, %v3323, 0.0
  %v3328 = vadd.f32 %v3326, %v3327
  %v3329 = vsel %vm2970, %v3324, 0.0
  %v3330 = vadd.f32 %v3328, %v3329
  %v3331 = vsel %vm2970, %v3325, 0.0
  %v3332 = vadd.f32 %v3330, %v3331
  %v3333 = vrot.slane %v3332, 4
  %v3334 = vadd.f32 %v3332, %v3333
  %v3335 = vrot.slane %v3334, 2
  %v3336 = vadd.f32 %v3334, %v3335
  %v3337 = vrot.slane %v3336, 1
  %v3338 = vadd.f32 %v3336, %v3337
  %v3339 = vmul.f32 %v3338, %v171
  %v3340 = vadd.f32 %v3339, 1e-05
  %v3341 = vrsqrt.pop %v3340
  %v3342 = vmul.f32 %v3318, %v3341
  %v3343 = vmul.f32 %v3319, %v3341
  %v3344 = vmul.f32 %v3320, %v3341
  %v3345 = vmul.f32 %v3321, %v3341
  %3346 = vset.pattern.permute.xlu0 3
  %3347 = vperm.xlu0 %3346, %v2268
  %v3348 = vpop.permute.xlu0 %3347
  %3350 = vset.pattern.permute.xlu0 3
  %3351 = vperm.xlu0 %3350, %v2269
  %v3352 = vpop.permute.xlu0 %3351
  %3354 = vset.pattern.permute.xlu0 3
  %3355 = vperm.xlu0 %3354, %v2270
  %v3356 = vpop.permute.xlu0 %3355
  %3358 = vset.pattern.permute.xlu0 3
  %3359 = vperm.xlu0 %3358, %v2271
  %v3360 = vpop.permute.xlu0 %3359
  %v3362 = vmul.f32 %v3342, %v3348
  %v3363 = vmul.f32 %v3343, %v3352
  %v3364 = vmul.f32 %v3344, %v3356
  %v3365 = vmul.f32 %v3345, %v3360
  %3366 = vset.pattern.permute.xlu0 4
  %3367 = vperm.xlu0 %3366, %v2268
  %v3368 = vpop.permute.xlu0 %3367
  %3370 = vset.pattern.permute.xlu0 4
  %3371 = vperm.xlu0 %3370, %v2269
  %v3372 = vpop.permute.xlu0 %3371
  %3374 = vset.pattern.permute.xlu0 4
  %3375 = vperm.xlu0 %3374, %v2270
  %v3376 = vpop.permute.xlu0 %3375
  %3378 = vset.pattern.permute.xlu0 4
  %3379 = vperm.xlu0 %3378, %v2271
  %v3380 = vpop.permute.xlu0 %3379
  %v3382 = vadd.f32 %v3362, %v3368
  %v3383 = vadd.f32 %v3363, %v3372
  %v3384 = vadd.f32 %v3364, %v3376
  %v3385 = vadd.f32 %v3365, %v3380
  %3386 = vset.pattern.permute.xlu0 13
  %3387 = vperm.xlu0 %3386, %v2268
  %v3388 = vpop.permute.xlu0 %3387
  %3390 = vset.pattern.permute.xlu0 13
  %3391 = vperm.xlu0 %3390, %v2269
  %v3392 = vpop.permute.xlu0 %3391
  %v3395 = vsel %vm951, %v2942, 0
  %v3398 = vsel %vm951, %v2943, 0
  %3400 = vmatprep.subr.mxu0 0.0
  %3401 = vmatpush1.msra.mxu0 %v3382
  %3402 = vmatprep.subr.mxu0 0.0
  %3403 = vmatpush1.msra.mxu0 %v3383
  %3404 = vmatprep.subr.mxu0 0.0
  %3405 = vmatpush1.msra.mxu0 %v3384
  %3406 = vmatprep.subr.mxu0 0.0
  %3407 = vmatpush1.msra.mxu0 %v3385
  %3408 = vmatprep.subr.mxu0 0.0
  %3409 = vmatpush1.msra.mxu0 0.0
  %3410 = vmatprep.subr.mxu0 0.0
  %3411 = vmatpush1.msra.mxu0 0.0
  %3412 = vmatprep.subr.mxu0 0.0
  %3413 = vmatpush1.msra.mxu0 0.0
  %3414 = vmatprep.subr.mxu0 0.0
  %3415 = vmatpush1.msra.mxu0 0.0
  %3416 = vmatprep.subr.mxu0 0.0
  %3417 = vmatpush1.msra.mxu0 0.0
  %3418 = vmatprep.subr.mxu0 0.0
  %3419 = vmatpush1.msra.mxu0 0.0
  %3420 = vmatprep.subr.mxu0 0.0
  %3421 = vmatpush1.msra.mxu0 0.0
  %3422 = vmatprep.subr.mxu0 0.0
  %3423 = vmatpush1.msra.mxu0 0.0
  %3424 = vmatprep.subr.mxu0 0.0
  %3425 = vmatpush1.msra.mxu0 0.0
  %3426 = vmatprep.subr.mxu0 0.0
  %3427 = vmatpush1.msra.mxu0 0.0
  %3428 = vmatprep.subr.mxu0 0.0
  %3429 = vmatpush1.msra.mxu0 0.0
  %3430 = vmatprep.subr.mxu0 0.0
  %3431 = vmatpush1.msra.mxu0 0.0
  %3432 = vmatprep.subr.mxu0 0.0
  %3433 = vmatpush1.msra.mxu0 0.0
  %3434 = vmatprep.subr.mxu0 0.0
  %3435 = vmatpush1.msra.mxu0 0.0
  %3436 = vmatprep.subr.mxu0 0.0
  %3437 = vmatpush1.msra.mxu0 0.0
  %3438 = vmatprep.subr.mxu0 0.0
  %3439 = vmatpush1.msra.mxu0 0.0
  %3440 = vmatprep.subr.mxu0 0.0
  %3441 = vmatpush1.msra.mxu0 0.0
  %3442 = vmatprep.subr.mxu0 0.0
  %3443 = vmatpush1.msra.mxu0 0.0
  %3444 = vmatprep.subr.mxu0 0.0
  %3445 = vmatpush1.msra.mxu0 0.0
  %3446 = vmatprep.subr.mxu0 0.0
  %3447 = vmatpush1.msra.mxu0 0.0
  %3448 = vmatprep.subr.mxu0 0.0
  %3449 = vmatpush1.msra.mxu0 0.0
  %3450 = vmatprep.subr.mxu0 0.0
  %3451 = vmatpush1.msra.mxu0 0.0
  %3452 = vmatprep.subr.mxu0 0.0
  %3453 = vmatpush1.msra.mxu0 0.0
  %3454 = vmatprep.subr.mxu0 0.0
  %3455 = vmatpush1.msra.mxu0 0.0
  %3456 = vmatprep.subr.mxu0 0.0
  %3457 = vmatpush1.msra.mxu0 0.0
  %3458 = vmatprep.subr.mxu0 0.0
  %3459 = vmatpush1.msra.mxu0 0.0
  %3460 = vmatprep.subr.mxu0 0.0
  %3461 = vmatpush1.msra.mxu0 0.0
  %3462 = vmatprep.subr.mxu0 0.0
  %3463 = vmatpush1.msra.mxu0 0.0
  %3464 = vmatprep.mubr.f32.mxu0 0.0
  %3465 = vmatmul.mubr.f32.gmra.mrb[0].mxu0 %v3395
  %v3466 = vpop.f32.mrb[0].mxu0
  %v3467 = vadd.f32 %v3388, %v3466
  %v3468 = vpop.f32.mrb[0].mxu0
  %3469 = vmatprep.mubr.f32.mxu0 0.0
  %3470 = vmatmul.mubr.f32.gmra.mrb[0].mxu0 %v3398
  %v3471 = vpop.f32.mrb[0].mxu0
  %v3472 = vadd.f32 %v3392, %v3471
  %v3473 = vpop.f32.mrb[0].mxu0
  %3474 = vdwg.mxu0
  %v3475 = vmul.f32 %v3467, 0.5
  %v3476 = vmul.f32 %v3472, 0.5
  %v3477 = vmul.f32 %v3467, 0.044715
  %v3478 = vmul.f32 %v3472, 0.044715
  %v3479 = vmul.f32 %v3477, %v3467
  %v3480 = vmul.f32 %v3478, %v3472
  %v3481 = vmul.f32 %v3479, %v3467
  %v3482 = vmul.f32 %v3480, %v3472
  %v3483 = vadd.f32 %v3467, %v3481
  %v3484 = vadd.f32 %v3472, %v3482
  %v3485 = vmul.f32 %v3483, 0.7978846
  %v3486 = vmul.f32 %v3484, 0.7978846
  %v3487 = vtanh.pop %v3485
  %v3488 = vtanh.pop %v3486
  %v3489 = vadd.f32 %v3487, 1.0
  %v3490 = vadd.f32 %v3488, 1.0
  %v3491 = vmul.f32 %v3475, %v3489
  %v3492 = vmul.f32 %v3476, %v3490
  %v3494 = vsel %vm1051, %v2946, 0
  %v3497 = vsel %vm1051, %v2947, 0
  %v3500 = vsel %vm1051, %v2948, 0
  %v3503 = vsel %vm1051, %v2949, 0
  %3505 = vmatprep.subr.mxu0 0.0
  %3506 = vmatpush1.msra.mxu0 %v3491
  %3507 = vmatprep.subr.mxu0 0.0
  %3508 = vmatpush1.msra.mxu0 %v3492
  %3509 = vmatprep.subr.mxu0 0.0
  %3510 = vmatpush1.msra.mxu0 0.0
  %3511 = vmatprep.subr.mxu0 0.0
  %3512 = vmatpush1.msra.mxu0 0.0
  %3513 = vmatprep.subr.mxu0 0.0
  %3514 = vmatpush1.msra.mxu0 0.0
  %3515 = vmatprep.subr.mxu0 0.0
  %3516 = vmatpush1.msra.mxu0 0.0
  %3517 = vmatprep.subr.mxu0 0.0
  %3518 = vmatpush1.msra.mxu0 0.0
  %3519 = vmatprep.subr.mxu0 0.0
  %3520 = vmatpush1.msra.mxu0 0.0
  %3521 = vmatprep.subr.mxu0 0.0
  %3522 = vmatpush1.msra.mxu0 0.0
  %3523 = vmatprep.subr.mxu0 0.0
  %3524 = vmatpush1.msra.mxu0 0.0
  %3525 = vmatprep.subr.mxu0 0.0
  %3526 = vmatpush1.msra.mxu0 0.0
  %3527 = vmatprep.subr.mxu0 0.0
  %3528 = vmatpush1.msra.mxu0 0.0
  %3529 = vmatprep.subr.mxu0 0.0
  %3530 = vmatpush1.msra.mxu0 0.0
  %3531 = vmatprep.subr.mxu0 0.0
  %3532 = vmatpush1.msra.mxu0 0.0
  %3533 = vmatprep.subr.mxu0 0.0
  %3534 = vmatpush1.msra.mxu0 0.0
  %3535 = vmatprep.subr.mxu0 0.0
  %3536 = vmatpush1.msra.mxu0 0.0
  %3537 = vmatprep.subr.mxu0 0.0
  %3538 = vmatpush1.msra.mxu0 0.0
  %3539 = vmatprep.subr.mxu0 0.0
  %3540 = vmatpush1.msra.mxu0 0.0
  %3541 = vmatprep.subr.mxu0 0.0
  %3542 = vmatpush1.msra.mxu0 0.0
  %3543 = vmatprep.subr.mxu0 0.0
  %3544 = vmatpush1.msra.mxu0 0.0
  %3545 = vmatprep.subr.mxu0 0.0
  %3546 = vmatpush1.msra.mxu0 0.0
  %3547 = vmatprep.subr.mxu0 0.0
  %3548 = vmatpush1.msra.mxu0 0.0
  %3549 = vmatprep.subr.mxu0 0.0
  %3550 = vmatpush1.msra.mxu0 0.0
  %3551 = vmatprep.subr.mxu0 0.0
  %3552 = vmatpush1.msra.mxu0 0.0
  %3553 = vmatprep.subr.mxu0 0.0
  %3554 = vmatpush1.msra.mxu0 0.0
  %3555 = vmatprep.subr.mxu0 0.0
  %3556 = vmatpush1.msra.mxu0 0.0
  %3557 = vmatprep.subr.mxu0 0.0
  %3558 = vmatpush1.msra.mxu0 0.0
  %3559 = vmatprep.subr.mxu0 0.0
  %3560 = vmatpush1.msra.mxu0 0.0
  %3561 = vmatprep.subr.mxu0 0.0
  %3562 = vmatpush1.msra.mxu0 0.0
  %3563 = vmatprep.subr.mxu0 0.0
  %3564 = vmatpush1.msra.mxu0 0.0
  %3565 = vmatprep.subr.mxu0 0.0
  %3566 = vmatpush1.msra.mxu0 0.0
  %3567 = vmatprep.subr.mxu0 0.0
  %3568 = vmatpush1.msra.mxu0 0.0
  %3569 = vmatprep.mubr.f32.mxu0 0.0
  %3570 = vmatmul.mubr.f32.gmra.mrb[0].mxu0 %v3494
  %v3571 = vpop.f32.mrb[0].mxu0
  %v3572 = vadd.f32 0.0, %v3571
  %v3573 = vpop.f32.mrb[0].mxu0
  %3574 = vmatprep.mubr.f32.mxu0 0.0
  %3575 = vmatmul.mubr.f32.gmra.mrb[0].mxu0 %v3497
  %v3576 = vpop.f32.mrb[0].mxu0
  %v3577 = vadd.f32 0.0, %v3576
  %v3578 = vpop.f32.mrb[0].mxu0
  %3579 = vmatprep.mubr.f32.mxu0 0.0
  %3580 = vmatmul.mubr.f32.gmra.mrb[0].mxu0 %v3500
  %v3581 = vpop.f32.mrb[0].mxu0
  %v3582 = vadd.f32 0.0, %v3581
  %v3583 = vpop.f32.mrb[0].mxu0
  %3584 = vmatprep.mubr.f32.mxu0 0.0
  %3585 = vmatmul.mubr.f32.gmra.mrb[0].mxu0 %v3503
  %v3586 = vpop.f32.mrb[0].mxu0
  %v3587 = vadd.f32 0.0, %v3586
  %v3588 = vpop.f32.mrb[0].mxu0
  %3589 = vdwg.mxu0
  %v3590 = vadd.f32 %v3300, %v3572
  %v3591 = vadd.f32 %v3301, %v3577
  %v3592 = vadd.f32 %v3302, %v3582
  %v3593 = vadd.f32 %v3303, %v3587
  %3594 = vset.pattern.permute.xlu0 11
  %3595 = vperm.xlu0 %3594, %v2268
  %v3596 = vpop.permute.xlu0 %3595
  %3598 = vset.pattern.permute.xlu0 11
  %3599 = vperm.xlu0 %3598, %v2269
  %v3600 = vpop.permute.xlu0 %3599
  %3602 = vset.pattern.permute.xlu0 11
  %3603 = vperm.xlu0 %3602, %v2270
  %v3604 = vpop.permute.xlu0 %3603
  %3606 = vset.pattern.permute.xlu0 11
  %3607 = vperm.xlu0 %3606, %v2271
  %v3608 = vpop.permute.xlu0 %3607
  %v3610 = vadd.f32 %v3590, %v3596
  %v3611 = vadd.f32 %v3591, %v3600
  %v3612 = vadd.f32 %v3592, %v3604
  %v3613 = vadd.f32 %v3593, %v3608
  %v3614 = vsel %vm2970, %v3610, 0.0
  %v3615 = vsel %vm2970, %v3611, 0.0
  %v3616 = vadd.f32 %v3614, %v3615
  %v3617 = vsel %vm2970, %v3612, 0.0
  %v3618 = vadd.f32 %v3616, %v3617
  %v3619 = vsel %vm2970, %v3613, 0.0
  %v3620 = vadd.f32 %v3618, %v3619
  %v3621 = vrot.slane %v3620, 4
  %v3622 = vadd.f32 %v3620, %v3621
  %v3623 = vrot.slane %v3622, 2
  %v3624 = vadd.f32 %v3622, %v3623
  %v3625 = vrot.slane %v3624, 1
  %v3626 = vadd.f32 %v3624, %v3625
  %v3627 = vmul.f32 %v3626, %v171
  %v3628 = vsub.f32 %v3610, %v3627
  %v3629 = vsub.f32 %v3611, %v3627
  %v3630 = vsub.f32 %v3612, %v3627
  %v3631 = vsub.f32 %v3613, %v3627
  %v3632 = vmul.f32 %v3628, %v3628
  %v3633 = vmul.f32 %v3629, %v3629
  %v3634 = vmul.f32 %v3630, %v3630
  %v3635 = vmul.f32 %v3631, %v3631
  %v3636 = vsel %vm2970, %v3632, 0.0
  %v3637 = vsel %vm2970, %v3633, 0.0
  %v3638 = vadd.f32 %v3636, %v3637
  %v3639 = vsel %vm2970, %v3634, 0.0
  %v3640 = vadd.f32 %v3638, %v3639
  %v3641 = vsel %vm2970, %v3635, 0.0
  %v3642 = vadd.f32 %v3640, %v3641
  %v3643 = vrot.slane %v3642, 4
  %v3644 = vadd.f32 %v3642, %v3643
  %v3645 = vrot.slane %v3644, 2
  %v3646 = vadd.f32 %v3644, %v3645
  %v3647 = vrot.slane %v3646, 1
  %v3648 = vadd.f32 %v3646, %v3647
  %v3649 = vmul.f32 %v3648, %v171
  %v3650 = vadd.f32 %v3649, 1e-05
  %v3651 = vrsqrt.pop %v3650
  %v3652 = vmul.f32 %v3628, %v3651
  %v3653 = vmul.f32 %v3629, %v3651
  %v3654 = vmul.f32 %v3630, %v3651
  %v3655 = vmul.f32 %v3631, %v3651
  %3656 = vset.pattern.permute.xlu0 5
  %3657 = vperm.xlu0 %3656, %v2268
  %v3658 = vpop.permute.xlu0 %3657
  %3660 = vset.pattern.permute.xlu0 5
  %3661 = vperm.xlu0 %3660, %v2269
  %v3662 = vpop.permute.xlu0 %3661
  %3664 = vset.pattern.permute.xlu0 5
  %3665 = vperm.xlu0 %3664, %v2270
  %v3666 = vpop.permute.xlu0 %3665
  %3668 = vset.pattern.permute.xlu0 5
  %3669 = vperm.xlu0 %3668, %v2271
  %v3670 = vpop.permute.xlu0 %3669
  %v3672 = vmul.f32 %v3652, %v3658
  %v3673 = vmul.f32 %v3653, %v3662
  %v3674 = vmul.f32 %v3654, %v3666
  %v3675 = vmul.f32 %v3655, %v3670
  %3676 = vset.pattern.permute.xlu0 6
  %3677 = vperm.xlu0 %3676, %v2268
  %v3678 = vpop.permute.xlu0 %3677
  %3680 = vset.pattern.permute.xlu0 6
  %3681 = vperm.xlu0 %3680, %v2269
  %v3682 = vpop.permute.xlu0 %3681
  %3684 = vset.pattern.permute.xlu0 6
  %3685 = vperm.xlu0 %3684, %v2270
  %v3686 = vpop.permute.xlu0 %3685
  %3688 = vset.pattern.permute.xlu0 6
  %3689 = vperm.xlu0 %3688, %v2271
  %v3690 = vpop.permute.xlu0 %3689
  %v3692 = vadd.f32 %v3672, %v3678
  %v3693 = vadd.f32 %v3673, %v3682
  %v3694 = vadd.f32 %v3674, %v3686
  %v3695 = vadd.f32 %v3675, %v3690
  %v3696 = vlaneseq
  %v3697 = vshrl.u32 %v3696, 7
  %v3698 = vsub.s32 2, %v3697
  %v3699 = vrot.slane %v2957, %v3698
  %v3701 = vsel %vm2970, %v3692, 0
  %v3704 = vsel %vm2970, %v3693, 0
  %v3707 = vsel %vm2970, %v3694, 0
  %v3710 = vsel %vm2970, %v3695, 0
  %v3713 = vsel %vm3069, %v2957, 0
  %3715 = vmatprep.subr.mxu0 0.0
  %3716 = vmatpush1.msra.mxu0 %v2956
  %3717 = vmatprep.subr.mxu0 0.0
  %3718 = vmatpush1.msra.mxu0 %v3713
  %3719 = vmatprep.subr.mxu0 0.0
  %3720 = vmatpush1.msra.mxu0 0.0
  %3721 = vmatprep.subr.mxu0 0.0
  %3722 = vmatpush1.msra.mxu0 0.0
  %3723 = vmatprep.subr.mxu0 0.0
  %3724 = vmatpush1.msra.mxu0 0.0
  %3725 = vmatprep.subr.mxu0 0.0
  %3726 = vmatpush1.msra.mxu0 0.0
  %3727 = vmatprep.subr.mxu0 0.0
  %3728 = vmatpush1.msra.mxu0 0.0
  %3729 = vmatprep.subr.mxu0 0.0
  %3730 = vmatpush1.msra.mxu0 0.0
  %3731 = vmatprep.subr.mxu0 0.0
  %3732 = vmatpush1.msra.mxu0 0.0
  %3733 = vmatprep.subr.mxu0 0.0
  %3734 = vmatpush1.msra.mxu0 0.0
  %3735 = vmatprep.subr.mxu0 0.0
  %3736 = vmatpush1.msra.mxu0 0.0
  %3737 = vmatprep.subr.mxu0 0.0
  %3738 = vmatpush1.msra.mxu0 0.0
  %3739 = vmatprep.subr.mxu0 0.0
  %3740 = vmatpush1.msra.mxu0 0.0
  %3741 = vmatprep.subr.mxu0 0.0
  %3742 = vmatpush1.msra.mxu0 0.0
  %3743 = vmatprep.subr.mxu0 0.0
  %3744 = vmatpush1.msra.mxu0 0.0
  %3745 = vmatprep.subr.mxu0 0.0
  %3746 = vmatpush1.msra.mxu0 0.0
  %3747 = vmatprep.subr.mxu0 0.0
  %3748 = vmatpush1.msra.mxu0 0.0
  %3749 = vmatprep.subr.mxu0 0.0
  %3750 = vmatpush1.msra.mxu0 0.0
  %3751 = vmatprep.subr.mxu0 0.0
  %3752 = vmatpush1.msra.mxu0 0.0
  %3753 = vmatprep.subr.mxu0 0.0
  %3754 = vmatpush1.msra.mxu0 0.0
  %3755 = vmatprep.subr.mxu0 0.0
  %3756 = vmatpush1.msra.mxu0 0.0
  %3757 = vmatprep.subr.mxu0 0.0
  %3758 = vmatpush1.msra.mxu0 0.0
  %3759 = vmatprep.subr.mxu0 0.0
  %3760 = vmatpush1.msra.mxu0 0.0
  %3761 = vmatprep.subr.mxu0 0.0
  %3762 = vmatpush1.msra.mxu0 0.0
  %3763 = vmatprep.subr.mxu0 0.0
  %3764 = vmatpush1.msra.mxu0 0.0
  %3765 = vmatprep.subr.mxu0 0.0
  %3766 = vmatpush1.msra.mxu0 0.0
  %3767 = vmatprep.subr.mxu0 0.0
  %3768 = vmatpush1.msra.mxu0 0.0
  %3769 = vmatprep.subr.mxu0 0.0
  %3770 = vmatpush1.msra.mxu0 0.0
  %3771 = vmatprep.subr.mxu0 0.0
  %3772 = vmatpush1.msra.mxu0 0.0
  %3773 = vmatprep.subr.mxu0 0.0
  %3774 = vmatpush1.msra.mxu0 0.0
  %3775 = vmatprep.subr.mxu0 0.0
  %3776 = vmatpush1.msra.mxu0 0.0
  %3777 = vmatprep.subr.mxu0 0.0
  %3778 = vmatpush1.msra.mxu0 0.0
  %3779 = vmatprep.mubr.f32.mxu0 0.0
  %3780 = vmatmul.mubr.f32.gmra.mrb[0].mxu0 %v3701
  %v3781 = vpop.f32.mrb[0].mxu0
  %v3782 = vadd.f32 %v3699, %v3781
  %v3783 = vpop.f32.mrb[0].mxu0
  %3784 = vmatprep.mubr.f32.mxu0 0.0
  %3785 = vmatmul.mubr.f32.gmra.mrb[0].mxu0 %v3704
  %v3786 = vpop.f32.mrb[0].mxu0
  %v3787 = vadd.f32 %v3699, %v3786
  %v3788 = vpop.f32.mrb[0].mxu0
  %3789 = vmatprep.mubr.f32.mxu0 0.0
  %3790 = vmatmul.mubr.f32.gmra.mrb[0].mxu0 %v3707
  %v3791 = vpop.f32.mrb[0].mxu0
  %v3792 = vadd.f32 %v3699, %v3791
  %v3793 = vpop.f32.mrb[0].mxu0
  %3794 = vmatprep.mubr.f32.mxu0 0.0
  %3795 = vmatmul.mubr.f32.gmra.mrb[0].mxu0 %v3710
  %v3796 = vpop.f32.mrb[0].mxu0
  %v3797 = vadd.f32 %v3699, %v3796
  %v3798 = vpop.f32.mrb[0].mxu0
  %3799 = vdwg.mxu0
  %v3800 = vmul.f32 %v3782, 0.5
  %v3801 = vmul.f32 %v3787, 0.5
  %v3802 = vmul.f32 %v3792, 0.5
  %v3803 = vmul.f32 %v3797, 0.5
  %v3804 = vmul.f32 %v3782, 0.044715
  %v3805 = vmul.f32 %v3787, 0.044715
  %v3806 = vmul.f32 %v3792, 0.044715
  %v3807 = vmul.f32 %v3797, 0.044715
  %v3808 = vmul.f32 %v3804, %v3782
  %v3809 = vmul.f32 %v3805, %v3787
  %v3810 = vmul.f32 %v3806, %v3792
  %v3811 = vmul.f32 %v3807, %v3797
  %v3812 = vmul.f32 %v3808, %v3782
  %v3813 = vmul.f32 %v3809, %v3787
  %v3814 = vmul.f32 %v3810, %v3792
  %v3815 = vmul.f32 %v3811, %v3797
  %v3816 = vadd.f32 %v3782, %v3812
  %v3817 = vadd.f32 %v3787, %v3813
  %v3818 = vadd.f32 %v3792, %v3814
  %v3819 = vadd.f32 %v3797, %v3815
  %v3820 = vmul.f32 %v3816, 0.7978846
  %v3821 = vmul.f32 %v3817, 0.7978846
  %v3822 = vmul.f32 %v3818, 0.7978846
  %v3823 = vmul.f32 %v3819, 0.7978846
  %v3824 = vtanh.pop %v3820
  %v3825 = vtanh.pop %v3821
  %v3826 = vtanh.pop %v3822
  %v3827 = vtanh.pop %v3823
  %v3828 = vadd.f32 %v3824, 1.0
  %v3829 = vadd.f32 %v3825, 1.0
  %v3830 = vadd.f32 %v3826, 1.0
  %v3831 = vadd.f32 %v3827, 1.0
  %v3832 = vmul.f32 %v3800, %v3828
  %v3833 = vmul.f32 %v3801, %v3829
  %v3834 = vmul.f32 %v3802, %v3830
  %v3835 = vmul.f32 %v3803, %v3831
  %v3837 = vsel %vm3194, %v3832, 0
  %v3840 = vsel %vm3194, %v3833, 0
  %v3843 = vsel %vm3194, %v3834, 0
  %v3846 = vsel %vm3194, %v3835, 0
  %3848 = vmatprep.subr.mxu0 0.0
  %3849 = vmatpush1.msra.mxu0 %v2964
  %3850 = vmatprep.subr.mxu0 0.0
  %3851 = vmatpush1.msra.mxu0 %v2965
  %3852 = vmatprep.subr.mxu0 0.0
  %3853 = vmatpush1.msra.mxu0 %v2966
  %3854 = vmatprep.subr.mxu0 0.0
  %3855 = vmatpush1.msra.mxu0 %v2967
  %3856 = vmatprep.subr.mxu0 0.0
  %3857 = vmatpush1.msra.mxu0 %v2968
  %3858 = vmatprep.subr.mxu0 0.0
  %3859 = vmatpush1.msra.mxu0 0.0
  %3860 = vmatprep.subr.mxu0 0.0
  %3861 = vmatpush1.msra.mxu0 0.0
  %3862 = vmatprep.subr.mxu0 0.0
  %3863 = vmatpush1.msra.mxu0 0.0
  %3864 = vmatprep.subr.mxu0 0.0
  %3865 = vmatpush1.msra.mxu0 0.0
  %3866 = vmatprep.subr.mxu0 0.0
  %3867 = vmatpush1.msra.mxu0 0.0
  %3868 = vmatprep.subr.mxu0 0.0
  %3869 = vmatpush1.msra.mxu0 0.0
  %3870 = vmatprep.subr.mxu0 0.0
  %3871 = vmatpush1.msra.mxu0 0.0
  %3872 = vmatprep.subr.mxu0 0.0
  %3873 = vmatpush1.msra.mxu0 0.0
  %3874 = vmatprep.subr.mxu0 0.0
  %3875 = vmatpush1.msra.mxu0 0.0
  %3876 = vmatprep.subr.mxu0 0.0
  %3877 = vmatpush1.msra.mxu0 0.0
  %3878 = vmatprep.subr.mxu0 0.0
  %3879 = vmatpush1.msra.mxu0 0.0
  %3880 = vmatprep.subr.mxu0 0.0
  %3881 = vmatpush1.msra.mxu0 0.0
  %3882 = vmatprep.subr.mxu0 0.0
  %3883 = vmatpush1.msra.mxu0 0.0
  %3884 = vmatprep.subr.mxu0 0.0
  %3885 = vmatpush1.msra.mxu0 0.0
  %3886 = vmatprep.subr.mxu0 0.0
  %3887 = vmatpush1.msra.mxu0 0.0
  %3888 = vmatprep.subr.mxu0 0.0
  %3889 = vmatpush1.msra.mxu0 0.0
  %3890 = vmatprep.subr.mxu0 0.0
  %3891 = vmatpush1.msra.mxu0 0.0
  %3892 = vmatprep.subr.mxu0 0.0
  %3893 = vmatpush1.msra.mxu0 0.0
  %3894 = vmatprep.subr.mxu0 0.0
  %3895 = vmatpush1.msra.mxu0 0.0
  %3896 = vmatprep.subr.mxu0 0.0
  %3897 = vmatpush1.msra.mxu0 0.0
  %3898 = vmatprep.subr.mxu0 0.0
  %3899 = vmatpush1.msra.mxu0 0.0
  %3900 = vmatprep.subr.mxu0 0.0
  %3901 = vmatpush1.msra.mxu0 0.0
  %3902 = vmatprep.subr.mxu0 0.0
  %3903 = vmatpush1.msra.mxu0 0.0
  %3904 = vmatprep.subr.mxu0 0.0
  %3905 = vmatpush1.msra.mxu0 0.0
  %3906 = vmatprep.subr.mxu0 0.0
  %3907 = vmatpush1.msra.mxu0 0.0
  %3908 = vmatprep.subr.mxu0 0.0
  %3909 = vmatpush1.msra.mxu0 0.0
  %3910 = vmatprep.subr.mxu0 0.0
  %3911 = vmatpush1.msra.mxu0 0.0
  %3912 = vmatprep.mubr.f32.mxu0 0.0
  %3913 = vmatmul.mubr.f32.gmra.mrb[0].mxu0 %v3837
  %v3914 = vpop.f32.mrb[0].mxu0
  %v3915 = vadd.f32 0.0, %v3914
  %v3916 = vpop.f32.mrb[0].mxu0
  %3917 = vmatprep.mubr.f32.mxu0 0.0
  %3918 = vmatmul.mubr.f32.gmra.mrb[0].mxu0 %v3840
  %v3919 = vpop.f32.mrb[0].mxu0
  %v3920 = vadd.f32 0.0, %v3919
  %v3921 = vpop.f32.mrb[0].mxu0
  %3922 = vmatprep.mubr.f32.mxu0 0.0
  %3923 = vmatmul.mubr.f32.gmra.mrb[0].mxu0 %v3843
  %v3924 = vpop.f32.mrb[0].mxu0
  %v3925 = vadd.f32 0.0, %v3924
  %v3926 = vpop.f32.mrb[0].mxu0
  %3927 = vmatprep.mubr.f32.mxu0 0.0
  %3928 = vmatmul.mubr.f32.gmra.mrb[0].mxu0 %v3846
  %v3929 = vpop.f32.mrb[0].mxu0
  %v3930 = vadd.f32 0.0, %v3929
  %v3931 = vpop.f32.mrb[0].mxu0
  %3932 = vdwg.mxu0
  %v3933 = vadd.f32 %v3610, %v3915
  %v3934 = vadd.f32 %v3611, %v3920
  %v3935 = vadd.f32 %v3612, %v3925
  %v3936 = vadd.f32 %v3613, %v3930
  %v3937 = vlaneseq
  %v3938 = vshrl.u32 %v3937, 7
  %v3939 = vsub.s32 0, %v3938
  %v3940 = vrot.slane %v2969, %v3939
  %v3941 = vadd.f32 %v3933, %v3940
  %v3942 = vadd.f32 %v3934, %v3940
  %v3943 = vadd.f32 %v3935, %v3940
  %v3944 = vadd.f32 %v3936, %v3940
  %v3945 = vsel %vm2970, %v3941, 0.0
  %v3946 = vsel %vm2970, %v3942, 0.0
  %v3947 = vadd.f32 %v3945, %v3946
  %v3948 = vsel %vm2970, %v3943, 0.0
  %v3949 = vadd.f32 %v3947, %v3948
  %v3950 = vsel %vm2970, %v3944, 0.0
  %v3951 = vadd.f32 %v3949, %v3950
  %v3952 = vrot.slane %v3951, 4
  %v3953 = vadd.f32 %v3951, %v3952
  %v3954 = vrot.slane %v3953, 2
  %v3955 = vadd.f32 %v3953, %v3954
  %v3956 = vrot.slane %v3955, 1
  %v3957 = vadd.f32 %v3955, %v3956
  %v3958 = vmul.f32 %v3957, %v171
  %v3959 = vsub.f32 %v3941, %v3958
  %v3960 = vsub.f32 %v3942, %v3958
  %v3961 = vsub.f32 %v3943, %v3958
  %v3962 = vsub.f32 %v3944, %v3958
  %v3963 = vmul.f32 %v3959, %v3959
  %v3964 = vmul.f32 %v3960, %v3960
  %v3965 = vmul.f32 %v3961, %v3961
  %v3966 = vmul.f32 %v3962, %v3962
  %v3967 = vsel %vm2970, %v3963, 0.0
  %v3968 = vsel %vm2970, %v3964, 0.0
  %v3969 = vadd.f32 %v3967, %v3968
  %v3970 = vsel %vm2970, %v3965, 0.0
  %v3971 = vadd.f32 %v3969, %v3970
  %v3972 = vsel %vm2970, %v3966, 0.0
  %v3973 = vadd.f32 %v3971, %v3972
  %v3974 = vrot.slane %v3973, 4
  %v3975 = vadd.f32 %v3973, %v3974
  %v3976 = vrot.slane %v3975, 2
  %v3977 = vadd.f32 %v3975, %v3976
  %v3978 = vrot.slane %v3977, 1
  %v3979 = vadd.f32 %v3977, %v3978
  %v3980 = vmul.f32 %v3979, %v171
  %v3981 = vadd.f32 %v3980, 1e-05
  %v3982 = vrsqrt.pop %v3981
  %v3983 = vmul.f32 %v3959, %v3982
  %v3984 = vmul.f32 %v3960, %v3982
  %v3985 = vmul.f32 %v3961, %v3982
  %v3986 = vmul.f32 %v3962, %v3982
  %3987 = vset.pattern.permute.xlu0 7
  %3988 = vperm.xlu0 %3987, %v2268
  %v3989 = vpop.permute.xlu0 %3988
  %3991 = vset.pattern.permute.xlu0 7
  %3992 = vperm.xlu0 %3991, %v2269
  %v3993 = vpop.permute.xlu0 %3992
  %3995 = vset.pattern.permute.xlu0 7
  %3996 = vperm.xlu0 %3995, %v2270
  %v3997 = vpop.permute.xlu0 %3996
  %3999 = vset.pattern.permute.xlu0 7
  %4000 = vperm.xlu0 %3999, %v2271
  %v4001 = vpop.permute.xlu0 %4000
  %v4003 = vmul.f32 %v3983, %v3989
  %v4004 = vmul.f32 %v3984, %v3993
  %v4005 = vmul.f32 %v3985, %v3997
  %v4006 = vmul.f32 %v3986, %v4001
  %4007 = vset.pattern.permute.xlu0 8
  %4008 = vperm.xlu0 %4007, %v2268
  %v4009 = vpop.permute.xlu0 %4008
  %4011 = vset.pattern.permute.xlu0 8
  %4012 = vperm.xlu0 %4011, %v2269
  %v4013 = vpop.permute.xlu0 %4012
  %4015 = vset.pattern.permute.xlu0 8
  %4016 = vperm.xlu0 %4015, %v2270
  %v4017 = vpop.permute.xlu0 %4016
  %4019 = vset.pattern.permute.xlu0 8
  %4020 = vperm.xlu0 %4019, %v2271
  %v4021 = vpop.permute.xlu0 %4020
  %v4023 = vadd.f32 %v4003, %v4009
  %v4024 = vadd.f32 %v4004, %v4013
  %v4025 = vadd.f32 %v4005, %v4017
  %v4026 = vadd.f32 %v4006, %v4021
  %4027 = vset.pattern.permute.xlu0 14
  %4028 = vperm.xlu0 %4027, %v2268
  %v4029 = vpop.permute.xlu0 %4028
  %4031 = vset.pattern.permute.xlu0 14
  %4032 = vperm.xlu0 %4031, %v2269
  %v4033 = vpop.permute.xlu0 %4032
  %v4036 = vsel %vm951, %v2944, 0
  %v4039 = vsel %vm951, %v2945, 0
  %4041 = vmatprep.subr.mxu0 0.0
  %4042 = vmatpush1.msra.mxu0 %v4023
  %4043 = vmatprep.subr.mxu0 0.0
  %4044 = vmatpush1.msra.mxu0 %v4024
  %4045 = vmatprep.subr.mxu0 0.0
  %4046 = vmatpush1.msra.mxu0 %v4025
  %4047 = vmatprep.subr.mxu0 0.0
  %4048 = vmatpush1.msra.mxu0 %v4026
  %4049 = vmatprep.subr.mxu0 0.0
  %4050 = vmatpush1.msra.mxu0 0.0
  %4051 = vmatprep.subr.mxu0 0.0
  %4052 = vmatpush1.msra.mxu0 0.0
  %4053 = vmatprep.subr.mxu0 0.0
  %4054 = vmatpush1.msra.mxu0 0.0
  %4055 = vmatprep.subr.mxu0 0.0
  %4056 = vmatpush1.msra.mxu0 0.0
  %4057 = vmatprep.subr.mxu0 0.0
  %4058 = vmatpush1.msra.mxu0 0.0
  %4059 = vmatprep.subr.mxu0 0.0
  %4060 = vmatpush1.msra.mxu0 0.0
  %4061 = vmatprep.subr.mxu0 0.0
  %4062 = vmatpush1.msra.mxu0 0.0
  %4063 = vmatprep.subr.mxu0 0.0
  %4064 = vmatpush1.msra.mxu0 0.0
  %4065 = vmatprep.subr.mxu0 0.0
  %4066 = vmatpush1.msra.mxu0 0.0
  %4067 = vmatprep.subr.mxu0 0.0
  %4068 = vmatpush1.msra.mxu0 0.0
  %4069 = vmatprep.subr.mxu0 0.0
  %4070 = vmatpush1.msra.mxu0 0.0
  %4071 = vmatprep.subr.mxu0 0.0
  %4072 = vmatpush1.msra.mxu0 0.0
  %4073 = vmatprep.subr.mxu0 0.0
  %4074 = vmatpush1.msra.mxu0 0.0
  %4075 = vmatprep.subr.mxu0 0.0
  %4076 = vmatpush1.msra.mxu0 0.0
  %4077 = vmatprep.subr.mxu0 0.0
  %4078 = vmatpush1.msra.mxu0 0.0
  %4079 = vmatprep.subr.mxu0 0.0
  %4080 = vmatpush1.msra.mxu0 0.0
  %4081 = vmatprep.subr.mxu0 0.0
  %4082 = vmatpush1.msra.mxu0 0.0
  %4083 = vmatprep.subr.mxu0 0.0
  %4084 = vmatpush1.msra.mxu0 0.0
  %4085 = vmatprep.subr.mxu0 0.0
  %4086 = vmatpush1.msra.mxu0 0.0
  %4087 = vmatprep.subr.mxu0 0.0
  %4088 = vmatpush1.msra.mxu0 0.0
  %4089 = vmatprep.subr.mxu0 0.0
  %4090 = vmatpush1.msra.mxu0 0.0
  %4091 = vmatprep.subr.mxu0 0.0
  %4092 = vmatpush1.msra.mxu0 0.0
  %4093 = vmatprep.subr.mxu0 0.0
  %4094 = vmatpush1.msra.mxu0 0.0
  %4095 = vmatprep.subr.mxu0 0.0
  %4096 = vmatpush1.msra.mxu0 0.0
  %4097 = vmatprep.subr.mxu0 0.0
  %4098 = vmatpush1.msra.mxu0 0.0
  %4099 = vmatprep.subr.mxu0 0.0
  %4100 = vmatpush1.msra.mxu0 0.0
  %4101 = vmatprep.subr.mxu0 0.0
  %4102 = vmatpush1.msra.mxu0 0.0
  %4103 = vmatprep.subr.mxu0 0.0
  %4104 = vmatpush1.msra.mxu0 0.0
  %4105 = vmatprep.mubr.f32.mxu0 0.0
  %4106 = vmatmul.mubr.f32.gmra.mrb[0].mxu0 %v4036
  %v4107 = vpop.f32.mrb[0].mxu0
  %v4108 = vadd.f32 %v4029, %v4107
  %v4109 = vpop.f32.mrb[0].mxu0
  %4110 = vmatprep.mubr.f32.mxu0 0.0
  %4111 = vmatmul.mubr.f32.gmra.mrb[0].mxu0 %v4039
  %v4112 = vpop.f32.mrb[0].mxu0
  %v4113 = vadd.f32 %v4033, %v4112
  %v4114 = vpop.f32.mrb[0].mxu0
  %4115 = vdwg.mxu0
  %v4116 = vmul.f32 %v4108, 0.5
  %v4117 = vmul.f32 %v4113, 0.5
  %v4118 = vmul.f32 %v4108, 0.044715
  %v4119 = vmul.f32 %v4113, 0.044715
  %v4120 = vmul.f32 %v4118, %v4108
  %v4121 = vmul.f32 %v4119, %v4113
  %v4122 = vmul.f32 %v4120, %v4108
  %v4123 = vmul.f32 %v4121, %v4113
  %v4124 = vadd.f32 %v4108, %v4122
  %v4125 = vadd.f32 %v4113, %v4123
  %v4126 = vmul.f32 %v4124, 0.7978846
  %v4127 = vmul.f32 %v4125, 0.7978846
  %v4128 = vtanh.pop %v4126
  %v4129 = vtanh.pop %v4127
  %v4130 = vadd.f32 %v4128, 1.0
  %v4131 = vadd.f32 %v4129, 1.0
  %v4132 = vmul.f32 %v4116, %v4130
  %v4133 = vmul.f32 %v4117, %v4131
  %v4135 = vsel %vm1051, %v2950, 0
  %v4138 = vsel %vm1051, %v2951, 0
  %v4141 = vsel %vm1051, %v2952, 0
  %v4144 = vsel %vm1051, %v2953, 0
  %4146 = vmatprep.subr.mxu0 0.0
  %4147 = vmatpush1.msra.mxu0 %v4132
  %4148 = vmatprep.subr.mxu0 0.0
  %4149 = vmatpush1.msra.mxu0 %v4133
  %4150 = vmatprep.subr.mxu0 0.0
  %4151 = vmatpush1.msra.mxu0 0.0
  %4152 = vmatprep.subr.mxu0 0.0
  %4153 = vmatpush1.msra.mxu0 0.0
  %4154 = vmatprep.subr.mxu0 0.0
  %4155 = vmatpush1.msra.mxu0 0.0
  %4156 = vmatprep.subr.mxu0 0.0
  %4157 = vmatpush1.msra.mxu0 0.0
  %4158 = vmatprep.subr.mxu0 0.0
  %4159 = vmatpush1.msra.mxu0 0.0
  %4160 = vmatprep.subr.mxu0 0.0
  %4161 = vmatpush1.msra.mxu0 0.0
  %4162 = vmatprep.subr.mxu0 0.0
  %4163 = vmatpush1.msra.mxu0 0.0
  %4164 = vmatprep.subr.mxu0 0.0
  %4165 = vmatpush1.msra.mxu0 0.0
  %4166 = vmatprep.subr.mxu0 0.0
  %4167 = vmatpush1.msra.mxu0 0.0
  %4168 = vmatprep.subr.mxu0 0.0
  %4169 = vmatpush1.msra.mxu0 0.0
  %4170 = vmatprep.subr.mxu0 0.0
  %4171 = vmatpush1.msra.mxu0 0.0
  %4172 = vmatprep.subr.mxu0 0.0
  %4173 = vmatpush1.msra.mxu0 0.0
  %4174 = vmatprep.subr.mxu0 0.0
  %4175 = vmatpush1.msra.mxu0 0.0
  %4176 = vmatprep.subr.mxu0 0.0
  %4177 = vmatpush1.msra.mxu0 0.0
  %4178 = vmatprep.subr.mxu0 0.0
  %4179 = vmatpush1.msra.mxu0 0.0
  %4180 = vmatprep.subr.mxu0 0.0
  %4181 = vmatpush1.msra.mxu0 0.0
  %4182 = vmatprep.subr.mxu0 0.0
  %4183 = vmatpush1.msra.mxu0 0.0
  %4184 = vmatprep.subr.mxu0 0.0
  %4185 = vmatpush1.msra.mxu0 0.0
  %4186 = vmatprep.subr.mxu0 0.0
  %4187 = vmatpush1.msra.mxu0 0.0
  %4188 = vmatprep.subr.mxu0 0.0
  %4189 = vmatpush1.msra.mxu0 0.0
  %4190 = vmatprep.subr.mxu0 0.0
  %4191 = vmatpush1.msra.mxu0 0.0
  %4192 = vmatprep.subr.mxu0 0.0
  %4193 = vmatpush1.msra.mxu0 0.0
  %4194 = vmatprep.subr.mxu0 0.0
  %4195 = vmatpush1.msra.mxu0 0.0
  %4196 = vmatprep.subr.mxu0 0.0
  %4197 = vmatpush1.msra.mxu0 0.0
  %4198 = vmatprep.subr.mxu0 0.0
  %4199 = vmatpush1.msra.mxu0 0.0
  %4200 = vmatprep.subr.mxu0 0.0
  %4201 = vmatpush1.msra.mxu0 0.0
  %4202 = vmatprep.subr.mxu0 0.0
  %4203 = vmatpush1.msra.mxu0 0.0
  %4204 = vmatprep.subr.mxu0 0.0
  %4205 = vmatpush1.msra.mxu0 0.0
  %4206 = vmatprep.subr.mxu0 0.0
  %4207 = vmatpush1.msra.mxu0 0.0
  %4208 = vmatprep.subr.mxu0 0.0
  %4209 = vmatpush1.msra.mxu0 0.0
  %4210 = vmatprep.mubr.f32.mxu0 0.0
  %4211 = vmatmul.mubr.f32.gmra.mrb[0].mxu0 %v4135
  %v4212 = vpop.f32.mrb[0].mxu0
  %v4213 = vadd.f32 0.0, %v4212
  %v4214 = vpop.f32.mrb[0].mxu0
  %4215 = vmatprep.mubr.f32.mxu0 0.0
  %4216 = vmatmul.mubr.f32.gmra.mrb[0].mxu0 %v4138
  %v4217 = vpop.f32.mrb[0].mxu0
  %v4218 = vadd.f32 0.0, %v4217
  %v4219 = vpop.f32.mrb[0].mxu0
  %4220 = vmatprep.mubr.f32.mxu0 0.0
  %4221 = vmatmul.mubr.f32.gmra.mrb[0].mxu0 %v4141
  %v4222 = vpop.f32.mrb[0].mxu0
  %v4223 = vadd.f32 0.0, %v4222
  %v4224 = vpop.f32.mrb[0].mxu0
  %4225 = vmatprep.mubr.f32.mxu0 0.0
  %4226 = vmatmul.mubr.f32.gmra.mrb[0].mxu0 %v4144
  %v4227 = vpop.f32.mrb[0].mxu0
  %v4228 = vadd.f32 0.0, %v4227
  %v4229 = vpop.f32.mrb[0].mxu0
  %4230 = vdwg.mxu0
  %v4231 = vadd.f32 %v3941, %v4213
  %v4232 = vadd.f32 %v3942, %v4218
  %v4233 = vadd.f32 %v3943, %v4223
  %v4234 = vadd.f32 %v3944, %v4228
  %4235 = vset.pattern.permute.xlu0 12
  %4236 = vperm.xlu0 %4235, %v2268
  %v4237 = vpop.permute.xlu0 %4236
  %4239 = vset.pattern.permute.xlu0 12
  %4240 = vperm.xlu0 %4239, %v2269
  %v4241 = vpop.permute.xlu0 %4240
  %4243 = vset.pattern.permute.xlu0 12
  %4244 = vperm.xlu0 %4243, %v2270
  %v4245 = vpop.permute.xlu0 %4244
  %4247 = vset.pattern.permute.xlu0 12
  %4248 = vperm.xlu0 %4247, %v2271
  %v4249 = vpop.permute.xlu0 %4248
  %v4251 = vadd.f32 %v4231, %v4237
  %v4252 = vadd.f32 %v4232, %v4241
  %v4253 = vadd.f32 %v4233, %v4245
  %v4254 = vadd.f32 %v4234, %v4249
  %v4255 = vsel %vm2970, %v4251, 0.0
  %v4256 = vsel %vm2970, %v4252, 0.0
  %v4257 = vadd.f32 %v4255, %v4256
  %v4258 = vsel %vm2970, %v4253, 0.0
  %v4259 = vadd.f32 %v4257, %v4258
  %v4260 = vsel %vm2970, %v4254, 0.0
  %v4261 = vadd.f32 %v4259, %v4260
  %v4262 = vrot.slane %v4261, 4
  %v4263 = vadd.f32 %v4261, %v4262
  %v4264 = vrot.slane %v4263, 2
  %v4265 = vadd.f32 %v4263, %v4264
  %v4266 = vrot.slane %v4265, 1
  %v4267 = vadd.f32 %v4265, %v4266
  %v4268 = vmul.f32 %v4267, %v171
  %v4269 = vsub.f32 %v4251, %v4268
  %v4270 = vsub.f32 %v4252, %v4268
  %v4271 = vsub.f32 %v4253, %v4268
  %v4272 = vsub.f32 %v4254, %v4268
  %v4273 = vmul.f32 %v4269, %v4269
  %v4274 = vmul.f32 %v4270, %v4270
  %v4275 = vmul.f32 %v4271, %v4271
  %v4276 = vmul.f32 %v4272, %v4272
  %v4277 = vsel %vm2970, %v4273, 0.0
  %v4278 = vsel %vm2970, %v4274, 0.0
  %v4279 = vadd.f32 %v4277, %v4278
  %v4280 = vsel %vm2970, %v4275, 0.0
  %v4281 = vadd.f32 %v4279, %v4280
  %v4282 = vsel %vm2970, %v4276, 0.0
  %v4283 = vadd.f32 %v4281, %v4282
  %v4284 = vrot.slane %v4283, 4
  %v4285 = vadd.f32 %v4283, %v4284
  %v4286 = vrot.slane %v4285, 2
  %v4287 = vadd.f32 %v4285, %v4286
  %v4288 = vrot.slane %v4287, 1
  %v4289 = vadd.f32 %v4287, %v4288
  %v4290 = vmul.f32 %v4289, %v171
  %v4291 = vadd.f32 %v4290, 1e-05
  %v4292 = vrsqrt.pop %v4291
  %v4293 = vmul.f32 %v4269, %v4292
  %v4294 = vmul.f32 %v4270, %v4292
  %v4295 = vmul.f32 %v4271, %v4292
  %v4296 = vmul.f32 %v4272, %v4292
  %4297 = vset.pattern.permute.xlu0 9
  %4298 = vperm.xlu0 %4297, %v2268
  %v4299 = vpop.permute.xlu0 %4298
  %4301 = vset.pattern.permute.xlu0 9
  %4302 = vperm.xlu0 %4301, %v2269
  %v4303 = vpop.permute.xlu0 %4302
  %4305 = vset.pattern.permute.xlu0 9
  %4306 = vperm.xlu0 %4305, %v2270
  %v4307 = vpop.permute.xlu0 %4306
  %4309 = vset.pattern.permute.xlu0 9
  %4310 = vperm.xlu0 %4309, %v2271
  %v4311 = vpop.permute.xlu0 %4310
  %v4313 = vmul.f32 %v4293, %v4299
  %v4314 = vmul.f32 %v4294, %v4303
  %v4315 = vmul.f32 %v4295, %v4307
  %v4316 = vmul.f32 %v4296, %v4311
  %4317 = vset.pattern.permute.xlu0 10
  %4318 = vperm.xlu0 %4317, %v2268
  %v4319 = vpop.permute.xlu0 %4318
  %4321 = vset.pattern.permute.xlu0 10
  %4322 = vperm.xlu0 %4321, %v2269
  %v4323 = vpop.permute.xlu0 %4322
  %4325 = vset.pattern.permute.xlu0 10
  %4326 = vperm.xlu0 %4325, %v2270
  %v4327 = vpop.permute.xlu0 %4326
  %4329 = vset.pattern.permute.xlu0 10
  %4330 = vperm.xlu0 %4329, %v2271
  %v4331 = vpop.permute.xlu0 %4330
  %v4333 = vadd.f32 %v4313, %v4319
  %v4334 = vadd.f32 %v4314, %v4323
  %v4335 = vadd.f32 %v4315, %v4327
  %v4336 = vadd.f32 %v4316, %v4331
  %v4337 = vld [vmem:[%s1 + $0x220] sm:$0xff]
  %v4338 = vld [vmem:[%s1 + $0x228] sm:$0xff]
  %v4339 = vld [vmem:[%s1 + $0x230] sm:$0xff]
  %v4340 = vld [vmem:[%s1 + $0x238] sm:$0xff]
  %v4341 = vld [vmem:[%s1 + $0x240] sm:$0xff]
  %v4342 = vld [vmem:[%s1 + $0x248] sm:$0xff]
  %v4343 = vld [vmem:[%s1 + $0x250] sm:$0xff]
  %v4344 = vld [vmem:[%s1 + $0x258] sm:$0xff]
  %v4345 = vld [vmem:[%s1 + $0x260] sm:$0xff]
  %v4346 = vld [vmem:[%s1 + $0x268] sm:$0xff]
  %v4347 = vld [vmem:[%s1 + $0x270] sm:$0xff]
  %v4348 = vld [vmem:[%s1 + $0x278] sm:$0xff]
  %v4349 = vld [vmem:[%s1 + $0x280] sm:$0xff]
  %v4350 = vld [vmem:[%s1 + $0x288] sm:$0xff]
  %v4351 = vld [vmem:[%s1 + $0x290] sm:$0xff]
  %v4352 = vld [vmem:[%s1 + $0x298] sm:$0xff]
  %v4353 = vld [vmem:[%s1 + $0x2a0] sm:$0xff]
  %v4354 = vld [vmem:[%s1 + $0x2a8] sm:$0xff]
  %v4355 = vld [vmem:[%s1 + $0x2b0] sm:$0xff]
  %v4356 = vld [vmem:[%s1 + $0x2b8] sm:$0xff]
  %v4358 = vsel %vm951, %v4337, 0
  %v4361 = vsel %vm951, %v4338, 0
  %v4364 = vsel %vm951, %v4339, 0
  %v4367 = vsel %vm951, %v4340, 0
  %v4370 = vsel %vm951, %v4341, 0
  %v4373 = vsel %vm951, %v4342, 0
  %v4376 = vsel %vm951, %v4343, 0
  %v4379 = vsel %vm951, %v4344, 0
  %v4382 = vsel %vm951, %v4345, 0
  %v4385 = vsel %vm951, %v4346, 0
  %v4388 = vsel %vm951, %v4347, 0
  %v4391 = vsel %vm951, %v4348, 0
  %v4394 = vsel %vm951, %v4349, 0
  %v4397 = vsel %vm951, %v4350, 0
  %v4400 = vsel %vm951, %v4351, 0
  %v4403 = vsel %vm951, %v4352, 0
  %v4406 = vsel %vm951, %v4353, 0
  %v4409 = vsel %vm951, %v4354, 0
  %v4412 = vsel %vm951, %v4355, 0
  %v4415 = vsel %vm951, %v4356, 0
  %4417 = vmatprep.subr.mxu0 0.0
  %4418 = vmatpush1.msra.mxu0 %v4333
  %4419 = vmatprep.subr.mxu0 0.0
  %4420 = vmatpush1.msra.mxu0 %v4334
  %4421 = vmatprep.subr.mxu0 0.0
  %4422 = vmatpush1.msra.mxu0 %v4335
  %4423 = vmatprep.subr.mxu0 0.0
  %4424 = vmatpush1.msra.mxu0 %v4336
  %4425 = vmatprep.subr.mxu0 0.0
  %4426 = vmatpush1.msra.mxu0 0.0
  %4427 = vmatprep.subr.mxu0 0.0
  %4428 = vmatpush1.msra.mxu0 0.0
  %4429 = vmatprep.subr.mxu0 0.0
  %4430 = vmatpush1.msra.mxu0 0.0
  %4431 = vmatprep.subr.mxu0 0.0
  %4432 = vmatpush1.msra.mxu0 0.0
  %4433 = vmatprep.subr.mxu0 0.0
  %4434 = vmatpush1.msra.mxu0 0.0
  %4435 = vmatprep.subr.mxu0 0.0
  %4436 = vmatpush1.msra.mxu0 0.0
  %4437 = vmatprep.subr.mxu0 0.0
  %4438 = vmatpush1.msra.mxu0 0.0
  %4439 = vmatprep.subr.mxu0 0.0
  %4440 = vmatpush1.msra.mxu0 0.0
  %4441 = vmatprep.subr.mxu0 0.0
  %4442 = vmatpush1.msra.mxu0 0.0
  %4443 = vmatprep.subr.mxu0 0.0
  %4444 = vmatpush1.msra.mxu0 0.0
  %4445 = vmatprep.subr.mxu0 0.0
  %4446 = vmatpush1.msra.mxu0 0.0
  %4447 = vmatprep.subr.mxu0 0.0
  %4448 = vmatpush1.msra.mxu0 0.0
  %4449 = vmatprep.subr.mxu0 0.0
  %4450 = vmatpush1.msra.mxu0 0.0
  %4451 = vmatprep.subr.mxu0 0.0
  %4452 = vmatpush1.msra.mxu0 0.0
  %4453 = vmatprep.subr.mxu0 0.0
  %4454 = vmatpush1.msra.mxu0 0.0
  %4455 = vmatprep.subr.mxu0 0.0
  %4456 = vmatpush1.msra.mxu0 0.0
  %4457 = vmatprep.subr.mxu0 0.0
  %4458 = vmatpush1.msra.mxu0 0.0
  %4459 = vmatprep.subr.mxu0 0.0
  %4460 = vmatpush1.msra.mxu0 0.0
  %4461 = vmatprep.subr.mxu0 0.0
  %4462 = vmatpush1.msra.mxu0 0.0
  %4463 = vmatprep.subr.mxu0 0.0
  %4464 = vmatpush1.msra.mxu0 0.0
  %4465 = vmatprep.subr.mxu0 0.0
  %4466 = vmatpush1.msra.mxu0 0.0
  %4467 = vmatprep.subr.mxu0 0.0
  %4468 = vmatpush1.msra.mxu0 0.0
  %4469 = vmatprep.subr.mxu0 0.0
  %4470 = vmatpush1.msra.mxu0 0.0
  %4471 = vmatprep.subr.mxu0 0.0
  %4472 = vmatpush1.msra.mxu0 0.0
  %4473 = vmatprep.subr.mxu0 0.0
  %4474 = vmatpush1.msra.mxu0 0.0
  %4475 = vmatprep.subr.mxu0 0.0
  %4476 = vmatpush1.msra.mxu0 0.0
  %4477 = vmatprep.subr.mxu0 0.0
  %4478 = vmatpush1.msra.mxu0 0.0
  %4479 = vmatprep.subr.mxu0 0.0
  %4480 = vmatpush1.msra.mxu0 0.0
  %4481 = vmatprep.mubr.f32.mxu0 0.0
  %4482 = vmatmul.mubr.f32.gmra.mrb[0].mxu0 %v4358
  %v4483 = vpop.f32.mrb[0].mxu0
  %v4484 = vadd.f32 0.0, %v4483
  %v4485 = vpop.f32.mrb[0].mxu0
  %4486 = vmatprep.mubr.f32.mxu0 0.0
  %4487 = vmatmul.mubr.f32.gmra.mrb[0].mxu0 %v4361
  %v4488 = vpop.f32.mrb[0].mxu0
  %v4489 = vadd.f32 0.0, %v4488
  %v4490 = vpop.f32.mrb[0].mxu0
  %4491 = vmatprep.mubr.f32.mxu0 0.0
  %4492 = vmatmul.mubr.f32.gmra.mrb[0].mxu0 %v4364
  %v4493 = vpop.f32.mrb[0].mxu0
  %v4494 = vadd.f32 0.0, %v4493
  %v4495 = vpop.f32.mrb[0].mxu0
  %4496 = vmatprep.mubr.f32.mxu0 0.0
  %4497 = vmatmul.mubr.f32.gmra.mrb[0].mxu0 %v4367
  %v4498 = vpop.f32.mrb[0].mxu0
  %v4499 = vadd.f32 0.0, %v4498
  %v4500 = vpop.f32.mrb[0].mxu0
  %4501 = vmatprep.mubr.f32.mxu0 0.0
  %4502 = vmatmul.mubr.f32.gmra.mrb[0].mxu0 %v4370
  %v4503 = vpop.f32.mrb[0].mxu0
  %v4504 = vadd.f32 0.0, %v4503
  %v4505 = vpop.f32.mrb[0].mxu0
  %4506 = vmatprep.mubr.f32.mxu0 0.0
  %4507 = vmatmul.mubr.f32.gmra.mrb[0].mxu0 %v4373
  %v4508 = vpop.f32.mrb[0].mxu0
  %v4509 = vadd.f32 0.0, %v4508
  %v4510 = vpop.f32.mrb[0].mxu0
  %4511 = vmatprep.mubr.f32.mxu0 0.0
  %4512 = vmatmul.mubr.f32.gmra.mrb[0].mxu0 %v4376
  %v4513 = vpop.f32.mrb[0].mxu0
  %v4514 = vadd.f32 0.0, %v4513
  %v4515 = vpop.f32.mrb[0].mxu0
  %4516 = vmatprep.mubr.f32.mxu0 0.0
  %4517 = vmatmul.mubr.f32.gmra.mrb[0].mxu0 %v4379
  %v4518 = vpop.f32.mrb[0].mxu0
  %v4519 = vadd.f32 0.0, %v4518
  %v4520 = vpop.f32.mrb[0].mxu0
  %4521 = vmatprep.mubr.f32.mxu0 0.0
  %4522 = vmatmul.mubr.f32.gmra.mrb[0].mxu0 %v4382
  %v4523 = vpop.f32.mrb[0].mxu0
  %v4524 = vadd.f32 0.0, %v4523
  %v4525 = vpop.f32.mrb[0].mxu0
  %4526 = vmatprep.mubr.f32.mxu0 0.0
  %4527 = vmatmul.mubr.f32.gmra.mrb[0].mxu0 %v4385
  %v4528 = vpop.f32.mrb[0].mxu0
  %v4529 = vadd.f32 0.0, %v4528
  %v4530 = vpop.f32.mrb[0].mxu0
  %4531 = vmatprep.mubr.f32.mxu0 0.0
  %4532 = vmatmul.mubr.f32.gmra.mrb[0].mxu0 %v4388
  %v4533 = vpop.f32.mrb[0].mxu0
  %v4534 = vadd.f32 0.0, %v4533
  %v4535 = vpop.f32.mrb[0].mxu0
  %4536 = vmatprep.mubr.f32.mxu0 0.0
  %4537 = vmatmul.mubr.f32.gmra.mrb[0].mxu0 %v4391
  %v4538 = vpop.f32.mrb[0].mxu0
  %v4539 = vadd.f32 0.0, %v4538
  %v4540 = vpop.f32.mrb[0].mxu0
  %4541 = vmatprep.mubr.f32.mxu0 0.0
  %4542 = vmatmul.mubr.f32.gmra.mrb[0].mxu0 %v4394
  %v4543 = vpop.f32.mrb[0].mxu0
  %v4544 = vadd.f32 0.0, %v4543
  %v4545 = vpop.f32.mrb[0].mxu0
  %4546 = vmatprep.mubr.f32.mxu0 0.0
  %4547 = vmatmul.mubr.f32.gmra.mrb[0].mxu0 %v4397
  %v4548 = vpop.f32.mrb[0].mxu0
  %v4549 = vadd.f32 0.0, %v4548
  %v4550 = vpop.f32.mrb[0].mxu0
  %4551 = vmatprep.mubr.f32.mxu0 0.0
  %4552 = vmatmul.mubr.f32.gmra.mrb[0].mxu0 %v4400
  %v4553 = vpop.f32.mrb[0].mxu0
  %v4554 = vadd.f32 0.0, %v4553
  %v4555 = vpop.f32.mrb[0].mxu0
  %4556 = vmatprep.mubr.f32.mxu0 0.0
  %4557 = vmatmul.mubr.f32.gmra.mrb[0].mxu0 %v4403
  %v4558 = vpop.f32.mrb[0].mxu0
  %v4559 = vadd.f32 0.0, %v4558
  %v4560 = vpop.f32.mrb[0].mxu0
  %4561 = vmatprep.mubr.f32.mxu0 0.0
  %4562 = vmatmul.mubr.f32.gmra.mrb[0].mxu0 %v4406
  %v4563 = vpop.f32.mrb[0].mxu0
  %v4564 = vadd.f32 0.0, %v4563
  %v4565 = vpop.f32.mrb[0].mxu0
  %4566 = vmatprep.mubr.f32.mxu0 0.0
  %4567 = vmatmul.mubr.f32.gmra.mrb[0].mxu0 %v4409
  %v4568 = vpop.f32.mrb[0].mxu0
  %v4569 = vadd.f32 0.0, %v4568
  %v4570 = vpop.f32.mrb[0].mxu0
  %4571 = vmatprep.mubr.f32.mxu0 0.0
  %4572 = vmatmul.mubr.f32.gmra.mrb[0].mxu0 %v4412
  %v4573 = vpop.f32.mrb[0].mxu0
  %v4574 = vadd.f32 0.0, %v4573
  %v4575 = vpop.f32.mrb[0].mxu0
  %4576 = vmatprep.mubr.f32.mxu0 0.0
  %4577 = vmatmul.mubr.f32.gmra.mrb[0].mxu0 %v4415
  %v4578 = vpop.f32.mrb[0].mxu0
  %v4579 = vadd.f32 0.0, %v4578
  %v4580 = vpop.f32.mrb[0].mxu0
  %4581 = vdwg.mxu0
  %vm4582 = vcmp.ge.s32.totalorder %v2691, 5
  %v4583 = vsub.s32 %v2691, 5
  %v4584 = vsel %vm4582, %v4583, %v2691
  %vm4585 = vcmp.eq.s32.totalorder %v2658, %v4584
  %vm4586 = vcmp.eq.s32.totalorder %v2659, %v4584
  %vm4587 = vcmp.eq.s32.totalorder %v2660, %v4584
  %vm4588 = vcmp.eq.s32.totalorder %v2661, %v4584
  %vm4589 = vcmp.eq.s32.totalorder %v2662, %v4584
  %vm4590 = vcmp.eq.s32.totalorder %v2663, %v4584
  %vm4591 = vcmp.eq.s32.totalorder %v2664, %v4584
  %vm4592 = vcmp.eq.s32.totalorder %v2665, %v4584
  %vm4593 = vcmp.eq.s32.totalorder %v2666, %v4584
  %vm4594 = vcmp.eq.s32.totalorder %v2667, %v4584
  %vm4595 = vcmp.eq.s32.totalorder %v2668, %v4584
  %vm4596 = vcmp.eq.s32.totalorder %v2669, %v4584
  %vm4597 = vcmp.eq.s32.totalorder %v2670, %v4584
  %vm4598 = vcmp.eq.s32.totalorder %v2671, %v4584
  %vm4599 = vcmp.eq.s32.totalorder %v2672, %v4584
  %vm4600 = vcmp.eq.s32.totalorder %v2673, %v4584
  %vm4601 = vcmp.eq.s32.totalorder %v2674, %v4584
  %vm4602 = vcmp.eq.s32.totalorder %v2675, %v4584
  %vm4603 = vcmp.eq.s32.totalorder %v2676, %v4584
  %vm4604 = vcmp.eq.s32.totalorder %v2677, %v4584
  %v4605 = vsel %vm4585, %v4484, 0.0
  %v4606 = vsel %vm4586, %v4489, 0.0
  %v4607 = vsel %vm4587, %v4494, 0.0
  %v4608 = vsel %vm4588, %v4499, 0.0
  %v4609 = vsel %vm4589, %v4504, 0.0
  %v4610 = vsel %vm4590, %v4509, 0.0
  %v4611 = vsel %vm4591, %v4514, 0.0
  %v4612 = vsel %vm4592, %v4519, 0.0
  %v4613 = vsel %vm4593, %v4524, 0.0
  %v4614 = vsel %vm4594, %v4529, 0.0
  %v4615 = vsel %vm4595, %v4534, 0.0
  %v4616 = vsel %vm4596, %v4539, 0.0
  %v4617 = vsel %vm4597, %v4544, 0.0
  %v4618 = vsel %vm4598, %v4549, 0.0
  %v4619 = vsel %vm4599, %v4554, 0.0
  %v4620 = vsel %vm4600, %v4559, 0.0
  %v4621 = vsel %vm4601, %v4564, 0.0
  %v4622 = vsel %vm4602, %v4569, 0.0
  %v4623 = vsel %vm4603, %v4574, 0.0
  %v4624 = vsel %vm4604, %v4579, 0.0
  %v4625 = vadd.f32 %v4605, %v4609
  %v4626 = vadd.f32 %v4606, %v4610
  %v4627 = vadd.f32 %v4607, %v4611
  %v4628 = vadd.f32 %v4608, %v4612
  %v4629 = vadd.f32 %v4625, %v4613
  %v4630 = vadd.f32 %v4626, %v4614
  %v4631 = vadd.f32 %v4627, %v4615
  %v4632 = vadd.f32 %v4628, %v4616
  %v4633 = vadd.f32 %v4629, %v4617
  %v4634 = vadd.f32 %v4630, %v4618
  %v4635 = vadd.f32 %v4631, %v4619
  %v4636 = vadd.f32 %v4632, %v4620
  %v4637 = vadd.f32 %v4633, %v4621
  %v4638 = vadd.f32 %v4634, %v4622
  %v4639 = vadd.f32 %v4635, %v4623
  %v4640 = vadd.f32 %v4636, %v4624
  %vm4641 = vcmp.ge.s32.totalorder %v2626, 5
  %vm4642 = vcmp.ge.s32.totalorder %v2627, 5
  %v4643 = vsel %vm4641, 1, 0
  %v4644 = vsel %vm4642, 1, 0
  %vm4645 = vcmp.eq.s32.totalorder %v4643, %v2691
  %vm4646 = vcmp.eq.s32.totalorder %v4644, %v2691
  %v4647 = vsel %vm4645, 1, 0
  %v4648 = vsel %vm4646, 1, 0
  %v4649 = vcvt.s32.f32 %v4647
  %v4650 = vcvt.s32.f32 %v4648
  %4651 = vset.pattern.permute.xlu0 15
  %4652 = vperm.xlu0 %4651, %v2268
  %v4653 = vpop.permute.xlu0 %4652
  %4655 = vset.pattern.permute.xlu0 15
  %4656 = vperm.xlu0 %4655, %v2269
  %v4657 = vpop.permute.xlu0 %4656
  %4659 = vset.pattern.permute.xlu0 15
  %4660 = vperm.xlu0 %4659, %v2270
  %v4661 = vpop.permute.xlu0 %4660
  %4663 = vset.pattern.permute.xlu0 15
  %4664 = vperm.xlu0 %4663, %v2271
  %v4665 = vpop.permute.xlu0 %4664
  %v4668 = vsel %vm2970, %v4637, 0
  %v4671 = vsel %vm2970, %v4638, 0
  %v4674 = vsel %vm2970, %v4639, 0
  %v4677 = vsel %vm2970, %v4640, 0
  %v4680 = vsel %vm3069, %v4650, 0
  %4682 = vmatprep.subr.mxu0 0.0
  %4683 = vmatpush1.msra.mxu0 %v4649
  %4684 = vmatprep.subr.mxu0 0.0
  %4685 = vmatpush1.msra.mxu0 %v4680
  %4686 = vmatprep.subr.mxu0 0.0
  %4687 = vmatpush1.msra.mxu0 0.0
  %4688 = vmatprep.subr.mxu0 0.0
  %4689 = vmatpush1.msra.mxu0 0.0
  %4690 = vmatprep.subr.mxu0 0.0
  %4691 = vmatpush1.msra.mxu0 0.0
  %4692 = vmatprep.subr.mxu0 0.0
  %4693 = vmatpush1.msra.mxu0 0.0
  %4694 = vmatprep.subr.mxu0 0.0
  %4695 = vmatpush1.msra.mxu0 0.0
  %4696 = vmatprep.subr.mxu0 0.0
  %4697 = vmatpush1.msra.mxu0 0.0
  %4698 = vmatprep.subr.mxu0 0.0
  %4699 = vmatpush1.msra.mxu0 0.0
  %4700 = vmatprep.subr.mxu0 0.0
  %4701 = vmatpush1.msra.mxu0 0.0
  %4702 = vmatprep.subr.mxu0 0.0
  %4703 = vmatpush1.msra.mxu0 0.0
  %4704 = vmatprep.subr.mxu0 0.0
  %4705 = vmatpush1.msra.mxu0 0.0
  %4706 = vmatprep.subr.mxu0 0.0
  %4707 = vmatpush1.msra.mxu0 0.0
  %4708 = vmatprep.subr.mxu0 0.0
  %4709 = vmatpush1.msra.mxu0 0.0
  %4710 = vmatprep.subr.mxu0 0.0
  %4711 = vmatpush1.msra.mxu0 0.0
  %4712 = vmatprep.subr.mxu0 0.0
  %4713 = vmatpush1.msra.mxu0 0.0
  %4714 = vmatprep.subr.mxu0 0.0
  %4715 = vmatpush1.msra.mxu0 0.0
  %4716 = vmatprep.subr.mxu0 0.0
  %4717 = vmatpush1.msra.mxu0 0.0
  %4718 = vmatprep.subr.mxu0 0.0
  %4719 = vmatpush1.msra.mxu0 0.0
  %4720 = vmatprep.subr.mxu0 0.0
  %4721 = vmatpush1.msra.mxu0 0.0
  %4722 = vmatprep.subr.mxu0 0.0
  %4723 = vmatpush1.msra.mxu0 0.0
  %4724 = vmatprep.subr.mxu0 0.0
  %4725 = vmatpush1.msra.mxu0 0.0
  %4726 = vmatprep.subr.mxu0 0.0
  %4727 = vmatpush1.msra.mxu0 0.0
  %4728 = vmatprep.subr.mxu0 0.0
  %4729 = vmatpush1.msra.mxu0 0.0
  %4730 = vmatprep.subr.mxu0 0.0
  %4731 = vmatpush1.msra.mxu0 0.0
  %4732 = vmatprep.subr.mxu0 0.0
  %4733 = vmatpush1.msra.mxu0 0.0
  %4734 = vmatprep.subr.mxu0 0.0
  %4735 = vmatpush1.msra.mxu0 0.0
  %4736 = vmatprep.subr.mxu0 0.0
  %4737 = vmatpush1.msra.mxu0 0.0
  %4738 = vmatprep.subr.mxu0 0.0
  %4739 = vmatpush1.msra.mxu0 0.0
  %4740 = vmatprep.subr.mxu0 0.0
  %4741 = vmatpush1.msra.mxu0 0.0
  %4742 = vmatprep.subr.mxu0 0.0
  %4743 = vmatpush1.msra.mxu0 0.0
  %4744 = vmatprep.subr.mxu0 0.0
  %4745 = vmatpush1.msra.mxu0 0.0
  %4746 = vmatprep.mubr.f32.mxu0 0.0
  %4747 = vmatmul.mubr.f32.gmra.mrb[0].mxu0 %v4668
  %v4748 = vpop.f32.mrb[0].mxu0
  %v4749 = vadd.f32 %v4653, %v4748
  %v4750 = vpop.f32.mrb[0].mxu0
  %4751 = vmatprep.mubr.f32.mxu0 0.0
  %4752 = vmatmul.mubr.f32.gmra.mrb[0].mxu0 %v4671
  %v4753 = vpop.f32.mrb[0].mxu0
  %v4754 = vadd.f32 %v4657, %v4753
  %v4755 = vpop.f32.mrb[0].mxu0
  %4756 = vmatprep.mubr.f32.mxu0 0.0
  %4757 = vmatmul.mubr.f32.gmra.mrb[0].mxu0 %v4674
  %v4758 = vpop.f32.mrb[0].mxu0
  %v4759 = vadd.f32 %v4661, %v4758
  %v4760 = vpop.f32.mrb[0].mxu0
  %4761 = vmatprep.mubr.f32.mxu0 0.0
  %4762 = vmatmul.mubr.f32.gmra.mrb[0].mxu0 %v4677
  %v4763 = vpop.f32.mrb[0].mxu0
  %v4764 = vadd.f32 %v4665, %v4763
  %v4765 = vpop.f32.mrb[0].mxu0
  %4766 = vdwg.mxu0
  %vm4767 = vcmp.eq.s32.totalorder %v2626, 16
  %vm4768 = vcmp.eq.s32.totalorder %v2627, 16
  %vm4769 = vcmp.eq.s32.totalorder %v2628, 16
  %vm4770 = vcmp.eq.s32.totalorder %v2629, 16
  %v4771 = vand.u32 2147483647, %v4749
  %v4772 = vand.u32 2147483647, %v4754
  %v4773 = vand.u32 2147483647, %v4759
  %v4774 = vand.u32 2147483647, %v4764
  %v4775 = vsub.f32 0.0, %v4771
  %v4776 = vsub.f32 0.0, %v4772
  %v4777 = vsub.f32 0.0, %v4773
  %v4778 = vsub.f32 0.0, %v4774
  %v4779 = vmul.f32 %v4775, 1.442695
  %v4780 = vpow.pop %v4779
  %v4781 = vmul.f32 %v4776, 1.442695
  %v4782 = vpow.pop %v4781
  %v4783 = vmul.f32 %v4777, 1.442695
  %v4784 = vpow.pop %v4783
  %v4785 = vmul.f32 %v4778, 1.442695
  %v4786 = vpow.pop %v4785
  %v4787 = vmax.f32 %v4749, 0.0
  %v4788 = vmax.f32 %v4754, 0.0
  %v4789 = vmax.f32 %v4759, 0.0
  %v4790 = vmax.f32 %v4764, 0.0
  %vm4791 = vcmp.lt.f32.partialorder %v4780, 0.0001
  %vm4792 = vcmp.lt.f32.partialorder %v4782, 0.0001
  %vm4793 = vcmp.lt.f32.partialorder %v4784, 0.0001
  %vm4794 = vcmp.lt.f32.partialorder %v4786, 0.0001
  %v4795 = vadd.f32 %v4780, 1.0
  %v4796 = vadd.f32 %v4782, 1.0
  %v4797 = vadd.f32 %v4784, 1.0
  %v4798 = vadd.f32 %v4786, 1.0
  %v4799 = vlog2.pop %v4795
  %v4800 = vmul.f32 %v4799, 0.6931472
  %v4801 = vlog2.pop %v4796
  %v4802 = vmul.f32 %v4801, 0.6931472
  %v4803 = vlog2.pop %v4797
  %v4804 = vmul.f32 %v4803, 0.6931472
  %v4805 = vlog2.pop %v4798
  %v4806 = vmul.f32 %v4805, 0.6931472
  %v4807 = vsel %vm4791, %v4780, %v4800
  %v4808 = vsel %vm4792, %v4782, %v4802
  %v4809 = vsel %vm4793, %v4784, %v4804
  %v4810 = vsel %vm4794, %v4786, %v4806
  %v4811 = vadd.f32 %v4787, %v4807
  %v4812 = vadd.f32 %v4788, %v4808
  %v4813 = vadd.f32 %v4789, %v4809
  %v4814 = vadd.f32 %v4790, %v4810
  %v4815 = vsel %vm4767, %v4811, %v4749
  %v4816 = vsel %vm4768, %v4812, %v4754
  %v4817 = vsel %vm4769, %v4813, %v4759
  %v4818 = vsel %vm4770, %v4814, %v4764
  %vm4819 = vcmask 15360
  %4820 = vst.msk [vmem:[%s4] sm:$0xff] %vm4819, %v4815
  %4821 = vst.msk [vmem:[%s4 + $0x8] sm:$0xff] %vm4819, %v4816
  %4822 = vst.msk [vmem:[%s4 + $0x10] sm:$0xff] %vm4819, %v4817
  %4823 = vst.msk [vmem:[%s4 + $0x18] sm:$0xff] %vm4819, %v4818
  // Predicated region
  $region18: #{value_network_forward.1} parent=0 // pred_check
    _
  $region19: #{value_network_forward.1} parent=0 // pred_check_branch
    %4825 = sbr.rel (0) target = $region21
  $region20: #{value_network_forward.1} parent=0 // pred_region
    _
  $region21: #{value_network_forward.1} parent=0 // pred_fallthru
    _
  // Predicated region
  $region22: #{value_network_forward.1} parent=0 // pred_check
    _
  $region23: #{value_network_forward.1} parent=0 // pred_check_branch
    %4827 = sbr.rel (0) target = $region25
  $region24: #{value_network_forward.1} parent=0 // pred_region
    _
  $region25: #{value_network_forward.1} parent=0 // pred_fallthru
    _

</llo_original>
